<compile_context>
chip_gen: v7x
topology: tpu7x:2x2x1
jax: 0.10.0
libtpu: 0.0.40
codegen_flags: <defaults>
</compile_context>

<pallas_src>
import jax
import jax.numpy as jnp
from jax.experimental import pallas as pl
from jax.experimental.pallas import tpu as pltpu


# ---------------------------------------------------------------------------
# In-kernel helpers (all operate on lane-dense (C, H*W) float32 values).
# ---------------------------------------------------------------------------

def _tap_conds(H, W, K):
    """Per-tap border-validity masks (None where the tap is never clipped)."""
    HW = H * W
    pad = (K - 1) // 2
    lane = jax.lax.broadcasted_iota(jnp.int32, (1, HW), 1)
    col = jnp.bitwise_and(lane, W - 1) if (W & (W - 1)) == 0 else lane % W
    conds = []
    for dy in range(-pad, pad + 1):
        for dx in range(-pad, pad + 1):
            c = None
            if dy < 0:
                c = lane >= (-dy) * W
            elif dy > 0:
                c = lane < HW - dy * W
            if dx < 0:
                cc = col >= -dx
                c = cc if c is None else c & cc
            elif dx > 0:
                cc = col <= W - 1 - dx
                c = cc if c is None else c & cc
            conds.append(c)
    return conds


def _conv_same(x, w_flat, b, conds, W, K):
    """'Same' KxK conv: x (Cin, HW), w_flat (Cout, K*K*Cin), b (Cout, 1)."""
    _, HW = x.shape
    pad = (K - 1) // 2
    taps, t = [], 0
    for dy in range(-pad, pad + 1):
        for dx in range(-pad, pad + 1):
            shift = (-(dy * W + dx)) % HW
            v = pltpu.roll(x, shift, axis=1) if shift else x   # XLU rotate, data stays put
            if conds[t] is not None:
                v = jnp.where(conds[t], v, 0.0)                # zero-fill the "same" padding
            taps.append(v)
            t += 1
    patch = jnp.concatenate(taps, axis=0)                      # (K*K*Cin, HW) im2col
    y = jnp.dot(w_flat, patch, preferred_element_type=jnp.float32)  # one MXU dot
    return y + b                                               # (Cout,1) lane-broadcast bias


def _group_norm_1g(x, gamma, beta, eps=1e-6):
    """GroupNorm with num_groups == 1 over one sample's (C, HW) tile."""
    C, HW = x.shape
    inv_n = 1.0 / (C * HW)
    mu = jnp.sum(jnp.sum(x, axis=1, keepdims=True), axis=0, keepdims=True) * inv_n
    xc = x - mu
    var = jnp.sum(jnp.sum(xc * xc, axis=1, keepdims=True), axis=0, keepdims=True) * inv_n
    return xc * jax.lax.rsqrt(var + eps) * gamma + beta


def _silu(x):
    return x * (1.0 / (1.0 + jnp.exp(-x)))


# ---------------------------------------------------------------------------
# Fully fused kernel: whole SimpleConv.forward for one batch element.
# ---------------------------------------------------------------------------

def _make_fused_kernel(plan, H, W, K):
    """plan: sequence of 'res' (10 param refs) / 'conv' (2 param refs) stages."""

    def kernel(*refs):
        x_ref = refs[0]
        o_ref = refs[-1]
        prm = refs[1:-1]
        conds = _tap_conds(H, W, K)                       # hoisted; shared by all convs
        h = x_ref[0].astype(jnp.float32)                  # (C, HW)
        idx = 0
        for op in plan:
            if op == "res":
                (g1, be1, w1, b1, g2, be2, w2, b2, ws, bs) = prm[idx:idx + 10]
                idx += 10
                x_in = h
                h = _group_norm_1g(x_in, g1[...], be1[...])
                h = _silu(h)
                h = _conv_same(h, w1[...], b1[...], conds, W, K)
                h = _group_norm_1g(h, g2[...], be2[...])
                h = _silu(h)
                # dropout(p=0.0) == identity
                h = _conv_same(h, w2[...], b2[...], conds, W, K)
                sc = jnp.dot(ws[...], x_in, preferred_element_type=jnp.float32) + bs[...]
                h = sc + h
            else:  # plain conv
                wf, bc = prm[idx:idx + 2]
                idx += 2
                h = _conv_same(h, wf[...], bc[...], conds, W, K)
        o_ref[0] = h.astype(o_ref.dtype)                  # one lane-dense store

    return kernel


# ---------------------------------------------------------------------------
# Wrapper (no transposes / pads of activations, single pallas_call).
# ---------------------------------------------------------------------------

def _flatten_w(w):
    """(Cout, Cin, K, K) torch layout -> (Cout, K*K*Cin) matching the tap order."""
    cout, cin, k, _ = w.shape
    return jnp.transpose(w, (0, 2, 3, 1)).reshape(cout, k * k * cin).astype(jnp.float32)


def simple_conv_forward(x_nchw, params):
    """SimpleConv.forward on NCHW input (final_norm=False -> norm is Identity)."""
    N, C, H, W = x_nchw.shape
    HW = H * W
    x = x_nchw.reshape(N, C, HW)          # free row-major reshape, no HBM transpose pass

    plan, flat_args = [], []

    def add_res(p, cin):
        w1, b1 = p["conv1"]["w"], p["conv1"]["b"]
        w2, b2 = p["conv2"]["w"], p["conv2"]["b"]
        cmid, cout = w1.shape[0], w2.shape[0]
        # Normalize() gives num_groups = C // 32 (or 1); always 1 for this module config.
        # TODO(synk): GroupNorm with num_groups > 1 not implemented (never hit here).
        assert max(cin // 32, 1) == 1 and max(cmid // 32, 1) == 1
        if cin != cout:
            ws = p["nin"]["w"].reshape(cout, cin).astype(jnp.float32)   # 1x1 shortcut
            bs = p["nin"]["b"].reshape(cout, 1).astype(jnp.float32)
        else:
            ws = jnp.eye(cout, dtype=jnp.float32)                       # identity shortcut
            bs = jnp.zeros((cout, 1), jnp.float32)
        flat_args.extend([
            p["norm1_g"].reshape(cin, 1).astype(jnp.float32),
            p["norm1_b"].reshape(cin, 1).astype(jnp.float32),
            _flatten_w(w1), b1.reshape(cmid, 1).astype(jnp.float32),
            p["norm2_g"].reshape(cmid, 1).astype(jnp.float32),
            p["norm2_b"].reshape(cmid, 1).astype(jnp.float32),
            _flatten_w(w2), b2.reshape(cout, 1).astype(jnp.float32),
            ws, bs,
        ])
        plan.append("res")
        return cout

    def add_conv(p):
        w, b = p["w"], p["b"]
        cout = w.shape[0]
        flat_args.extend([_flatten_w(w), b.reshape(cout, 1).astype(jnp.float32)])
        plan.append("conv")
        return cout

    cur = C
    for p in params["down"]:
        cur = add_res(p, cur)
    cur = add_conv(params["down_conv_out"])
    # final_norm=False -> self.norm is nn.Identity
    cur = add_conv(params["up_conv_in"])
    for p in params["up"]:
        cur = add_res(p, cur)
    cur = add_conv(params["up_conv_out"])
    Cout = cur
    K = params["down_conv_out"]["w"].shape[2]

    out = pl.pallas_call(
        _make_fused_kernel(tuple(plan), H, W, K),
        out_shape=jax.ShapeDtypeStruct((N, Cout, HW), x.dtype),
        grid_spec=pltpu.PrefetchScalarGridSpec(
            num_scalar_prefetch=0,
            grid=(N,),
            in_specs=[pl.BlockSpec((1, C, HW), lambda n: (n, 0, 0))]
                     + [pl.BlockSpec(a.shape, lambda n: (0, 0)) for a in flat_args],
            out_specs=pl.BlockSpec((1, Cout, HW), lambda n: (n, 0, 0)),
        ),
        compiler_params=pltpu.CompilerParams(dimension_semantics=("parallel",)),
    )(x, *flat_args)
    return out.reshape(N, Cout, H, W)


# ---------------------------------------------------------------------------
# Plain-JAX reference (NCHW) for verification.
# ---------------------------------------------------------------------------

def _ref_group_norm(x, gamma, beta, eps=1e-6):
    mu = jnp.mean(x, axis=(1, 2, 3), keepdims=True)
    xc = x - mu
    var = jnp.mean(xc * xc, axis=(1, 2, 3), keepdims=True)
    return (xc * jax.lax.rsqrt(var + eps) * gamma.reshape(1, -1, 1, 1)
            + beta.reshape(1, -1, 1, 1))


def _ref_conv(x, w, b):
    k = w.shape[2]
    pad = (k - 1) // 2
    y = jax.lax.conv_general_dilated(
        x, w, (1, 1), ((pad, pad), (pad, pad)),
        dimension_numbers=("NCHW", "OIHW", "NCHW"),
        precision=jax.lax.Precision.HIGHEST)
    return y + b.reshape(1, -1, 1, 1)


def _ref_resblock(x, p):
    h = _ref_group_norm(x, p["norm1_g"], p["norm1_b"])
    h = _silu(h)
    h = _ref_conv(h, p["conv1"]["w"], p["conv1"]["b"])
    h = _ref_group_norm(h, p["norm2_g"], p["norm2_b"])
    h = _silu(h)
    h = _ref_conv(h, p["conv2"]["w"], p["conv2"]["b"])
    if x.shape[1] != h.shape[1]:
        x = _ref_conv(x, p["nin"]["w"], p["nin"]["b"])
    return x + h


def _ref_forward(x, params):
    for p in params["down"]:
        x = _ref_resblock(x, p)
    x = _ref_conv(x, params["down_conv_out"]["w"], params["down_conv_out"]["b"])
    x = _ref_conv(x, params["up_conv_in"]["w"], params["up_conv_in"]["b"])
    for p in params["up"]:
        x = _ref_resblock(x, p)
    x = _ref_conv(x, params["up_conv_out"]["w"], params["up_conv_out"]["b"])
    return x


# ---------------------------------------------------------------------------
# Parameter construction.
# ---------------------------------------------------------------------------

def _conv_params(key, cin, cout, k, scale=0.1):
    kw, kb = jax.random.split(key)
    return {"w": scale * jax.random.normal(kw, (cout, cin, k, k), jnp.float32),
            "b": scale * jax.random.normal(kb, (cout,), jnp.float32)}


def _resblock_params(key, cin, cout, k):
    ks = jax.random.split(key, 7)
    cmid = cout  # res_first=False -> conv1_channel = out_channels
    return {
        "norm1_g": 1.0 + 0.1 * jax.random.normal(ks[0], (cin,), jnp.float32),
        "norm1_b": 0.1 * jax.random.normal(ks[1], (cin,), jnp.float32),
        "conv1": _conv_params(ks[2], cin, cmid, k),
        "norm2_g": 1.0 + 0.1 * jax.random.normal(ks[3], (cmid,), jnp.float32),
        "norm2_b": 0.1 * jax.random.normal(ks[4], (cmid,), jnp.float32),
        "conv2": _conv_params(ks[5], cmid, cout, k),
        "nin": _conv_params(ks[6], cin, cout, 1),
    }


if __name__ == "__main__":
    # SimpleConv(in_channels=32, layers=1, bottleneck_ratio=16.0, kernel_size=3,
    #            final_norm=False);  input (N=2, 32, 16, 16).
    in_channels, layers, bottleneck_ratio, kernel_size = 32, 1, 16.0, 3
    bottle_dim = int(in_channels // bottleneck_ratio)   # 2
    N, H, W = 2, 16, 16

    key = jax.random.PRNGKey(0)
    kx, kd, k1, k2, ku, k3 = jax.random.split(key, 6)
    x = jax.random.normal(kx, (N, in_channels, H, W), jnp.float32)

    # NOTE: `zero_module` only zero-initialises up_conv_out's parameters; the
    # forward op is the same conv either way, so random weights are used here
    # to keep the numerical check non-trivial.  `down_conv_in` is never used
    # by forward() and is therefore omitted.
    params = {
        "down": [_resblock_params(kd, in_channels, bottle_dim, kernel_size)],
        "down_conv_out": _conv_params(k1, bottle_dim, bottle_dim, kernel_size),
        "up_conv_in": _conv_params(k2, bottle_dim, bottle_dim, kernel_size),
        "up": [_resblock_params(ku, bottle_dim, in_channels, kernel_size)],
        "up_conv_out": _conv_params(k3, in_channels, in_channels, kernel_size),
    }

    out = jax.jit(simple_conv_forward)(x, params)
    out = jax.block_until_ready(out)

    ref = _ref_forward(x, params)
    assert out.shape == (N, in_channels, H, W), out.shape
    # Tolerance only to stay robust to MXU f32 rounding differences; typical
    # observed error is far smaller, and structural bugs are O(0.1+).
    err = float(jnp.max(jnp.abs(out - ref)))
    assert jnp.allclose(out, ref, atol=2e-2, rtol=2e-2), f"mismatch vs reference: {err}"

    print("KERNEL_OK")
</pallas_src>

<mosaic_0001>
module attributes {stable_mosaic.version = 11 : i64} {
  func.func @kernel(%arg0: i32, %arg1: memref<1x32x256xf32, #tpu.memory_space<vmem>>, %arg2: memref<32x1xf32, #tpu.memory_space<vmem>>, %arg3: memref<32x1xf32, #tpu.memory_space<vmem>>, %arg4: memref<2x288xf32, #tpu.memory_space<vmem>>, %arg5: memref<2x1xf32, #tpu.memory_space<vmem>>, %arg6: memref<2x1xf32, #tpu.memory_space<vmem>>, %arg7: memref<2x1xf32, #tpu.memory_space<vmem>>, %arg8: memref<2x18xf32, #tpu.memory_space<vmem>>, %arg9: memref<2x1xf32, #tpu.memory_space<vmem>>, %arg10: memref<2x32xf32, #tpu.memory_space<vmem>>, %arg11: memref<2x1xf32, #tpu.memory_space<vmem>>, %arg12: memref<2x18xf32, #tpu.memory_space<vmem>>, %arg13: memref<2x1xf32, #tpu.memory_space<vmem>>, %arg14: memref<2x18xf32, #tpu.memory_space<vmem>>, %arg15: memref<2x1xf32, #tpu.memory_space<vmem>>, %arg16: memref<2x1xf32, #tpu.memory_space<vmem>>, %arg17: memref<2x1xf32, #tpu.memory_space<vmem>>, %arg18: memref<32x18xf32, #tpu.memory_space<vmem>>, %arg19: memref<32x1xf32, #tpu.memory_space<vmem>>, %arg20: memref<32x1xf32, #tpu.memory_space<vmem>>, %arg21: memref<32x1xf32, #tpu.memory_space<vmem>>, %arg22: memref<32x288xf32, #tpu.memory_space<vmem>>, %arg23: memref<32x1xf32, #tpu.memory_space<vmem>>, %arg24: memref<32x2xf32, #tpu.memory_space<vmem>>, %arg25: memref<32x1xf32, #tpu.memory_space<vmem>>, %arg26: memref<32x288xf32, #tpu.memory_space<vmem>>, %arg27: memref<32x1xf32, #tpu.memory_space<vmem>>, %arg28: memref<1x32x256xf32, #tpu.memory_space<vmem>>) attributes {dimension_semantics = [#tpu.dimension_semantics<parallel>], iteration_bounds = array<i64: 2>, scalar_prefetch = 0 : i64, scratch_operands = 0 : i64, tpu.core_type = #tpu.core_type<tc>, window_params = [{transform_indices = @transform_0, window_bounds = array<i64: 1, 32, 256>}, {pipeline_mode = #tpu.pipeline_mode<synchronous>, transform_indices = @transform_1, window_bounds = array<i64: 32, 1>}, {pipeline_mode = #tpu.pipeline_mode<synchronous>, transform_indices = @transform_2, window_bounds = array<i64: 32, 1>}, {pipeline_mode = #tpu.pipeline_mode<synchronous>, transform_indices = @transform_3, window_bounds = array<i64: 2, 288>}, {pipeline_mode = #tpu.pipeline_mode<synchronous>, transform_indices = @transform_4, window_bounds = array<i64: 2, 1>}, {pipeline_mode = #tpu.pipeline_mode<synchronous>, transform_indices = @transform_5, window_bounds = array<i64: 2, 1>}, {pipeline_mode = #tpu.pipeline_mode<synchronous>, transform_indices = @transform_6, window_bounds = array<i64: 2, 1>}, {pipeline_mode = #tpu.pipeline_mode<synchronous>, transform_indices = @transform_7, window_bounds = array<i64: 2, 18>}, {pipeline_mode = #tpu.pipeline_mode<synchronous>, transform_indices = @transform_8, window_bounds = array<i64: 2, 1>}, {pipeline_mode = #tpu.pipeline_mode<synchronous>, transform_indices = @transform_9, window_bounds = array<i64: 2, 32>}, {pipeline_mode = #tpu.pipeline_mode<synchronous>, transform_indices = @transform_10, window_bounds = array<i64: 2, 1>}, {pipeline_mode = #tpu.pipeline_mode<synchronous>, transform_indices = @transform_11, window_bounds = array<i64: 2, 18>}, {pipeline_mode = #tpu.pipeline_mode<synchronous>, transform_indices = @transform_12, window_bounds = array<i64: 2, 1>}, {pipeline_mode = #tpu.pipeline_mode<synchronous>, transform_indices = @transform_13, window_bounds = array<i64: 2, 18>}, {pipeline_mode = #tpu.pipeline_mode<synchronous>, transform_indices = @transform_14, window_bounds = array<i64: 2, 1>}, {pipeline_mode = #tpu.pipeline_mode<synchronous>, transform_indices = @transform_15, window_bounds = array<i64: 2, 1>}, {pipeline_mode = #tpu.pipeline_mode<synchronous>, transform_indices = @transform_16, window_bounds = array<i64: 2, 1>}, {pipeline_mode = #tpu.pipeline_mode<synchronous>, transform_indices = @transform_17, window_bounds = array<i64: 32, 18>}, {pipeline_mode = #tpu.pipeline_mode<synchronous>, transform_indices = @transform_18, window_bounds = array<i64: 32, 1>}, {pipeline_mode = #tpu.pipeline_mode<synchronous>, transform_indices = @transform_19, window_bounds = array<i64: 32, 1>}, {pipeline_mode = #tpu.pipeline_mode<synchronous>, transform_indices = @transform_20, window_bounds = array<i64: 32, 1>}, {pipeline_mode = #tpu.pipeline_mode<synchronous>, transform_indices = @transform_21, window_bounds = array<i64: 32, 288>}, {pipeline_mode = #tpu.pipeline_mode<synchronous>, transform_indices = @transform_22, window_bounds = array<i64: 32, 1>}, {pipeline_mode = #tpu.pipeline_mode<synchronous>, transform_indices = @transform_23, window_bounds = array<i64: 32, 2>}, {pipeline_mode = #tpu.pipeline_mode<synchronous>, transform_indices = @transform_24, window_bounds = array<i64: 32, 1>}, {pipeline_mode = #tpu.pipeline_mode<synchronous>, transform_indices = @transform_25, window_bounds = array<i64: 32, 288>}, {pipeline_mode = #tpu.pipeline_mode<synchronous>, transform_indices = @transform_26, window_bounds = array<i64: 32, 1>}, {transform_indices = @transform_27, window_bounds = array<i64: 1, 32, 256>}]} {
    %0 = tpu.iota {dimensions = array<i32: 1>} : vector<1x256xi32>
    %c15_i32 = arith.constant 15 : i32
    %1 = vector.broadcast %c15_i32 : i32 to vector<1x256xi32>
    %2 = arith.andi %0, %1 : vector<1x256xi32>
    %c16_i32 = arith.constant 16 : i32
    %3 = vector.broadcast %c16_i32 : i32 to vector<1x256xi32>
    %4 = arith.cmpi sge, %0, %3 : vector<1x256xi32>
    %c1_i32 = arith.constant 1 : i32
    %5 = vector.broadcast %c1_i32 : i32 to vector<1x256xi32>
    %6 = arith.cmpi sge, %2, %5 : vector<1x256xi32>
    %7 = arith.andi %4, %6 : vector<1x256xi1>
    %c16_i32_0 = arith.constant 16 : i32
    %8 = vector.broadcast %c16_i32_0 : i32 to vector<1x256xi32>
    %9 = arith.cmpi sge, %0, %8 : vector<1x256xi32>
    %c16_i32_1 = arith.constant 16 : i32
    %10 = vector.broadcast %c16_i32_1 : i32 to vector<1x256xi32>
    %11 = arith.cmpi sge, %0, %10 : vector<1x256xi32>
    %c14_i32 = arith.constant 14 : i32
    %12 = vector.broadcast %c14_i32 : i32 to vector<1x256xi32>
    %13 = arith.cmpi sle, %2, %12 : vector<1x256xi32>
    %14 = arith.andi %11, %13 : vector<1x256xi1>
    %c1_i32_2 = arith.constant 1 : i32
    %15 = vector.broadcast %c1_i32_2 : i32 to vector<1x256xi32>
    %16 = arith.cmpi sge, %2, %15 : vector<1x256xi32>
    %c14_i32_3 = arith.constant 14 : i32
    %17 = vector.broadcast %c14_i32_3 : i32 to vector<1x256xi32>
    %18 = arith.cmpi sle, %2, %17 : vector<1x256xi32>
    %c240_i32 = arith.constant 240 : i32
    %19 = vector.broadcast %c240_i32 : i32 to vector<1x256xi32>
    %20 = arith.cmpi slt, %0, %19 : vector<1x256xi32>
    %c1_i32_4 = arith.constant 1 : i32
    %21 = vector.broadcast %c1_i32_4 : i32 to vector<1x256xi32>
    %22 = arith.cmpi sge, %2, %21 : vector<1x256xi32>
    %23 = arith.andi %20, %22 : vector<1x256xi1>
    %c240_i32_5 = arith.constant 240 : i32
    %24 = vector.broadcast %c240_i32_5 : i32 to vector<1x256xi32>
    %25 = arith.cmpi slt, %0, %24 : vector<1x256xi32>
    %c240_i32_6 = arith.constant 240 : i32
    %26 = vector.broadcast %c240_i32_6 : i32 to vector<1x256xi32>
    %27 = arith.cmpi slt, %0, %26 : vector<1x256xi32>
    %c14_i32_7 = arith.constant 14 : i32
    %28 = vector.broadcast %c14_i32_7 : i32 to vector<1x256xi32>
    %29 = arith.cmpi sle, %2, %28 : vector<1x256xi32>
    %30 = arith.andi %27, %29 : vector<1x256xi1>
    %c0 = arith.constant 0 : index
    %c0_8 = arith.constant 0 : index
    %c0_9 = arith.constant 0 : index
    %31 = vector.load %arg1[%c0, %c0_8, %c0_9] : memref<1x32x256xf32, #tpu.memory_space<vmem>>, vector<1x32x256xf32>
    %32 = vector.shape_cast %31 : vector<1x32x256xf32> to vector<32x256xf32>
    %c0_10 = arith.constant 0 : index
    %c0_11 = arith.constant 0 : index
    %33 = vector.load %arg2[%c0_10, %c0_11] : memref<32x1xf32, #tpu.memory_space<vmem>>, vector<32x1xf32>
    %c0_12 = arith.constant 0 : index
    %c0_13 = arith.constant 0 : index
    %34 = vector.load %arg3[%c0_12, %c0_13] : memref<32x1xf32, #tpu.memory_space<vmem>>, vector<32x1xf32>
    %cst = arith.constant dense<0.000000e+00> : vector<32xf32>
    %35 = vector.multi_reduction <add>, %32, %cst [1] : vector<32x256xf32> to vector<32xf32>
    %36 = vector.shape_cast %35 : vector<32xf32> to vector<32x1xf32>
    %cst_14 = arith.constant dense<0.000000e+00> : vector<1xf32>
    %37 = vector.multi_reduction <add>, %36, %cst_14 [0] : vector<32x1xf32> to vector<1xf32>
    %38 = vector.shape_cast %37 : vector<1xf32> to vector<1x1xf32>
    %cst_15 = arith.constant 1.22070313E-4 : f32
    %39 = vector.broadcast %cst_15 : f32 to vector<1x1xf32>
    %40 = arith.mulf %38, %39 : vector<1x1xf32>
    %41 = vector.broadcast %40 : vector<1x1xf32> to vector<32x256xf32>
    %42 = arith.subf %32, %41 : vector<32x256xf32>
    %43 = arith.mulf %42, %42 : vector<32x256xf32>
    %cst_16 = arith.constant dense<0.000000e+00> : vector<32xf32>
    %44 = vector.multi_reduction <add>, %43, %cst_16 [1] : vector<32x256xf32> to vector<32xf32>
    %45 = vector.shape_cast %44 : vector<32xf32> to vector<32x1xf32>
    %cst_17 = arith.constant dense<0.000000e+00> : vector<1xf32>
    %46 = vector.multi_reduction <add>, %45, %cst_17 [0] : vector<32x1xf32> to vector<1xf32>
    %47 = vector.shape_cast %46 : vector<1xf32> to vector<1x1xf32>
    %cst_18 = arith.constant 1.22070313E-4 : f32
    %48 = vector.broadcast %cst_18 : f32 to vector<1x1xf32>
    %49 = arith.mulf %47, %48 : vector<1x1xf32>
    %cst_19 = arith.constant 9.99999997E-7 : f32
    %50 = vector.broadcast %cst_19 : f32 to vector<1x1xf32>
    %51 = arith.addf %49, %50 : vector<1x1xf32>
    %52 = math.rsqrt %51 : vector<1x1xf32>
    %53 = vector.broadcast %52 : vector<1x1xf32> to vector<32x256xf32>
    %54 = arith.mulf %42, %53 : vector<32x256xf32>
    %55 = vector.broadcast %33 : vector<32x1xf32> to vector<32x256xf32>
    %56 = arith.mulf %54, %55 : vector<32x256xf32>
    %57 = vector.broadcast %34 : vector<32x1xf32> to vector<32x256xf32>
    %58 = arith.addf %56, %57 : vector<32x256xf32>
    %cst_20 = arith.constant 0.000000e+00 : f32
    %59 = vector.broadcast %cst_20 : f32 to vector<32x256xf32>
    %60 = arith.subf %59, %58 : vector<32x256xf32>
    %61 = math.exp %60 : vector<32x256xf32>
    %cst_21 = arith.constant 1.000000e+00 : f32
    %62 = vector.broadcast %cst_21 : f32 to vector<32x256xf32>
    %63 = arith.addf %62, %61 : vector<32x256xf32>
    %cst_22 = arith.constant 1.000000e+00 : f32
    %64 = vector.broadcast %cst_22 : f32 to vector<32x256xf32>
    %65 = arith.divf %64, %63 : vector<32x256xf32>
    %66 = arith.mulf %58, %65 : vector<32x256xf32>
    %c0_23 = arith.constant 0 : index
    %c0_24 = arith.constant 0 : index
    %67 = vector.load %arg4[%c0_23, %c0_24] : memref<2x288xf32, #tpu.memory_space<vmem>>, vector<2x288xf32>
    %c0_25 = arith.constant 0 : index
    %c0_26 = arith.constant 0 : index
    %68 = vector.load %arg5[%c0_25, %c0_26] : memref<2x1xf32, #tpu.memory_space<vmem>>, vector<2x1xf32>
    %c17_i32 = arith.constant 17 : i32
    %69 = tpu.dynamic_rotate %66 by %c17_i32 dim 1 : vector<32x256xf32>, i32 -> vector<32x256xf32>
    %cst_27 = arith.constant 0.000000e+00 : f32
    %70 = vector.shape_cast %7 : vector<1x256xi1> to vector<1x256xi1>
    %71 = vector.broadcast %70 : vector<1x256xi1> to vector<32x256xi1>
    %72 = vector.broadcast %cst_27 : f32 to vector<32x256xf32>
    %73 = arith.select %71, %69, %72 : vector<32x256xi1>, vector<32x256xf32>
    %c16_i32_28 = arith.constant 16 : i32
    %74 = tpu.dynamic_rotate %66 by %c16_i32_28 dim 1 : vector<32x256xf32>, i32 -> vector<32x256xf32>
    %cst_29 = arith.constant 0.000000e+00 : f32
    %75 = vector.shape_cast %9 : vector<1x256xi1> to vector<1x256xi1>
    %76 = vector.broadcast %75 : vector<1x256xi1> to vector<32x256xi1>
    %77 = vector.broadcast %cst_29 : f32 to vector<32x256xf32>
    %78 = arith.select %76, %74, %77 : vector<32x256xi1>, vector<32x256xf32>
    %c15_i32_30 = arith.constant 15 : i32
    %79 = tpu.dynamic_rotate %66 by %c15_i32_30 dim 1 : vector<32x256xf32>, i32 -> vector<32x256xf32>
    %cst_31 = arith.constant 0.000000e+00 : f32
    %80 = vector.shape_cast %14 : vector<1x256xi1> to vector<1x256xi1>
    %81 = vector.broadcast %80 : vector<1x256xi1> to vector<32x256xi1>
    %82 = vector.broadcast %cst_31 : f32 to vector<32x256xf32>
    %83 = arith.select %81, %79, %82 : vector<32x256xi1>, vector<32x256xf32>
    %c1_i32_32 = arith.constant 1 : i32
    %84 = tpu.dynamic_rotate %66 by %c1_i32_32 dim 1 : vector<32x256xf32>, i32 -> vector<32x256xf32>
    %cst_33 = arith.constant 0.000000e+00 : f32
    %85 = vector.shape_cast %16 : vector<1x256xi1> to vector<1x256xi1>
    %86 = vector.broadcast %85 : vector<1x256xi1> to vector<32x256xi1>
    %87 = vector.broadcast %cst_33 : f32 to vector<32x256xf32>
    %88 = arith.select %86, %84, %87 : vector<32x256xi1>, vector<32x256xf32>
    %c255_i32 = arith.constant 255 : i32
    %89 = tpu.dynamic_rotate %66 by %c255_i32 dim 1 : vector<32x256xf32>, i32 -> vector<32x256xf32>
    %cst_34 = arith.constant 0.000000e+00 : f32
    %90 = vector.shape_cast %18 : vector<1x256xi1> to vector<1x256xi1>
    %91 = vector.broadcast %90 : vector<1x256xi1> to vector<32x256xi1>
    %92 = vector.broadcast %cst_34 : f32 to vector<32x256xf32>
    %93 = arith.select %91, %89, %92 : vector<32x256xi1>, vector<32x256xf32>
    %c241_i32 = arith.constant 241 : i32
    %94 = tpu.dynamic_rotate %66 by %c241_i32 dim 1 : vector<32x256xf32>, i32 -> vector<32x256xf32>
    %cst_35 = arith.constant 0.000000e+00 : f32
    %95 = vector.shape_cast %23 : vector<1x256xi1> to vector<1x256xi1>
    %96 = vector.broadcast %95 : vector<1x256xi1> to vector<32x256xi1>
    %97 = vector.broadcast %cst_35 : f32 to vector<32x256xf32>
    %98 = arith.select %96, %94, %97 : vector<32x256xi1>, vector<32x256xf32>
    %c240_i32_36 = arith.constant 240 : i32
    %99 = tpu.dynamic_rotate %66 by %c240_i32_36 dim 1 : vector<32x256xf32>, i32 -> vector<32x256xf32>
    %cst_37 = arith.constant 0.000000e+00 : f32
    %100 = vector.shape_cast %25 : vector<1x256xi1> to vector<1x256xi1>
    %101 = vector.broadcast %100 : vector<1x256xi1> to vector<32x256xi1>
    %102 = vector.broadcast %cst_37 : f32 to vector<32x256xf32>
    %103 = arith.select %101, %99, %102 : vector<32x256xi1>, vector<32x256xf32>
    %c239_i32 = arith.constant 239 : i32
    %104 = tpu.dynamic_rotate %66 by %c239_i32 dim 1 : vector<32x256xf32>, i32 -> vector<32x256xf32>
    %cst_38 = arith.constant 0.000000e+00 : f32
    %105 = vector.shape_cast %30 : vector<1x256xi1> to vector<1x256xi1>
    %106 = vector.broadcast %105 : vector<1x256xi1> to vector<32x256xi1>
    %107 = vector.broadcast %cst_38 : f32 to vector<32x256xf32>
    %108 = arith.select %106, %104, %107 : vector<32x256xi1>, vector<32x256xf32>
    %109 = tpu.concatenate %73, %78, %83, %88, %66, %93, %98, %103, %108 in 0 : vector<32x256xf32>, vector<32x256xf32>, vector<32x256xf32>, vector<32x256xf32>, vector<32x256xf32>, vector<32x256xf32>, vector<32x256xf32>, vector<32x256xf32>, vector<32x256xf32> -> vector<288x256xf32>
    %cst_39 = arith.constant dense<0.000000e+00> : vector<2x256xf32>
    %110 = tpu.matmul %67, %109, %cst_39 {dimension_numbers = #tpu.dot_dimension_numbers<[1], [0], [0], [1], [0, 0, 1, 1], [], []>} : vector<2x288xf32>, vector<288x256xf32>, vector<2x256xf32> -> vector<2x256xf32>
    %111 = vector.broadcast %68 : vector<2x1xf32> to vector<2x256xf32>
    %112 = arith.addf %110, %111 : vector<2x256xf32>
    %c0_40 = arith.constant 0 : index
    %c0_41 = arith.constant 0 : index
    %113 = vector.load %arg6[%c0_40, %c0_41] : memref<2x1xf32, #tpu.memory_space<vmem>>, vector<2x1xf32>
    %c0_42 = arith.constant 0 : index
    %c0_43 = arith.constant 0 : index
    %114 = vector.load %arg7[%c0_42, %c0_43] : memref<2x1xf32, #tpu.memory_space<vmem>>, vector<2x1xf32>
    %cst_44 = arith.constant dense<0.000000e+00> : vector<2xf32>
    %115 = vector.multi_reduction <add>, %112, %cst_44 [1] : vector<2x256xf32> to vector<2xf32>
    %116 = vector.shape_cast %115 : vector<2xf32> to vector<2x1xf32>
    %cst_45 = arith.constant dense<0.000000e+00> : vector<1xf32>
    %117 = vector.multi_reduction <add>, %116, %cst_45 [0] : vector<2x1xf32> to vector<1xf32>
    %118 = vector.shape_cast %117 : vector<1xf32> to vector<1x1xf32>
    %cst_46 = arith.constant 0.001953125 : f32
    %119 = vector.broadcast %cst_46 : f32 to vector<1x1xf32>
    %120 = arith.mulf %118, %119 : vector<1x1xf32>
    %121 = vector.broadcast %120 : vector<1x1xf32> to vector<2x256xf32>
    %122 = arith.subf %112, %121 : vector<2x256xf32>
    %123 = arith.mulf %122, %122 : vector<2x256xf32>
    %cst_47 = arith.constant dense<0.000000e+00> : vector<2xf32>
    %124 = vector.multi_reduction <add>, %123, %cst_47 [1] : vector<2x256xf32> to vector<2xf32>
    %125 = vector.shape_cast %124 : vector<2xf32> to vector<2x1xf32>
    %cst_48 = arith.constant dense<0.000000e+00> : vector<1xf32>
    %126 = vector.multi_reduction <add>, %125, %cst_48 [0] : vector<2x1xf32> to vector<1xf32>
    %127 = vector.shape_cast %126 : vector<1xf32> to vector<1x1xf32>
    %cst_49 = arith.constant 0.001953125 : f32
    %128 = vector.broadcast %cst_49 : f32 to vector<1x1xf32>
    %129 = arith.mulf %127, %128 : vector<1x1xf32>
    %cst_50 = arith.constant 9.99999997E-7 : f32
    %130 = vector.broadcast %cst_50 : f32 to vector<1x1xf32>
    %131 = arith.addf %129, %130 : vector<1x1xf32>
    %132 = math.rsqrt %131 : vector<1x1xf32>
    %133 = vector.broadcast %132 : vector<1x1xf32> to vector<2x256xf32>
    %134 = arith.mulf %122, %133 : vector<2x256xf32>
    %135 = vector.broadcast %113 : vector<2x1xf32> to vector<2x256xf32>
    %136 = arith.mulf %134, %135 : vector<2x256xf32>
    %137 = vector.broadcast %114 : vector<2x1xf32> to vector<2x256xf32>
    %138 = arith.addf %136, %137 : vector<2x256xf32>
    %cst_51 = arith.constant 0.000000e+00 : f32
    %139 = vector.broadcast %cst_51 : f32 to vector<2x256xf32>
    %140 = arith.subf %139, %138 : vector<2x256xf32>
    %141 = math.exp %140 : vector<2x256xf32>
    %cst_52 = arith.constant 1.000000e+00 : f32
    %142 = vector.broadcast %cst_52 : f32 to vector<2x256xf32>
    %143 = arith.addf %142, %141 : vector<2x256xf32>
    %cst_53 = arith.constant 1.000000e+00 : f32
    %144 = vector.broadcast %cst_53 : f32 to vector<2x256xf32>
    %145 = arith.divf %144, %143 : vector<2x256xf32>
    %146 = arith.mulf %138, %145 : vector<2x256xf32>
    %c0_54 = arith.constant 0 : index
    %c0_55 = arith.constant 0 : index
    %147 = vector.load %arg8[%c0_54, %c0_55] : memref<2x18xf32, #tpu.memory_space<vmem>>, vector<2x18xf32>
    %c0_56 = arith.constant 0 : index
    %c0_57 = arith.constant 0 : index
    %148 = vector.load %arg9[%c0_56, %c0_57] : memref<2x1xf32, #tpu.memory_space<vmem>>, vector<2x1xf32>
    %c17_i32_58 = arith.constant 17 : i32
    %149 = tpu.dynamic_rotate %146 by %c17_i32_58 dim 1 : vector<2x256xf32>, i32 -> vector<2x256xf32>
    %cst_59 = arith.constant 0.000000e+00 : f32
    %150 = vector.shape_cast %7 : vector<1x256xi1> to vector<1x256xi1>
    %151 = vector.broadcast %150 : vector<1x256xi1> to vector<2x256xi1>
    %152 = vector.broadcast %cst_59 : f32 to vector<2x256xf32>
    %153 = arith.select %151, %149, %152 : vector<2x256xi1>, vector<2x256xf32>
    %c16_i32_60 = arith.constant 16 : i32
    %154 = tpu.dynamic_rotate %146 by %c16_i32_60 dim 1 : vector<2x256xf32>, i32 -> vector<2x256xf32>
    %cst_61 = arith.constant 0.000000e+00 : f32
    %155 = vector.shape_cast %9 : vector<1x256xi1> to vector<1x256xi1>
    %156 = vector.broadcast %155 : vector<1x256xi1> to vector<2x256xi1>
    %157 = vector.broadcast %cst_61 : f32 to vector<2x256xf32>
    %158 = arith.select %156, %154, %157 : vector<2x256xi1>, vector<2x256xf32>
    %c15_i32_62 = arith.constant 15 : i32
    %159 = tpu.dynamic_rotate %146 by %c15_i32_62 dim 1 : vector<2x256xf32>, i32 -> vector<2x256xf32>
    %cst_63 = arith.constant 0.000000e+00 : f32
    %160 = vector.shape_cast %14 : vector<1x256xi1> to vector<1x256xi1>
    %161 = vector.broadcast %160 : vector<1x256xi1> to vector<2x256xi1>
    %162 = vector.broadcast %cst_63 : f32 to vector<2x256xf32>
    %163 = arith.select %161, %159, %162 : vector<2x256xi1>, vector<2x256xf32>
    %c1_i32_64 = arith.constant 1 : i32
    %164 = tpu.dynamic_rotate %146 by %c1_i32_64 dim 1 : vector<2x256xf32>, i32 -> vector<2x256xf32>
    %cst_65 = arith.constant 0.000000e+00 : f32
    %165 = vector.shape_cast %16 : vector<1x256xi1> to vector<1x256xi1>
    %166 = vector.broadcast %165 : vector<1x256xi1> to vector<2x256xi1>
    %167 = vector.broadcast %cst_65 : f32 to vector<2x256xf32>
    %168 = arith.select %166, %164, %167 : vector<2x256xi1>, vector<2x256xf32>
    %c255_i32_66 = arith.constant 255 : i32
    %169 = tpu.dynamic_rotate %146 by %c255_i32_66 dim 1 : vector<2x256xf32>, i32 -> vector<2x256xf32>
    %cst_67 = arith.constant 0.000000e+00 : f32
    %170 = vector.shape_cast %18 : vector<1x256xi1> to vector<1x256xi1>
    %171 = vector.broadcast %170 : vector<1x256xi1> to vector<2x256xi1>
    %172 = vector.broadcast %cst_67 : f32 to vector<2x256xf32>
    %173 = arith.select %171, %169, %172 : vector<2x256xi1>, vector<2x256xf32>
    %c241_i32_68 = arith.constant 241 : i32
    %174 = tpu.dynamic_rotate %146 by %c241_i32_68 dim 1 : vector<2x256xf32>, i32 -> vector<2x256xf32>
    %cst_69 = arith.constant 0.000000e+00 : f32
    %175 = vector.shape_cast %23 : vector<1x256xi1> to vector<1x256xi1>
    %176 = vector.broadcast %175 : vector<1x256xi1> to vector<2x256xi1>
    %177 = vector.broadcast %cst_69 : f32 to vector<2x256xf32>
    %178 = arith.select %176, %174, %177 : vector<2x256xi1>, vector<2x256xf32>
    %c240_i32_70 = arith.constant 240 : i32
    %179 = tpu.dynamic_rotate %146 by %c240_i32_70 dim 1 : vector<2x256xf32>, i32 -> vector<2x256xf32>
    %cst_71 = arith.constant 0.000000e+00 : f32
    %180 = vector.shape_cast %25 : vector<1x256xi1> to vector<1x256xi1>
    %181 = vector.broadcast %180 : vector<1x256xi1> to vector<2x256xi1>
    %182 = vector.broadcast %cst_71 : f32 to vector<2x256xf32>
    %183 = arith.select %181, %179, %182 : vector<2x256xi1>, vector<2x256xf32>
    %c239_i32_72 = arith.constant 239 : i32
    %184 = tpu.dynamic_rotate %146 by %c239_i32_72 dim 1 : vector<2x256xf32>, i32 -> vector<2x256xf32>
    %cst_73 = arith.constant 0.000000e+00 : f32
    %185 = vector.shape_cast %30 : vector<1x256xi1> to vector<1x256xi1>
    %186 = vector.broadcast %185 : vector<1x256xi1> to vector<2x256xi1>
    %187 = vector.broadcast %cst_73 : f32 to vector<2x256xf32>
    %188 = arith.select %186, %184, %187 : vector<2x256xi1>, vector<2x256xf32>
    %189 = tpu.concatenate %153, %158, %163, %168, %146, %173, %178, %183, %188 in 0 : vector<2x256xf32>, vector<2x256xf32>, vector<2x256xf32>, vector<2x256xf32>, vector<2x256xf32>, vector<2x256xf32>, vector<2x256xf32>, vector<2x256xf32>, vector<2x256xf32> -> vector<18x256xf32>
    %cst_74 = arith.constant dense<0.000000e+00> : vector<2x256xf32>
    %190 = tpu.matmul %147, %189, %cst_74 {dimension_numbers = #tpu.dot_dimension_numbers<[1], [0], [0], [1], [0, 0, 1, 1], [], []>} : vector<2x18xf32>, vector<18x256xf32>, vector<2x256xf32> -> vector<2x256xf32>
    %191 = vector.broadcast %148 : vector<2x1xf32> to vector<2x256xf32>
    %192 = arith.addf %190, %191 : vector<2x256xf32>
    %c0_75 = arith.constant 0 : index
    %c0_76 = arith.constant 0 : index
    %193 = vector.load %arg10[%c0_75, %c0_76] : memref<2x32xf32, #tpu.memory_space<vmem>>, vector<2x32xf32>
    %cst_77 = arith.constant dense<0.000000e+00> : vector<2x256xf32>
    %194 = tpu.matmul %193, %32, %cst_77 {dimension_numbers = #tpu.dot_dimension_numbers<[1], [0], [0], [1], [0, 0, 1, 1], [], []>} : vector<2x32xf32>, vector<32x256xf32>, vector<2x256xf32> -> vector<2x256xf32>
    %c0_78 = arith.constant 0 : index
    %c0_79 = arith.constant 0 : index
    %195 = vector.load %arg11[%c0_78, %c0_79] : memref<2x1xf32, #tpu.memory_space<vmem>>, vector<2x1xf32>
    %196 = vector.broadcast %195 : vector<2x1xf32> to vector<2x256xf32>
    %197 = arith.addf %194, %196 : vector<2x256xf32>
    %198 = arith.addf %197, %192 : vector<2x256xf32>
    %c0_80 = arith.constant 0 : index
    %c0_81 = arith.constant 0 : index
    %199 = vector.load %arg12[%c0_80, %c0_81] : memref<2x18xf32, #tpu.memory_space<vmem>>, vector<2x18xf32>
    %c0_82 = arith.constant 0 : index
    %c0_83 = arith.constant 0 : index
    %200 = vector.load %arg13[%c0_82, %c0_83] : memref<2x1xf32, #tpu.memory_space<vmem>>, vector<2x1xf32>
    %c17_i32_84 = arith.constant 17 : i32
    %201 = tpu.dynamic_rotate %198 by %c17_i32_84 dim 1 : vector<2x256xf32>, i32 -> vector<2x256xf32>
    %cst_85 = arith.constant 0.000000e+00 : f32
    %202 = vector.shape_cast %7 : vector<1x256xi1> to vector<1x256xi1>
    %203 = vector.broadcast %202 : vector<1x256xi1> to vector<2x256xi1>
    %204 = vector.broadcast %cst_85 : f32 to vector<2x256xf32>
    %205 = arith.select %203, %201, %204 : vector<2x256xi1>, vector<2x256xf32>
    %c16_i32_86 = arith.constant 16 : i32
    %206 = tpu.dynamic_rotate %198 by %c16_i32_86 dim 1 : vector<2x256xf32>, i32 -> vector<2x256xf32>
    %cst_87 = arith.constant 0.000000e+00 : f32
    %207 = vector.shape_cast %9 : vector<1x256xi1> to vector<1x256xi1>
    %208 = vector.broadcast %207 : vector<1x256xi1> to vector<2x256xi1>
    %209 = vector.broadcast %cst_87 : f32 to vector<2x256xf32>
    %210 = arith.select %208, %206, %209 : vector<2x256xi1>, vector<2x256xf32>
    %c15_i32_88 = arith.constant 15 : i32
    %211 = tpu.dynamic_rotate %198 by %c15_i32_88 dim 1 : vector<2x256xf32>, i32 -> vector<2x256xf32>
    %cst_89 = arith.constant 0.000000e+00 : f32
    %212 = vector.shape_cast %14 : vector<1x256xi1> to vector<1x256xi1>
    %213 = vector.broadcast %212 : vector<1x256xi1> to vector<2x256xi1>
    %214 = vector.broadcast %cst_89 : f32 to vector<2x256xf32>
    %215 = arith.select %213, %211, %214 : vector<2x256xi1>, vector<2x256xf32>
    %c1_i32_90 = arith.constant 1 : i32
    %216 = tpu.dynamic_rotate %198 by %c1_i32_90 dim 1 : vector<2x256xf32>, i32 -> vector<2x256xf32>
    %cst_91 = arith.constant 0.000000e+00 : f32
    %217 = vector.shape_cast %16 : vector<1x256xi1> to vector<1x256xi1>
    %218 = vector.broadcast %217 : vector<1x256xi1> to vector<2x256xi1>
    %219 = vector.broadcast %cst_91 : f32 to vector<2x256xf32>
    %220 = arith.select %218, %216, %219 : vector<2x256xi1>, vector<2x256xf32>
    %c255_i32_92 = arith.constant 255 : i32
    %221 = tpu.dynamic_rotate %198 by %c255_i32_92 dim 1 : vector<2x256xf32>, i32 -> vector<2x256xf32>
    %cst_93 = arith.constant 0.000000e+00 : f32
    %222 = vector.shape_cast %18 : vector<1x256xi1> to vector<1x256xi1>
    %223 = vector.broadcast %222 : vector<1x256xi1> to vector<2x256xi1>
    %224 = vector.broadcast %cst_93 : f32 to vector<2x256xf32>
    %225 = arith.select %223, %221, %224 : vector<2x256xi1>, vector<2x256xf32>
    %c241_i32_94 = arith.constant 241 : i32
    %226 = tpu.dynamic_rotate %198 by %c241_i32_94 dim 1 : vector<2x256xf32>, i32 -> vector<2x256xf32>
    %cst_95 = arith.constant 0.000000e+00 : f32
    %227 = vector.shape_cast %23 : vector<1x256xi1> to vector<1x256xi1>
    %228 = vector.broadcast %227 : vector<1x256xi1> to vector<2x256xi1>
    %229 = vector.broadcast %cst_95 : f32 to vector<2x256xf32>
    %230 = arith.select %228, %226, %229 : vector<2x256xi1>, vector<2x256xf32>
    %c240_i32_96 = arith.constant 240 : i32
    %231 = tpu.dynamic_rotate %198 by %c240_i32_96 dim 1 : vector<2x256xf32>, i32 -> vector<2x256xf32>
    %cst_97 = arith.constant 0.000000e+00 : f32
    %232 = vector.shape_cast %25 : vector<1x256xi1> to vector<1x256xi1>
    %233 = vector.broadcast %232 : vector<1x256xi1> to vector<2x256xi1>
    %234 = vector.broadcast %cst_97 : f32 to vector<2x256xf32>
    %235 = arith.select %233, %231, %234 : vector<2x256xi1>, vector<2x256xf32>
    %c239_i32_98 = arith.constant 239 : i32
    %236 = tpu.dynamic_rotate %198 by %c239_i32_98 dim 1 : vector<2x256xf32>, i32 -> vector<2x256xf32>
    %cst_99 = arith.constant 0.000000e+00 : f32
    %237 = vector.shape_cast %30 : vector<1x256xi1> to vector<1x256xi1>
    %238 = vector.broadcast %237 : vector<1x256xi1> to vector<2x256xi1>
    %239 = vector.broadcast %cst_99 : f32 to vector<2x256xf32>
    %240 = arith.select %238, %236, %239 : vector<2x256xi1>, vector<2x256xf32>
    %241 = tpu.concatenate %205, %210, %215, %220, %198, %225, %230, %235, %240 in 0 : vector<2x256xf32>, vector<2x256xf32>, vector<2x256xf32>, vector<2x256xf32>, vector<2x256xf32>, vector<2x256xf32>, vector<2x256xf32>, vector<2x256xf32>, vector<2x256xf32> -> vector<18x256xf32>
    %cst_100 = arith.constant dense<0.000000e+00> : vector<2x256xf32>
    %242 = tpu.matmul %199, %241, %cst_100 {dimension_numbers = #tpu.dot_dimension_numbers<[1], [0], [0], [1], [0, 0, 1, 1], [], []>} : vector<2x18xf32>, vector<18x256xf32>, vector<2x256xf32> -> vector<2x256xf32>
    %243 = vector.broadcast %200 : vector<2x1xf32> to vector<2x256xf32>
    %244 = arith.addf %242, %243 : vector<2x256xf32>
    %c0_101 = arith.constant 0 : index
    %c0_102 = arith.constant 0 : index
    %245 = vector.load %arg14[%c0_101, %c0_102] : memref<2x18xf32, #tpu.memory_space<vmem>>, vector<2x18xf32>
    %c0_103 = arith.constant 0 : index
    %c0_104 = arith.constant 0 : index
    %246 = vector.load %arg15[%c0_103, %c0_104] : memref<2x1xf32, #tpu.memory_space<vmem>>, vector<2x1xf32>
    %c17_i32_105 = arith.constant 17 : i32
    %247 = tpu.dynamic_rotate %244 by %c17_i32_105 dim 1 : vector<2x256xf32>, i32 -> vector<2x256xf32>
    %cst_106 = arith.constant 0.000000e+00 : f32
    %248 = vector.shape_cast %7 : vector<1x256xi1> to vector<1x256xi1>
    %249 = vector.broadcast %248 : vector<1x256xi1> to vector<2x256xi1>
    %250 = vector.broadcast %cst_106 : f32 to vector<2x256xf32>
    %251 = arith.select %249, %247, %250 : vector<2x256xi1>, vector<2x256xf32>
    %c16_i32_107 = arith.constant 16 : i32
    %252 = tpu.dynamic_rotate %244 by %c16_i32_107 dim 1 : vector<2x256xf32>, i32 -> vector<2x256xf32>
    %cst_108 = arith.constant 0.000000e+00 : f32
    %253 = vector.shape_cast %9 : vector<1x256xi1> to vector<1x256xi1>
    %254 = vector.broadcast %253 : vector<1x256xi1> to vector<2x256xi1>
    %255 = vector.broadcast %cst_108 : f32 to vector<2x256xf32>
    %256 = arith.select %254, %252, %255 : vector<2x256xi1>, vector<2x256xf32>
    %c15_i32_109 = arith.constant 15 : i32
    %257 = tpu.dynamic_rotate %244 by %c15_i32_109 dim 1 : vector<2x256xf32>, i32 -> vector<2x256xf32>
    %cst_110 = arith.constant 0.000000e+00 : f32
    %258 = vector.shape_cast %14 : vector<1x256xi1> to vector<1x256xi1>
    %259 = vector.broadcast %258 : vector<1x256xi1> to vector<2x256xi1>
    %260 = vector.broadcast %cst_110 : f32 to vector<2x256xf32>
    %261 = arith.select %259, %257, %260 : vector<2x256xi1>, vector<2x256xf32>
    %c1_i32_111 = arith.constant 1 : i32
    %262 = tpu.dynamic_rotate %244 by %c1_i32_111 dim 1 : vector<2x256xf32>, i32 -> vector<2x256xf32>
    %cst_112 = arith.constant 0.000000e+00 : f32
    %263 = vector.shape_cast %16 : vector<1x256xi1> to vector<1x256xi1>
    %264 = vector.broadcast %263 : vector<1x256xi1> to vector<2x256xi1>
    %265 = vector.broadcast %cst_112 : f32 to vector<2x256xf32>
    %266 = arith.select %264, %262, %265 : vector<2x256xi1>, vector<2x256xf32>
    %c255_i32_113 = arith.constant 255 : i32
    %267 = tpu.dynamic_rotate %244 by %c255_i32_113 dim 1 : vector<2x256xf32>, i32 -> vector<2x256xf32>
    %cst_114 = arith.constant 0.000000e+00 : f32
    %268 = vector.shape_cast %18 : vector<1x256xi1> to vector<1x256xi1>
    %269 = vector.broadcast %268 : vector<1x256xi1> to vector<2x256xi1>
    %270 = vector.broadcast %cst_114 : f32 to vector<2x256xf32>
    %271 = arith.select %269, %267, %270 : vector<2x256xi1>, vector<2x256xf32>
    %c241_i32_115 = arith.constant 241 : i32
    %272 = tpu.dynamic_rotate %244 by %c241_i32_115 dim 1 : vector<2x256xf32>, i32 -> vector<2x256xf32>
    %cst_116 = arith.constant 0.000000e+00 : f32
    %273 = vector.shape_cast %23 : vector<1x256xi1> to vector<1x256xi1>
    %274 = vector.broadcast %273 : vector<1x256xi1> to vector<2x256xi1>
    %275 = vector.broadcast %cst_116 : f32 to vector<2x256xf32>
    %276 = arith.select %274, %272, %275 : vector<2x256xi1>, vector<2x256xf32>
    %c240_i32_117 = arith.constant 240 : i32
    %277 = tpu.dynamic_rotate %244 by %c240_i32_117 dim 1 : vector<2x256xf32>, i32 -> vector<2x256xf32>
    %cst_118 = arith.constant 0.000000e+00 : f32
    %278 = vector.shape_cast %25 : vector<1x256xi1> to vector<1x256xi1>
    %279 = vector.broadcast %278 : vector<1x256xi1> to vector<2x256xi1>
    %280 = vector.broadcast %cst_118 : f32 to vector<2x256xf32>
    %281 = arith.select %279, %277, %280 : vector<2x256xi1>, vector<2x256xf32>
    %c239_i32_119 = arith.constant 239 : i32
    %282 = tpu.dynamic_rotate %244 by %c239_i32_119 dim 1 : vector<2x256xf32>, i32 -> vector<2x256xf32>
    %cst_120 = arith.constant 0.000000e+00 : f32
    %283 = vector.shape_cast %30 : vector<1x256xi1> to vector<1x256xi1>
    %284 = vector.broadcast %283 : vector<1x256xi1> to vector<2x256xi1>
    %285 = vector.broadcast %cst_120 : f32 to vector<2x256xf32>
    %286 = arith.select %284, %282, %285 : vector<2x256xi1>, vector<2x256xf32>
    %287 = tpu.concatenate %251, %256, %261, %266, %244, %271, %276, %281, %286 in 0 : vector<2x256xf32>, vector<2x256xf32>, vector<2x256xf32>, vector<2x256xf32>, vector<2x256xf32>, vector<2x256xf32>, vector<2x256xf32>, vector<2x256xf32>, vector<2x256xf32> -> vector<18x256xf32>
    %cst_121 = arith.constant dense<0.000000e+00> : vector<2x256xf32>
    %288 = tpu.matmul %245, %287, %cst_121 {dimension_numbers = #tpu.dot_dimension_numbers<[1], [0], [0], [1], [0, 0, 1, 1], [], []>} : vector<2x18xf32>, vector<18x256xf32>, vector<2x256xf32> -> vector<2x256xf32>
    %289 = vector.broadcast %246 : vector<2x1xf32> to vector<2x256xf32>
    %290 = arith.addf %288, %289 : vector<2x256xf32>
    %c0_122 = arith.constant 0 : index
    %c0_123 = arith.constant 0 : index
    %291 = vector.load %arg16[%c0_122, %c0_123] : memref<2x1xf32, #tpu.memory_space<vmem>>, vector<2x1xf32>
    %c0_124 = arith.constant 0 : index
    %c0_125 = arith.constant 0 : index
    %292 = vector.load %arg17[%c0_124, %c0_125] : memref<2x1xf32, #tpu.memory_space<vmem>>, vector<2x1xf32>
    %cst_126 = arith.constant dense<0.000000e+00> : vector<2xf32>
    %293 = vector.multi_reduction <add>, %290, %cst_126 [1] : vector<2x256xf32> to vector<2xf32>
    %294 = vector.shape_cast %293 : vector<2xf32> to vector<2x1xf32>
    %cst_127 = arith.constant dense<0.000000e+00> : vector<1xf32>
    %295 = vector.multi_reduction <add>, %294, %cst_127 [0] : vector<2x1xf32> to vector<1xf32>
    %296 = vector.shape_cast %295 : vector<1xf32> to vector<1x1xf32>
    %cst_128 = arith.constant 0.001953125 : f32
    %297 = vector.broadcast %cst_128 : f32 to vector<1x1xf32>
    %298 = arith.mulf %296, %297 : vector<1x1xf32>
    %299 = vector.broadcast %298 : vector<1x1xf32> to vector<2x256xf32>
    %300 = arith.subf %290, %299 : vector<2x256xf32>
    %301 = arith.mulf %300, %300 : vector<2x256xf32>
    %cst_129 = arith.constant dense<0.000000e+00> : vector<2xf32>
    %302 = vector.multi_reduction <add>, %301, %cst_129 [1] : vector<2x256xf32> to vector<2xf32>
    %303 = vector.shape_cast %302 : vector<2xf32> to vector<2x1xf32>
    %cst_130 = arith.constant dense<0.000000e+00> : vector<1xf32>
    %304 = vector.multi_reduction <add>, %303, %cst_130 [0] : vector<2x1xf32> to vector<1xf32>
    %305 = vector.shape_cast %304 : vector<1xf32> to vector<1x1xf32>
    %cst_131 = arith.constant 0.001953125 : f32
    %306 = vector.broadcast %cst_131 : f32 to vector<1x1xf32>
    %307 = arith.mulf %305, %306 : vector<1x1xf32>
    %cst_132 = arith.constant 9.99999997E-7 : f32
    %308 = vector.broadcast %cst_132 : f32 to vector<1x1xf32>
    %309 = arith.addf %307, %308 : vector<1x1xf32>
    %310 = math.rsqrt %309 : vector<1x1xf32>
    %311 = vector.broadcast %310 : vector<1x1xf32> to vector<2x256xf32>
    %312 = arith.mulf %300, %311 : vector<2x256xf32>
    %313 = vector.broadcast %291 : vector<2x1xf32> to vector<2x256xf32>
    %314 = arith.mulf %312, %313 : vector<2x256xf32>
    %315 = vector.broadcast %292 : vector<2x1xf32> to vector<2x256xf32>
    %316 = arith.addf %314, %315 : vector<2x256xf32>
    %cst_133 = arith.constant 0.000000e+00 : f32
    %317 = vector.broadcast %cst_133 : f32 to vector<2x256xf32>
    %318 = arith.subf %317, %316 : vector<2x256xf32>
    %319 = math.exp %318 : vector<2x256xf32>
    %cst_134 = arith.constant 1.000000e+00 : f32
    %320 = vector.broadcast %cst_134 : f32 to vector<2x256xf32>
    %321 = arith.addf %320, %319 : vector<2x256xf32>
    %cst_135 = arith.constant 1.000000e+00 : f32
    %322 = vector.broadcast %cst_135 : f32 to vector<2x256xf32>
    %323 = arith.divf %322, %321 : vector<2x256xf32>
    %324 = arith.mulf %316, %323 : vector<2x256xf32>
    %c0_136 = arith.constant 0 : index
    %c0_137 = arith.constant 0 : index
    %325 = vector.load %arg18[%c0_136, %c0_137] : memref<32x18xf32, #tpu.memory_space<vmem>>, vector<32x18xf32>
    %c0_138 = arith.constant 0 : index
    %c0_139 = arith.constant 0 : index
    %326 = vector.load %arg19[%c0_138, %c0_139] : memref<32x1xf32, #tpu.memory_space<vmem>>, vector<32x1xf32>
    %c17_i32_140 = arith.constant 17 : i32
    %327 = tpu.dynamic_rotate %324 by %c17_i32_140 dim 1 : vector<2x256xf32>, i32 -> vector<2x256xf32>
    %cst_141 = arith.constant 0.000000e+00 : f32
    %328 = vector.shape_cast %7 : vector<1x256xi1> to vector<1x256xi1>
    %329 = vector.broadcast %328 : vector<1x256xi1> to vector<2x256xi1>
    %330 = vector.broadcast %cst_141 : f32 to vector<2x256xf32>
    %331 = arith.select %329, %327, %330 : vector<2x256xi1>, vector<2x256xf32>
    %c16_i32_142 = arith.constant 16 : i32
    %332 = tpu.dynamic_rotate %324 by %c16_i32_142 dim 1 : vector<2x256xf32>, i32 -> vector<2x256xf32>
    %cst_143 = arith.constant 0.000000e+00 : f32
    %333 = vector.shape_cast %9 : vector<1x256xi1> to vector<1x256xi1>
    %334 = vector.broadcast %333 : vector<1x256xi1> to vector<2x256xi1>
    %335 = vector.broadcast %cst_143 : f32 to vector<2x256xf32>
    %336 = arith.select %334, %332, %335 : vector<2x256xi1>, vector<2x256xf32>
    %c15_i32_144 = arith.constant 15 : i32
    %337 = tpu.dynamic_rotate %324 by %c15_i32_144 dim 1 : vector<2x256xf32>, i32 -> vector<2x256xf32>
    %cst_145 = arith.constant 0.000000e+00 : f32
    %338 = vector.shape_cast %14 : vector<1x256xi1> to vector<1x256xi1>
    %339 = vector.broadcast %338 : vector<1x256xi1> to vector<2x256xi1>
    %340 = vector.broadcast %cst_145 : f32 to vector<2x256xf32>
    %341 = arith.select %339, %337, %340 : vector<2x256xi1>, vector<2x256xf32>
    %c1_i32_146 = arith.constant 1 : i32
    %342 = tpu.dynamic_rotate %324 by %c1_i32_146 dim 1 : vector<2x256xf32>, i32 -> vector<2x256xf32>
    %cst_147 = arith.constant 0.000000e+00 : f32
    %343 = vector.shape_cast %16 : vector<1x256xi1> to vector<1x256xi1>
    %344 = vector.broadcast %343 : vector<1x256xi1> to vector<2x256xi1>
    %345 = vector.broadcast %cst_147 : f32 to vector<2x256xf32>
    %346 = arith.select %344, %342, %345 : vector<2x256xi1>, vector<2x256xf32>
    %c255_i32_148 = arith.constant 255 : i32
    %347 = tpu.dynamic_rotate %324 by %c255_i32_148 dim 1 : vector<2x256xf32>, i32 -> vector<2x256xf32>
    %cst_149 = arith.constant 0.000000e+00 : f32
    %348 = vector.shape_cast %18 : vector<1x256xi1> to vector<1x256xi1>
    %349 = vector.broadcast %348 : vector<1x256xi1> to vector<2x256xi1>
    %350 = vector.broadcast %cst_149 : f32 to vector<2x256xf32>
    %351 = arith.select %349, %347, %350 : vector<2x256xi1>, vector<2x256xf32>
    %c241_i32_150 = arith.constant 241 : i32
    %352 = tpu.dynamic_rotate %324 by %c241_i32_150 dim 1 : vector<2x256xf32>, i32 -> vector<2x256xf32>
    %cst_151 = arith.constant 0.000000e+00 : f32
    %353 = vector.shape_cast %23 : vector<1x256xi1> to vector<1x256xi1>
    %354 = vector.broadcast %353 : vector<1x256xi1> to vector<2x256xi1>
    %355 = vector.broadcast %cst_151 : f32 to vector<2x256xf32>
    %356 = arith.select %354, %352, %355 : vector<2x256xi1>, vector<2x256xf32>
    %c240_i32_152 = arith.constant 240 : i32
    %357 = tpu.dynamic_rotate %324 by %c240_i32_152 dim 1 : vector<2x256xf32>, i32 -> vector<2x256xf32>
    %cst_153 = arith.constant 0.000000e+00 : f32
    %358 = vector.shape_cast %25 : vector<1x256xi1> to vector<1x256xi1>
    %359 = vector.broadcast %358 : vector<1x256xi1> to vector<2x256xi1>
    %360 = vector.broadcast %cst_153 : f32 to vector<2x256xf32>
    %361 = arith.select %359, %357, %360 : vector<2x256xi1>, vector<2x256xf32>
    %c239_i32_154 = arith.constant 239 : i32
    %362 = tpu.dynamic_rotate %324 by %c239_i32_154 dim 1 : vector<2x256xf32>, i32 -> vector<2x256xf32>
    %cst_155 = arith.constant 0.000000e+00 : f32
    %363 = vector.shape_cast %30 : vector<1x256xi1> to vector<1x256xi1>
    %364 = vector.broadcast %363 : vector<1x256xi1> to vector<2x256xi1>
    %365 = vector.broadcast %cst_155 : f32 to vector<2x256xf32>
    %366 = arith.select %364, %362, %365 : vector<2x256xi1>, vector<2x256xf32>
    %367 = tpu.concatenate %331, %336, %341, %346, %324, %351, %356, %361, %366 in 0 : vector<2x256xf32>, vector<2x256xf32>, vector<2x256xf32>, vector<2x256xf32>, vector<2x256xf32>, vector<2x256xf32>, vector<2x256xf32>, vector<2x256xf32>, vector<2x256xf32> -> vector<18x256xf32>
    %cst_156 = arith.constant dense<0.000000e+00> : vector<32x256xf32>
    %368 = tpu.matmul %325, %367, %cst_156 {dimension_numbers = #tpu.dot_dimension_numbers<[1], [0], [0], [1], [0, 0, 1, 1], [], []>} : vector<32x18xf32>, vector<18x256xf32>, vector<32x256xf32> -> vector<32x256xf32>
    %369 = vector.broadcast %326 : vector<32x1xf32> to vector<32x256xf32>
    %370 = arith.addf %368, %369 : vector<32x256xf32>
    %c0_157 = arith.constant 0 : index
    %c0_158 = arith.constant 0 : index
    %371 = vector.load %arg20[%c0_157, %c0_158] : memref<32x1xf32, #tpu.memory_space<vmem>>, vector<32x1xf32>
    %c0_159 = arith.constant 0 : index
    %c0_160 = arith.constant 0 : index
    %372 = vector.load %arg21[%c0_159, %c0_160] : memref<32x1xf32, #tpu.memory_space<vmem>>, vector<32x1xf32>
    %cst_161 = arith.constant dense<0.000000e+00> : vector<32xf32>
    %373 = vector.multi_reduction <add>, %370, %cst_161 [1] : vector<32x256xf32> to vector<32xf32>
    %374 = vector.shape_cast %373 : vector<32xf32> to vector<32x1xf32>
    %cst_162 = arith.constant dense<0.000000e+00> : vector<1xf32>
    %375 = vector.multi_reduction <add>, %374, %cst_162 [0] : vector<32x1xf32> to vector<1xf32>
    %376 = vector.shape_cast %375 : vector<1xf32> to vector<1x1xf32>
    %cst_163 = arith.constant 1.22070313E-4 : f32
    %377 = vector.broadcast %cst_163 : f32 to vector<1x1xf32>
    %378 = arith.mulf %376, %377 : vector<1x1xf32>
    %379 = vector.broadcast %378 : vector<1x1xf32> to vector<32x256xf32>
    %380 = arith.subf %370, %379 : vector<32x256xf32>
    %381 = arith.mulf %380, %380 : vector<32x256xf32>
    %cst_164 = arith.constant dense<0.000000e+00> : vector<32xf32>
    %382 = vector.multi_reduction <add>, %381, %cst_164 [1] : vector<32x256xf32> to vector<32xf32>
    %383 = vector.shape_cast %382 : vector<32xf32> to vector<32x1xf32>
    %cst_165 = arith.constant dense<0.000000e+00> : vector<1xf32>
    %384 = vector.multi_reduction <add>, %383, %cst_165 [0] : vector<32x1xf32> to vector<1xf32>
    %385 = vector.shape_cast %384 : vector<1xf32> to vector<1x1xf32>
    %cst_166 = arith.constant 1.22070313E-4 : f32
    %386 = vector.broadcast %cst_166 : f32 to vector<1x1xf32>
    %387 = arith.mulf %385, %386 : vector<1x1xf32>
    %cst_167 = arith.constant 9.99999997E-7 : f32
    %388 = vector.broadcast %cst_167 : f32 to vector<1x1xf32>
    %389 = arith.addf %387, %388 : vector<1x1xf32>
    %390 = math.rsqrt %389 : vector<1x1xf32>
    %391 = vector.broadcast %390 : vector<1x1xf32> to vector<32x256xf32>
    %392 = arith.mulf %380, %391 : vector<32x256xf32>
    %393 = vector.broadcast %371 : vector<32x1xf32> to vector<32x256xf32>
    %394 = arith.mulf %392, %393 : vector<32x256xf32>
    %395 = vector.broadcast %372 : vector<32x1xf32> to vector<32x256xf32>
    %396 = arith.addf %394, %395 : vector<32x256xf32>
    %cst_168 = arith.constant 0.000000e+00 : f32
    %397 = vector.broadcast %cst_168 : f32 to vector<32x256xf32>
    %398 = arith.subf %397, %396 : vector<32x256xf32>
    %399 = math.exp %398 : vector<32x256xf32>
    %cst_169 = arith.constant 1.000000e+00 : f32
    %400 = vector.broadcast %cst_169 : f32 to vector<32x256xf32>
    %401 = arith.addf %400, %399 : vector<32x256xf32>
    %cst_170 = arith.constant 1.000000e+00 : f32
    %402 = vector.broadcast %cst_170 : f32 to vector<32x256xf32>
    %403 = arith.divf %402, %401 : vector<32x256xf32>
    %404 = arith.mulf %396, %403 : vector<32x256xf32>
    %c0_171 = arith.constant 0 : index
    %c0_172 = arith.constant 0 : index
    %405 = vector.load %arg22[%c0_171, %c0_172] : memref<32x288xf32, #tpu.memory_space<vmem>>, vector<32x288xf32>
    %c0_173 = arith.constant 0 : index
    %c0_174 = arith.constant 0 : index
    %406 = vector.load %arg23[%c0_173, %c0_174] : memref<32x1xf32, #tpu.memory_space<vmem>>, vector<32x1xf32>
    %c17_i32_175 = arith.constant 17 : i32
    %407 = tpu.dynamic_rotate %404 by %c17_i32_175 dim 1 : vector<32x256xf32>, i32 -> vector<32x256xf32>
    %cst_176 = arith.constant 0.000000e+00 : f32
    %408 = vector.shape_cast %7 : vector<1x256xi1> to vector<1x256xi1>
    %409 = vector.broadcast %408 : vector<1x256xi1> to vector<32x256xi1>
    %410 = vector.broadcast %cst_176 : f32 to vector<32x256xf32>
    %411 = arith.select %409, %407, %410 : vector<32x256xi1>, vector<32x256xf32>
    %c16_i32_177 = arith.constant 16 : i32
    %412 = tpu.dynamic_rotate %404 by %c16_i32_177 dim 1 : vector<32x256xf32>, i32 -> vector<32x256xf32>
    %cst_178 = arith.constant 0.000000e+00 : f32
    %413 = vector.shape_cast %9 : vector<1x256xi1> to vector<1x256xi1>
    %414 = vector.broadcast %413 : vector<1x256xi1> to vector<32x256xi1>
    %415 = vector.broadcast %cst_178 : f32 to vector<32x256xf32>
    %416 = arith.select %414, %412, %415 : vector<32x256xi1>, vector<32x256xf32>
    %c15_i32_179 = arith.constant 15 : i32
    %417 = tpu.dynamic_rotate %404 by %c15_i32_179 dim 1 : vector<32x256xf32>, i32 -> vector<32x256xf32>
    %cst_180 = arith.constant 0.000000e+00 : f32
    %418 = vector.shape_cast %14 : vector<1x256xi1> to vector<1x256xi1>
    %419 = vector.broadcast %418 : vector<1x256xi1> to vector<32x256xi1>
    %420 = vector.broadcast %cst_180 : f32 to vector<32x256xf32>
    %421 = arith.select %419, %417, %420 : vector<32x256xi1>, vector<32x256xf32>
    %c1_i32_181 = arith.constant 1 : i32
    %422 = tpu.dynamic_rotate %404 by %c1_i32_181 dim 1 : vector<32x256xf32>, i32 -> vector<32x256xf32>
    %cst_182 = arith.constant 0.000000e+00 : f32
    %423 = vector.shape_cast %16 : vector<1x256xi1> to vector<1x256xi1>
    %424 = vector.broadcast %423 : vector<1x256xi1> to vector<32x256xi1>
    %425 = vector.broadcast %cst_182 : f32 to vector<32x256xf32>
    %426 = arith.select %424, %422, %425 : vector<32x256xi1>, vector<32x256xf32>
    %c255_i32_183 = arith.constant 255 : i32
    %427 = tpu.dynamic_rotate %404 by %c255_i32_183 dim 1 : vector<32x256xf32>, i32 -> vector<32x256xf32>
    %cst_184 = arith.constant 0.000000e+00 : f32
    %428 = vector.shape_cast %18 : vector<1x256xi1> to vector<1x256xi1>
    %429 = vector.broadcast %428 : vector<1x256xi1> to vector<32x256xi1>
    %430 = vector.broadcast %cst_184 : f32 to vector<32x256xf32>
    %431 = arith.select %429, %427, %430 : vector<32x256xi1>, vector<32x256xf32>
    %c241_i32_185 = arith.constant 241 : i32
    %432 = tpu.dynamic_rotate %404 by %c241_i32_185 dim 1 : vector<32x256xf32>, i32 -> vector<32x256xf32>
    %cst_186 = arith.constant 0.000000e+00 : f32
    %433 = vector.shape_cast %23 : vector<1x256xi1> to vector<1x256xi1>
    %434 = vector.broadcast %433 : vector<1x256xi1> to vector<32x256xi1>
    %435 = vector.broadcast %cst_186 : f32 to vector<32x256xf32>
    %436 = arith.select %434, %432, %435 : vector<32x256xi1>, vector<32x256xf32>
    %c240_i32_187 = arith.constant 240 : i32
    %437 = tpu.dynamic_rotate %404 by %c240_i32_187 dim 1 : vector<32x256xf32>, i32 -> vector<32x256xf32>
    %cst_188 = arith.constant 0.000000e+00 : f32
    %438 = vector.shape_cast %25 : vector<1x256xi1> to vector<1x256xi1>
    %439 = vector.broadcast %438 : vector<1x256xi1> to vector<32x256xi1>
    %440 = vector.broadcast %cst_188 : f32 to vector<32x256xf32>
    %441 = arith.select %439, %437, %440 : vector<32x256xi1>, vector<32x256xf32>
    %c239_i32_189 = arith.constant 239 : i32
    %442 = tpu.dynamic_rotate %404 by %c239_i32_189 dim 1 : vector<32x256xf32>, i32 -> vector<32x256xf32>
    %cst_190 = arith.constant 0.000000e+00 : f32
    %443 = vector.shape_cast %30 : vector<1x256xi1> to vector<1x256xi1>
    %444 = vector.broadcast %443 : vector<1x256xi1> to vector<32x256xi1>
    %445 = vector.broadcast %cst_190 : f32 to vector<32x256xf32>
    %446 = arith.select %444, %442, %445 : vector<32x256xi1>, vector<32x256xf32>
    %447 = tpu.concatenate %411, %416, %421, %426, %404, %431, %436, %441, %446 in 0 : vector<32x256xf32>, vector<32x256xf32>, vector<32x256xf32>, vector<32x256xf32>, vector<32x256xf32>, vector<32x256xf32>, vector<32x256xf32>, vector<32x256xf32>, vector<32x256xf32> -> vector<288x256xf32>
    %cst_191 = arith.constant dense<0.000000e+00> : vector<32x256xf32>
    %448 = tpu.matmul %405, %447, %cst_191 {dimension_numbers = #tpu.dot_dimension_numbers<[1], [0], [0], [1], [0, 0, 1, 1], [], []>} : vector<32x288xf32>, vector<288x256xf32>, vector<32x256xf32> -> vector<32x256xf32>
    %449 = vector.broadcast %406 : vector<32x1xf32> to vector<32x256xf32>
    %450 = arith.addf %448, %449 : vector<32x256xf32>
    %c0_192 = arith.constant 0 : index
    %c0_193 = arith.constant 0 : index
    %451 = vector.load %arg24[%c0_192, %c0_193] : memref<32x2xf32, #tpu.memory_space<vmem>>, vector<32x2xf32>
    %cst_194 = arith.constant dense<0.000000e+00> : vector<32x256xf32>
    %452 = tpu.matmul %451, %290, %cst_194 {dimension_numbers = #tpu.dot_dimension_numbers<[1], [0], [0], [1], [0, 0, 1, 1], [], []>} : vector<32x2xf32>, vector<2x256xf32>, vector<32x256xf32> -> vector<32x256xf32>
    %c0_195 = arith.constant 0 : index
    %c0_196 = arith.constant 0 : index
    %453 = vector.load %arg25[%c0_195, %c0_196] : memref<32x1xf32, #tpu.memory_space<vmem>>, vector<32x1xf32>
    %454 = vector.broadcast %453 : vector<32x1xf32> to vector<32x256xf32>
    %455 = arith.addf %452, %454 : vector<32x256xf32>
    %456 = arith.addf %455, %450 : vector<32x256xf32>
    %c0_197 = arith.constant 0 : index
    %c0_198 = arith.constant 0 : index
    %457 = vector.load %arg26[%c0_197, %c0_198] : memref<32x288xf32, #tpu.memory_space<vmem>>, vector<32x288xf32>
    %c0_199 = arith.constant 0 : index
    %c0_200 = arith.constant 0 : index
    %458 = vector.load %arg27[%c0_199, %c0_200] : memref<32x1xf32, #tpu.memory_space<vmem>>, vector<32x1xf32>
    %c17_i32_201 = arith.constant 17 : i32
    %459 = tpu.dynamic_rotate %456 by %c17_i32_201 dim 1 : vector<32x256xf32>, i32 -> vector<32x256xf32>
    %cst_202 = arith.constant 0.000000e+00 : f32
    %460 = vector.shape_cast %7 : vector<1x256xi1> to vector<1x256xi1>
    %461 = vector.broadcast %460 : vector<1x256xi1> to vector<32x256xi1>
    %462 = vector.broadcast %cst_202 : f32 to vector<32x256xf32>
    %463 = arith.select %461, %459, %462 : vector<32x256xi1>, vector<32x256xf32>
    %c16_i32_203 = arith.constant 16 : i32
    %464 = tpu.dynamic_rotate %456 by %c16_i32_203 dim 1 : vector<32x256xf32>, i32 -> vector<32x256xf32>
    %cst_204 = arith.constant 0.000000e+00 : f32
    %465 = vector.shape_cast %9 : vector<1x256xi1> to vector<1x256xi1>
    %466 = vector.broadcast %465 : vector<1x256xi1> to vector<32x256xi1>
    %467 = vector.broadcast %cst_204 : f32 to vector<32x256xf32>
    %468 = arith.select %466, %464, %467 : vector<32x256xi1>, vector<32x256xf32>
    %c15_i32_205 = arith.constant 15 : i32
    %469 = tpu.dynamic_rotate %456 by %c15_i32_205 dim 1 : vector<32x256xf32>, i32 -> vector<32x256xf32>
    %cst_206 = arith.constant 0.000000e+00 : f32
    %470 = vector.shape_cast %14 : vector<1x256xi1> to vector<1x256xi1>
    %471 = vector.broadcast %470 : vector<1x256xi1> to vector<32x256xi1>
    %472 = vector.broadcast %cst_206 : f32 to vector<32x256xf32>
    %473 = arith.select %471, %469, %472 : vector<32x256xi1>, vector<32x256xf32>
    %c1_i32_207 = arith.constant 1 : i32
    %474 = tpu.dynamic_rotate %456 by %c1_i32_207 dim 1 : vector<32x256xf32>, i32 -> vector<32x256xf32>
    %cst_208 = arith.constant 0.000000e+00 : f32
    %475 = vector.shape_cast %16 : vector<1x256xi1> to vector<1x256xi1>
    %476 = vector.broadcast %475 : vector<1x256xi1> to vector<32x256xi1>
    %477 = vector.broadcast %cst_208 : f32 to vector<32x256xf32>
    %478 = arith.select %476, %474, %477 : vector<32x256xi1>, vector<32x256xf32>
    %c255_i32_209 = arith.constant 255 : i32
    %479 = tpu.dynamic_rotate %456 by %c255_i32_209 dim 1 : vector<32x256xf32>, i32 -> vector<32x256xf32>
    %cst_210 = arith.constant 0.000000e+00 : f32
    %480 = vector.shape_cast %18 : vector<1x256xi1> to vector<1x256xi1>
    %481 = vector.broadcast %480 : vector<1x256xi1> to vector<32x256xi1>
    %482 = vector.broadcast %cst_210 : f32 to vector<32x256xf32>
    %483 = arith.select %481, %479, %482 : vector<32x256xi1>, vector<32x256xf32>
    %c241_i32_211 = arith.constant 241 : i32
    %484 = tpu.dynamic_rotate %456 by %c241_i32_211 dim 1 : vector<32x256xf32>, i32 -> vector<32x256xf32>
    %cst_212 = arith.constant 0.000000e+00 : f32
    %485 = vector.shape_cast %23 : vector<1x256xi1> to vector<1x256xi1>
    %486 = vector.broadcast %485 : vector<1x256xi1> to vector<32x256xi1>
    %487 = vector.broadcast %cst_212 : f32 to vector<32x256xf32>
    %488 = arith.select %486, %484, %487 : vector<32x256xi1>, vector<32x256xf32>
    %c240_i32_213 = arith.constant 240 : i32
    %489 = tpu.dynamic_rotate %456 by %c240_i32_213 dim 1 : vector<32x256xf32>, i32 -> vector<32x256xf32>
    %cst_214 = arith.constant 0.000000e+00 : f32
    %490 = vector.shape_cast %25 : vector<1x256xi1> to vector<1x256xi1>
    %491 = vector.broadcast %490 : vector<1x256xi1> to vector<32x256xi1>
    %492 = vector.broadcast %cst_214 : f32 to vector<32x256xf32>
    %493 = arith.select %491, %489, %492 : vector<32x256xi1>, vector<32x256xf32>
    %c239_i32_215 = arith.constant 239 : i32
    %494 = tpu.dynamic_rotate %456 by %c239_i32_215 dim 1 : vector<32x256xf32>, i32 -> vector<32x256xf32>
    %cst_216 = arith.constant 0.000000e+00 : f32
    %495 = vector.shape_cast %30 : vector<1x256xi1> to vector<1x256xi1>
    %496 = vector.broadcast %495 : vector<1x256xi1> to vector<32x256xi1>
    %497 = vector.broadcast %cst_216 : f32 to vector<32x256xf32>
    %498 = arith.select %496, %494, %497 : vector<32x256xi1>, vector<32x256xf32>
    %499 = tpu.concatenate %463, %468, %473, %478, %456, %483, %488, %493, %498 in 0 : vector<32x256xf32>, vector<32x256xf32>, vector<32x256xf32>, vector<32x256xf32>, vector<32x256xf32>, vector<32x256xf32>, vector<32x256xf32>, vector<32x256xf32>, vector<32x256xf32> -> vector<288x256xf32>
    %cst_217 = arith.constant dense<0.000000e+00> : vector<32x256xf32>
    %500 = tpu.matmul %457, %499, %cst_217 {dimension_numbers = #tpu.dot_dimension_numbers<[1], [0], [0], [1], [0, 0, 1, 1], [], []>} : vector<32x288xf32>, vector<288x256xf32>, vector<32x256xf32> -> vector<32x256xf32>
    %501 = vector.broadcast %458 : vector<32x1xf32> to vector<32x256xf32>
    %502 = arith.addf %500, %501 : vector<32x256xf32>
    %c0_218 = arith.constant 0 : index
    %c0_219 = arith.constant 0 : index
    %c0_220 = arith.constant 0 : index
    %503 = vector.load %arg28[%c0_218, %c0_219, %c0_220] : memref<1x32x256xf32, #tpu.memory_space<vmem>>, vector<1x32x256xf32>
    %504 = vector.shape_cast %503 : vector<1x32x256xf32> to vector<32x256xf32>
    %505 = vector.shape_cast %502 : vector<32x256xf32> to vector<1x32x256xf32>
    tpu.vector_store %arg28[%c0_218, %c0_219, %c0_220], %505 {strides = array<i32>} : memref<1x32x256xf32, #tpu.memory_space<vmem>>, vector<1x32x256xf32>,
    return
  }
  func.func @transform_0(%arg0: i32) -> (i32, i32, i32) {
    %c0_i32 = arith.constant 0 : i32
    %c0_i32_0 = arith.constant 0 : i32
    %c0_i32_1 = arith.constant 0 : i32
    return %arg0, %c0_i32, %c0_i32_0 : i32, i32, i32
  }
  func.func @transform_1(%arg0: i32) -> (i32, i32) {
    %c0_i32 = arith.constant 0 : i32
    %c0_i32_0 = arith.constant 0 : i32
    %c0_i32_1 = arith.constant 0 : i32
    return %c0_i32, %c0_i32_0 : i32, i32
  }
  func.func @transform_2(%arg0: i32) -> (i32, i32) {
    %c0_i32 = arith.constant 0 : i32
    %c0_i32_0 = arith.constant 0 : i32
    %c0_i32_1 = arith.constant 0 : i32
    return %c0_i32, %c0_i32_0 : i32, i32
  }
  func.func @transform_3(%arg0: i32) -> (i32, i32) {
    %c0_i32 = arith.constant 0 : i32
    %c0_i32_0 = arith.constant 0 : i32
    %c0_i32_1 = arith.constant 0 : i32
    return %c0_i32, %c0_i32_0 : i32, i32
  }
  func.func @transform_4(%arg0: i32) -> (i32, i32) {
    %c0_i32 = arith.constant 0 : i32
    %c0_i32_0 = arith.constant 0 : i32
    %c0_i32_1 = arith.constant 0 : i32
    return %c0_i32, %c0_i32_0 : i32, i32
  }
  func.func @transform_5(%arg0: i32) -> (i32, i32) {
    %c0_i32 = arith.constant 0 : i32
    %c0_i32_0 = arith.constant 0 : i32
    %c0_i32_1 = arith.constant 0 : i32
    return %c0_i32, %c0_i32_0 : i32, i32
  }
  func.func @transform_6(%arg0: i32) -> (i32, i32) {
    %c0_i32 = arith.constant 0 : i32
    %c0_i32_0 = arith.constant 0 : i32
    %c0_i32_1 = arith.constant 0 : i32
    return %c0_i32, %c0_i32_0 : i32, i32
  }
  func.func @transform_7(%arg0: i32) -> (i32, i32) {
    %c0_i32 = arith.constant 0 : i32
    %c0_i32_0 = arith.constant 0 : i32
    %c0_i32_1 = arith.constant 0 : i32
    return %c0_i32, %c0_i32_0 : i32, i32
  }
  func.func @transform_8(%arg0: i32) -> (i32, i32) {
    %c0_i32 = arith.constant 0 : i32
    %c0_i32_0 = arith.constant 0 : i32
    %c0_i32_1 = arith.constant 0 : i32
    return %c0_i32, %c0_i32_0 : i32, i32
  }
  func.func @transform_9(%arg0: i32) -> (i32, i32) {
    %c0_i32 = arith.constant 0 : i32
    %c0_i32_0 = arith.constant 0 : i32
    %c0_i32_1 = arith.constant 0 : i32
    return %c0_i32, %c0_i32_0 : i32, i32
  }
  func.func @transform_10(%arg0: i32) -> (i32, i32) {
    %c0_i32 = arith.constant 0 : i32
    %c0_i32_0 = arith.constant 0 : i32
    %c0_i32_1 = arith.constant 0 : i32
    return %c0_i32, %c0_i32_0 : i32, i32
  }
  func.func @transform_11(%arg0: i32) -> (i32, i32) {
    %c0_i32 = arith.constant 0 : i32
    %c0_i32_0 = arith.constant 0 : i32
    %c0_i32_1 = arith.constant 0 : i32
    return %c0_i32, %c0_i32_0 : i32, i32
  }
  func.func @transform_12(%arg0: i32) -> (i32, i32) {
    %c0_i32 = arith.constant 0 : i32
    %c0_i32_0 = arith.constant 0 : i32
    %c0_i32_1 = arith.constant 0 : i32
    return %c0_i32, %c0_i32_0 : i32, i32
  }
  func.func @transform_13(%arg0: i32) -> (i32, i32) {
    %c0_i32 = arith.constant 0 : i32
    %c0_i32_0 = arith.constant 0 : i32
    %c0_i32_1 = arith.constant 0 : i32
    return %c0_i32, %c0_i32_0 : i32, i32
  }
  func.func @transform_14(%arg0: i32) -> (i32, i32) {
    %c0_i32 = arith.constant 0 : i32
    %c0_i32_0 = arith.constant 0 : i32
    %c0_i32_1 = arith.constant 0 : i32
    return %c0_i32, %c0_i32_0 : i32, i32
  }
  func.func @transform_15(%arg0: i32) -> (i32, i32) {
    %c0_i32 = arith.constant 0 : i32
    %c0_i32_0 = arith.constant 0 : i32
    %c0_i32_1 = arith.constant 0 : i32
    return %c0_i32, %c0_i32_0 : i32, i32
  }
  func.func @transform_16(%arg0: i32) -> (i32, i32) {
    %c0_i32 = arith.constant 0 : i32
    %c0_i32_0 = arith.constant 0 : i32
    %c0_i32_1 = arith.constant 0 : i32
    return %c0_i32, %c0_i32_0 : i32, i32
  }
  func.func @transform_17(%arg0: i32) -> (i32, i32) {
    %c0_i32 = arith.constant 0 : i32
    %c0_i32_0 = arith.constant 0 : i32
    %c0_i32_1 = arith.constant 0 : i32
    return %c0_i32, %c0_i32_0 : i32, i32
  }
  func.func @transform_18(%arg0: i32) -> (i32, i32) {
    %c0_i32 = arith.constant 0 : i32
    %c0_i32_0 = arith.constant 0 : i32
    %c0_i32_1 = arith.constant 0 : i32
    return %c0_i32, %c0_i32_0 : i32, i32
  }
  func.func @transform_19(%arg0: i32) -> (i32, i32) {
    %c0_i32 = arith.constant 0 : i32
    %c0_i32_0 = arith.constant 0 : i32
    %c0_i32_1 = arith.constant 0 : i32
    return %c0_i32, %c0_i32_0 : i32, i32
  }
  func.func @transform_20(%arg0: i32) -> (i32, i32) {
    %c0_i32 = arith.constant 0 : i32
    %c0_i32_0 = arith.constant 0 : i32
    %c0_i32_1 = arith.constant 0 : i32
    return %c0_i32, %c0_i32_0 : i32, i32
  }
  func.func @transform_21(%arg0: i32) -> (i32, i32) {
    %c0_i32 = arith.constant 0 : i32
    %c0_i32_0 = arith.constant 0 : i32
    %c0_i32_1 = arith.constant 0 : i32
    return %c0_i32, %c0_i32_0 : i32, i32
  }
  func.func @transform_22(%arg0: i32) -> (i32, i32) {
    %c0_i32 = arith.constant 0 : i32
    %c0_i32_0 = arith.constant 0 : i32
    %c0_i32_1 = arith.constant 0 : i32
    return %c0_i32, %c0_i32_0 : i32, i32
  }
  func.func @transform_23(%arg0: i32) -> (i32, i32) {
    %c0_i32 = arith.constant 0 : i32
    %c0_i32_0 = arith.constant 0 : i32
    %c0_i32_1 = arith.constant 0 : i32
    return %c0_i32, %c0_i32_0 : i32, i32
  }
  func.func @transform_24(%arg0: i32) -> (i32, i32) {
    %c0_i32 = arith.constant 0 : i32
    %c0_i32_0 = arith.constant 0 : i32
    %c0_i32_1 = arith.constant 0 : i32
    return %c0_i32, %c0_i32_0 : i32, i32
  }
  func.func @transform_25(%arg0: i32) -> (i32, i32) {
    %c0_i32 = arith.constant 0 : i32
    %c0_i32_0 = arith.constant 0 : i32
    %c0_i32_1 = arith.constant 0 : i32
    return %c0_i32, %c0_i32_0 : i32, i32
  }
  func.func @transform_26(%arg0: i32) -> (i32, i32) {
    %c0_i32 = arith.constant 0 : i32
    %c0_i32_0 = arith.constant 0 : i32
    %c0_i32_1 = arith.constant 0 : i32
    return %c0_i32, %c0_i32_0 : i32, i32
  }
  func.func @transform_27(%arg0: i32) -> (i32, i32, i32) {
    %c0_i32 = arith.constant 0 : i32
    %c0_i32_0 = arith.constant 0 : i32
    %c0_i32_1 = arith.constant 0 : i32
    return %arg0, %c0_i32, %c0_i32_0 : i32, i32, i32
  }
}

</mosaic_0001>

<llo_original>
// kernel: simple_conv_forward.1
$region0: #{simple_conv_forward.1}
  #allocation0 [shape = 'u32[]', space=smem, size = 0x4, offset = 0x4, fixed_abs, tag = 'smem constant byte address 0x4 - core index']
  #allocation1 [shape = 'u32[144,128]{1,0:T(1,128)}', space=vmem, size = 0x12000, scoped, tag = 'internal scratch']
  %s0 = inlined_call_operand.vmem [shape: f32[2,32,256], index: 0, kind: input, shape index: {}]
  %s1 = inlined_call_operand.vmem [shape: f32[32,1], index: 1, kind: input, shape index: {}]
  %s2 = inlined_call_operand.vmem [shape: f32[32,1], index: 2, kind: input, shape index: {}]
  %s3 = inlined_call_operand.vmem [shape: f32[2,288], index: 3, kind: input, shape index: {}]
  %s4 = inlined_call_operand.vmem [shape: f32[2,1], index: 4, kind: input, shape index: {}]
  %s5 = inlined_call_operand.vmem [shape: f32[2,1], index: 5, kind: input, shape index: {}]
  %s6 = inlined_call_operand.vmem [shape: f32[2,1], index: 6, kind: input, shape index: {}]
  %s7 = inlined_call_operand.vmem [shape: f32[2,18], index: 7, kind: input, shape index: {}]
  %s8 = inlined_call_operand.vmem [shape: f32[2,1], index: 8, kind: input, shape index: {}]
  %s9 = inlined_call_operand.vmem [shape: f32[2,32], index: 9, kind: input, shape index: {}]
  %s10 = inlined_call_operand.vmem [shape: f32[2,1], index: 10, kind: input, shape index: {}]
  %s11 = inlined_call_operand.vmem [shape: f32[2,18], index: 11, kind: input, shape index: {}]
  %s12 = inlined_call_operand.vmem [shape: f32[2,1], index: 12, kind: input, shape index: {}]
  %s13 = inlined_call_operand.vmem [shape: f32[2,18], index: 13, kind: input, shape index: {}]
  %s14 = inlined_call_operand.vmem [shape: f32[2,1], index: 14, kind: input, shape index: {}]
  %s15 = inlined_call_operand.vmem [shape: f32[2,1], index: 15, kind: input, shape index: {}]
  %s16 = inlined_call_operand.vmem [shape: f32[2,1], index: 16, kind: input, shape index: {}]
  %s17 = inlined_call_operand.vmem [shape: f32[32,18], index: 17, kind: input, shape index: {}]
  %s18 = inlined_call_operand.vmem [shape: f32[32,1], index: 18, kind: input, shape index: {}]
  %s19 = inlined_call_operand.vmem [shape: f32[32,1], index: 19, kind: input, shape index: {}]
  %s20 = inlined_call_operand.vmem [shape: f32[32,1], index: 20, kind: input, shape index: {}]
  %s21 = inlined_call_operand.vmem [shape: f32[32,288], index: 21, kind: input, shape index: {}]
  %s22 = inlined_call_operand.vmem [shape: f32[32,1], index: 22, kind: input, shape index: {}]
  %s23 = inlined_call_operand.vmem [shape: f32[32,2], index: 23, kind: input, shape index: {}]
  %s24 = inlined_call_operand.vmem [shape: f32[32,1], index: 24, kind: input, shape index: {}]
  %s25 = inlined_call_operand.vmem [shape: f32[32,288], index: 25, kind: input, shape index: {}]
  %s26 = inlined_call_operand.vmem [shape: f32[32,1], index: 26, kind: input, shape index: {}]
  %s27 = inlined_call_operand.vmem [shape: f32[2,32,256], index: 27, kind: output, shape index: {}]
  %s28 = sld [smem:[#allocation0]]
  $region141: #{simple_conv_forward.1} parent=0
    _
  %s30 = ssub.s32 1, %s28
  %s31 = scalar_select 0, %s30, %s28
  loop: start=0, step=1, limit=4
  $region2: #{simple_conv_forward.1} parent=0 // loop_pre_header
    _
  $region3: #{simple_conv_forward.1} parent=0 // loop_header
    %s33 = sphi 0, %s37
    %p34 = scmp.ge.s32.totalorder %s33, 4
    %s43 = sphi 0, %s45
    %s46 = sphi 0, %s43
    %s47 = sphi 0, %s46
    %s63 = sphi 0, %s47
    %s67 = sphi 0, %s67
    %s69 = sphi 0, %s67
    %s70 = sphi 0, %s69
    %s84 = sphi 0, %s70
    %s88 = sphi 0, %s88
    %s90 = sphi 0, %s88
    %s91 = sphi 0, %s90
    %s105 = sphi 0, %s91
    %s109 = sphi 0, %s109
    %s111 = sphi 0, %s109
    %s112 = sphi 0, %s111
    %s126 = sphi 0, %s112
    %s130 = sphi 0, %s130
    %s132 = sphi 0, %s130
    %s133 = sphi 0, %s132
    %s147 = sphi 0, %s133
    %s151 = sphi 0, %s151
    %s153 = sphi 0, %s151
    %s154 = sphi 0, %s153
    %s168 = sphi 0, %s154
    %s172 = sphi 0, %s172
    %s174 = sphi 0, %s172
    %s175 = sphi 0, %s174
    %s189 = sphi 0, %s175
    %s193 = sphi 0, %s193
    %s195 = sphi 0, %s193
    %s196 = sphi 0, %s195
    %s210 = sphi 0, %s196
    %s214 = sphi 0, %s214
    %s216 = sphi 0, %s214
    %s217 = sphi 0, %s216
    %s231 = sphi 0, %s217
    %s235 = sphi 0, %s235
    %s237 = sphi 0, %s235
    %s238 = sphi 0, %s237
    %s252 = sphi 0, %s238
    %s256 = sphi 0, %s256
    %s258 = sphi 0, %s256
    %s259 = sphi 0, %s258
    %s273 = sphi 0, %s259
    %s277 = sphi 0, %s277
    %s279 = sphi 0, %s277
    %s280 = sphi 0, %s279
    %s294 = sphi 0, %s280
    %s298 = sphi 0, %s298
    %s300 = sphi 0, %s298
    %s301 = sphi 0, %s300
    %s315 = sphi 0, %s301
    %s319 = sphi 0, %s319
    %s321 = sphi 0, %s319
    %s322 = sphi 0, %s321
    %s336 = sphi 0, %s322
    %s340 = sphi 0, %s340
    %s342 = sphi 0, %s340
    %s343 = sphi 0, %s342
    %s357 = sphi 0, %s343
    %s361 = sphi 0, %s361
    %s363 = sphi 0, %s361
    %s364 = sphi 0, %s363
    %s378 = sphi 0, %s364
    %s382 = sphi 0, %s382
    %s384 = sphi 0, %s382
    %s385 = sphi 0, %s384
    %s399 = sphi 0, %s385
    %s403 = sphi 0, %s403
    %s405 = sphi 0, %s403
    %s406 = sphi 0, %s405
    %s420 = sphi 0, %s406
    %s424 = sphi 0, %s424
    %s426 = sphi 0, %s424
    %s427 = sphi 0, %s426
    %s441 = sphi 0, %s427
    %s445 = sphi 0, %s445
    %s447 = sphi 0, %s445
    %s448 = sphi 0, %s447
    %s462 = sphi 0, %s448
    %s466 = sphi 0, %s466
    %s468 = sphi 0, %s466
    %s469 = sphi 0, %s468
    %s483 = sphi 0, %s469
    %s487 = sphi 0, %s487
    %s489 = sphi 0, %s487
    %s490 = sphi 0, %s489
    %s504 = sphi 0, %s490
    %s508 = sphi 0, %s508
    %s510 = sphi 0, %s508
    %s511 = sphi 0, %s510
    %s525 = sphi 0, %s511
    %s529 = sphi 0, %s529
    %s531 = sphi 0, %s529
    %s532 = sphi 0, %s531
    %s546 = sphi 0, %s532
    %s550 = sphi 0, %s550
    %s552 = sphi 0, %s550
    %s553 = sphi 0, %s552
    %s567 = sphi 0, %s553
    %s571 = sphi 0, %s571
    %s573 = sphi 0, %s571
    %s574 = sphi 0, %s573
    %s588 = sphi 0, %s574
    %s592 = sphi 0, %s592
    %s594 = sphi 0, %s592
    %s595 = sphi 0, %s594
    %s609 = sphi 0, %s595
    %s615 = sphi 0, %s617
    %s618 = sphi 0, %s615
    %s619 = sphi 0, %s618
    %s635 = sphi 0, %s619
  $region4: #{simple_conv_forward.1} parent=0 // loop_header_branch
    %36 = sbr.rel (%p34) target = $region8
  $region5: #{simple_conv_forward.1} parent=0 // loop_body
    %s38 = ssub.s32 %s33, 1
    %s39 = ssub.s32 %s33, 2
    %s40 = sadd.s32 %s33, 1
    %s41 = ssub.s32 %s33, %s40
    %p42 = scmp.eq.s32.totalorder %s41, 0
    %s44 = sadd.s32 %s43, 1
    %s45 = scalar_select %p42, %s43, %s44
    %p48 = pneg %p42
    %p49 = scmp.eq.s32.totalorder %s33, 1
    %p50 = por %p48, %p49
    %p51 = scmp.ne.s32.totalorder %s43, %s46
    %p52 = scmp.eq.s32.totalorder %s33, 0
    %p53 = por %p51, %p52
    %p54 = scmp.ne.s32.totalorder %s43, %s46
    %p55 = scmp.eq.s32.totalorder %s38, 1
    %p56 = por %p54, %p55
    %p57 = scmp.ne.s32.totalorder %s46, %s47
    %p58 = scmp.eq.s32.totalorder %s38, 0
    %p59 = por %p57, %p58
    %p60 = scmp.ne.s32.totalorder %s46, %s47
    %p61 = scmp.eq.s32.totalorder %s39, 1
    %p62 = por %p60, %p61
    %p64 = scmp.ne.s32.totalorder %s47, %s63
    %p65 = scmp.eq.s32.totalorder %s39, 0
    %p66 = por %p64, %p65
    %s68 = sadd.s32 %s67, 1
    %p71 = scmp.eq.s32.totalorder %s33, 1
    %p72 = scmp.ne.s32.totalorder %s67, %s69
    %p73 = scmp.eq.s32.totalorder %s33, 0
    %p74 = por %p72, %p73
    %p75 = scmp.ne.s32.totalorder %s67, %s69
    %p76 = scmp.eq.s32.totalorder %s38, 1
    %p77 = por %p75, %p76
    %p78 = scmp.ne.s32.totalorder %s69, %s70
    %p79 = scmp.eq.s32.totalorder %s38, 0
    %p80 = por %p78, %p79
    %p81 = scmp.ne.s32.totalorder %s69, %s70
    %p82 = scmp.eq.s32.totalorder %s39, 1
    %p83 = por %p81, %p82
    %p85 = scmp.ne.s32.totalorder %s70, %s84
    %p86 = scmp.eq.s32.totalorder %s39, 0
    %p87 = por %p85, %p86
    %s89 = sadd.s32 %s88, 1
    %p92 = scmp.eq.s32.totalorder %s33, 1
    %p93 = scmp.ne.s32.totalorder %s88, %s90
    %p94 = scmp.eq.s32.totalorder %s33, 0
    %p95 = por %p93, %p94
    %p96 = scmp.ne.s32.totalorder %s88, %s90
    %p97 = scmp.eq.s32.totalorder %s38, 1
    %p98 = por %p96, %p97
    %p99 = scmp.ne.s32.totalorder %s90, %s91
    %p100 = scmp.eq.s32.totalorder %s38, 0
    %p101 = por %p99, %p100
    %p102 = scmp.ne.s32.totalorder %s90, %s91
    %p103 = scmp.eq.s32.totalorder %s39, 1
    %p104 = por %p102, %p103
    %p106 = scmp.ne.s32.totalorder %s91, %s105
    %p107 = scmp.eq.s32.totalorder %s39, 0
    %p108 = por %p106, %p107
    %s110 = sadd.s32 %s109, 1
    %p113 = scmp.eq.s32.totalorder %s33, 1
    %p114 = scmp.ne.s32.totalorder %s109, %s111
    %p115 = scmp.eq.s32.totalorder %s33, 0
    %p116 = por %p114, %p115
    %p117 = scmp.ne.s32.totalorder %s109, %s111
    %p118 = scmp.eq.s32.totalorder %s38, 1
    %p119 = por %p117, %p118
    %p120 = scmp.ne.s32.totalorder %s111, %s112
    %p121 = scmp.eq.s32.totalorder %s38, 0
    %p122 = por %p120, %p121
    %p123 = scmp.ne.s32.totalorder %s111, %s112
    %p124 = scmp.eq.s32.totalorder %s39, 1
    %p125 = por %p123, %p124
    %p127 = scmp.ne.s32.totalorder %s112, %s126
    %p128 = scmp.eq.s32.totalorder %s39, 0
    %p129 = por %p127, %p128
    %s131 = sadd.s32 %s130, 1
    %p134 = scmp.eq.s32.totalorder %s33, 1
    %p135 = scmp.ne.s32.totalorder %s130, %s132
    %p136 = scmp.eq.s32.totalorder %s33, 0
    %p137 = por %p135, %p136
    %p138 = scmp.ne.s32.totalorder %s130, %s132
    %p139 = scmp.eq.s32.totalorder %s38, 1
    %p140 = por %p138, %p139
    %p141 = scmp.ne.s32.totalorder %s132, %s133
    %p142 = scmp.eq.s32.totalorder %s38, 0
    %p143 = por %p141, %p142
    %p144 = scmp.ne.s32.totalorder %s132, %s133
    %p145 = scmp.eq.s32.totalorder %s39, 1
    %p146 = por %p144, %p145
    %p148 = scmp.ne.s32.totalorder %s133, %s147
    %p149 = scmp.eq.s32.totalorder %s39, 0
    %p150 = por %p148, %p149
    %s152 = sadd.s32 %s151, 1
    %p155 = scmp.eq.s32.totalorder %s33, 1
    %p156 = scmp.ne.s32.totalorder %s151, %s153
    %p157 = scmp.eq.s32.totalorder %s33, 0
    %p158 = por %p156, %p157
    %p159 = scmp.ne.s32.totalorder %s151, %s153
    %p160 = scmp.eq.s32.totalorder %s38, 1
    %p161 = por %p159, %p160
    %p162 = scmp.ne.s32.totalorder %s153, %s154
    %p163 = scmp.eq.s32.totalorder %s38, 0
    %p164 = por %p162, %p163
    %p165 = scmp.ne.s32.totalorder %s153, %s154
    %p166 = scmp.eq.s32.totalorder %s39, 1
    %p167 = por %p165, %p166
    %p169 = scmp.ne.s32.totalorder %s154, %s168
    %p170 = scmp.eq.s32.totalorder %s39, 0
    %p171 = por %p169, %p170
    %s173 = sadd.s32 %s172, 1
    %p176 = scmp.eq.s32.totalorder %s33, 1
    %p177 = scmp.ne.s32.totalorder %s172, %s174
    %p178 = scmp.eq.s32.totalorder %s33, 0
    %p179 = por %p177, %p178
    %p180 = scmp.ne.s32.totalorder %s172, %s174
    %p181 = scmp.eq.s32.totalorder %s38, 1
    %p182 = por %p180, %p181
    %p183 = scmp.ne.s32.totalorder %s174, %s175
    %p184 = scmp.eq.s32.totalorder %s38, 0
    %p185 = por %p183, %p184
    %p186 = scmp.ne.s32.totalorder %s174, %s175
    %p187 = scmp.eq.s32.totalorder %s39, 1
    %p188 = por %p186, %p187
    %p190 = scmp.ne.s32.totalorder %s175, %s189
    %p191 = scmp.eq.s32.totalorder %s39, 0
    %p192 = por %p190, %p191
    %s194 = sadd.s32 %s193, 1
    %p197 = scmp.eq.s32.totalorder %s33, 1
    %p198 = scmp.ne.s32.totalorder %s193, %s195
    %p199 = scmp.eq.s32.totalorder %s33, 0
    %p200 = por %p198, %p199
    %p201 = scmp.ne.s32.totalorder %s193, %s195
    %p202 = scmp.eq.s32.totalorder %s38, 1
    %p203 = por %p201, %p202
    %p204 = scmp.ne.s32.totalorder %s195, %s196
    %p205 = scmp.eq.s32.totalorder %s38, 0
    %p206 = por %p204, %p205
    %p207 = scmp.ne.s32.totalorder %s195, %s196
    %p208 = scmp.eq.s32.totalorder %s39, 1
    %p209 = por %p207, %p208
    %p211 = scmp.ne.s32.totalorder %s196, %s210
    %p212 = scmp.eq.s32.totalorder %s39, 0
    %p213 = por %p211, %p212
    %s215 = sadd.s32 %s214, 1
    %p218 = scmp.eq.s32.totalorder %s33, 1
    %p219 = scmp.ne.s32.totalorder %s214, %s216
    %p220 = scmp.eq.s32.totalorder %s33, 0
    %p221 = por %p219, %p220
    %p222 = scmp.ne.s32.totalorder %s214, %s216
    %p223 = scmp.eq.s32.totalorder %s38, 1
    %p224 = por %p222, %p223
    %p225 = scmp.ne.s32.totalorder %s216, %s217
    %p226 = scmp.eq.s32.totalorder %s38, 0
    %p227 = por %p225, %p226
    %p228 = scmp.ne.s32.totalorder %s216, %s217
    %p229 = scmp.eq.s32.totalorder %s39, 1
    %p230 = por %p228, %p229
    %p232 = scmp.ne.s32.totalorder %s217, %s231
    %p233 = scmp.eq.s32.totalorder %s39, 0
    %p234 = por %p232, %p233
    %s236 = sadd.s32 %s235, 1
    %p239 = scmp.eq.s32.totalorder %s33, 1
    %p240 = scmp.ne.s32.totalorder %s235, %s237
    %p241 = scmp.eq.s32.totalorder %s33, 0
    %p242 = por %p240, %p241
    %p243 = scmp.ne.s32.totalorder %s235, %s237
    %p244 = scmp.eq.s32.totalorder %s38, 1
    %p245 = por %p243, %p244
    %p246 = scmp.ne.s32.totalorder %s237, %s238
    %p247 = scmp.eq.s32.totalorder %s38, 0
    %p248 = por %p246, %p247
    %p249 = scmp.ne.s32.totalorder %s237, %s238
    %p250 = scmp.eq.s32.totalorder %s39, 1
    %p251 = por %p249, %p250
    %p253 = scmp.ne.s32.totalorder %s238, %s252
    %p254 = scmp.eq.s32.totalorder %s39, 0
    %p255 = por %p253, %p254
    %s257 = sadd.s32 %s256, 1
    %p260 = scmp.eq.s32.totalorder %s33, 1
    %p261 = scmp.ne.s32.totalorder %s256, %s258
    %p262 = scmp.eq.s32.totalorder %s33, 0
    %p263 = por %p261, %p262
    %p264 = scmp.ne.s32.totalorder %s256, %s258
    %p265 = scmp.eq.s32.totalorder %s38, 1
    %p266 = por %p264, %p265
    %p267 = scmp.ne.s32.totalorder %s258, %s259
    %p268 = scmp.eq.s32.totalorder %s38, 0
    %p269 = por %p267, %p268
    %p270 = scmp.ne.s32.totalorder %s258, %s259
    %p271 = scmp.eq.s32.totalorder %s39, 1
    %p272 = por %p270, %p271
    %p274 = scmp.ne.s32.totalorder %s259, %s273
    %p275 = scmp.eq.s32.totalorder %s39, 0
    %p276 = por %p274, %p275
    %s278 = sadd.s32 %s277, 1
    %p281 = scmp.eq.s32.totalorder %s33, 1
    %p282 = scmp.ne.s32.totalorder %s277, %s279
    %p283 = scmp.eq.s32.totalorder %s33, 0
    %p284 = por %p282, %p283
    %p285 = scmp.ne.s32.totalorder %s277, %s279
    %p286 = scmp.eq.s32.totalorder %s38, 1
    %p287 = por %p285, %p286
    %p288 = scmp.ne.s32.totalorder %s279, %s280
    %p289 = scmp.eq.s32.totalorder %s38, 0
    %p290 = por %p288, %p289
    %p291 = scmp.ne.s32.totalorder %s279, %s280
    %p292 = scmp.eq.s32.totalorder %s39, 1
    %p293 = por %p291, %p292
    %p295 = scmp.ne.s32.totalorder %s280, %s294
    %p296 = scmp.eq.s32.totalorder %s39, 0
    %p297 = por %p295, %p296
    %s299 = sadd.s32 %s298, 1
    %p302 = scmp.eq.s32.totalorder %s33, 1
    %p303 = scmp.ne.s32.totalorder %s298, %s300
    %p304 = scmp.eq.s32.totalorder %s33, 0
    %p305 = por %p303, %p304
    %p306 = scmp.ne.s32.totalorder %s298, %s300
    %p307 = scmp.eq.s32.totalorder %s38, 1
    %p308 = por %p306, %p307
    %p309 = scmp.ne.s32.totalorder %s300, %s301
    %p310 = scmp.eq.s32.totalorder %s38, 0
    %p311 = por %p309, %p310
    %p312 = scmp.ne.s32.totalorder %s300, %s301
    %p313 = scmp.eq.s32.totalorder %s39, 1
    %p314 = por %p312, %p313
    %p316 = scmp.ne.s32.totalorder %s301, %s315
    %p317 = scmp.eq.s32.totalorder %s39, 0
    %p318 = por %p316, %p317
    %s320 = sadd.s32 %s319, 1
    %p323 = scmp.eq.s32.totalorder %s33, 1
    %p324 = scmp.ne.s32.totalorder %s319, %s321
    %p325 = scmp.eq.s32.totalorder %s33, 0
    %p326 = por %p324, %p325
    %p327 = scmp.ne.s32.totalorder %s319, %s321
    %p328 = scmp.eq.s32.totalorder %s38, 1
    %p329 = por %p327, %p328
    %p330 = scmp.ne.s32.totalorder %s321, %s322
    %p331 = scmp.eq.s32.totalorder %s38, 0
    %p332 = por %p330, %p331
    %p333 = scmp.ne.s32.totalorder %s321, %s322
    %p334 = scmp.eq.s32.totalorder %s39, 1
    %p335 = por %p333, %p334
    %p337 = scmp.ne.s32.totalorder %s322, %s336
    %p338 = scmp.eq.s32.totalorder %s39, 0
    %p339 = por %p337, %p338
    %s341 = sadd.s32 %s340, 1
    %p344 = scmp.eq.s32.totalorder %s33, 1
    %p345 = scmp.ne.s32.totalorder %s340, %s342
    %p346 = scmp.eq.s32.totalorder %s33, 0
    %p347 = por %p345, %p346
    %p348 = scmp.ne.s32.totalorder %s340, %s342
    %p349 = scmp.eq.s32.totalorder %s38, 1
    %p350 = por %p348, %p349
    %p351 = scmp.ne.s32.totalorder %s342, %s343
    %p352 = scmp.eq.s32.totalorder %s38, 0
    %p353 = por %p351, %p352
    %p354 = scmp.ne.s32.totalorder %s342, %s343
    %p355 = scmp.eq.s32.totalorder %s39, 1
    %p356 = por %p354, %p355
    %p358 = scmp.ne.s32.totalorder %s343, %s357
    %p359 = scmp.eq.s32.totalorder %s39, 0
    %p360 = por %p358, %p359
    %s362 = sadd.s32 %s361, 1
    %p365 = scmp.eq.s32.totalorder %s33, 1
    %p366 = scmp.ne.s32.totalorder %s361, %s363
    %p367 = scmp.eq.s32.totalorder %s33, 0
    %p368 = por %p366, %p367
    %p369 = scmp.ne.s32.totalorder %s361, %s363
    %p370 = scmp.eq.s32.totalorder %s38, 1
    %p371 = por %p369, %p370
    %p372 = scmp.ne.s32.totalorder %s363, %s364
    %p373 = scmp.eq.s32.totalorder %s38, 0
    %p374 = por %p372, %p373
    %p375 = scmp.ne.s32.totalorder %s363, %s364
    %p376 = scmp.eq.s32.totalorder %s39, 1
    %p377 = por %p375, %p376
    %p379 = scmp.ne.s32.totalorder %s364, %s378
    %p380 = scmp.eq.s32.totalorder %s39, 0
    %p381 = por %p379, %p380
    %s383 = sadd.s32 %s382, 1
    %p386 = scmp.eq.s32.totalorder %s33, 1
    %p387 = scmp.ne.s32.totalorder %s382, %s384
    %p388 = scmp.eq.s32.totalorder %s33, 0
    %p389 = por %p387, %p388
    %p390 = scmp.ne.s32.totalorder %s382, %s384
    %p391 = scmp.eq.s32.totalorder %s38, 1
    %p392 = por %p390, %p391
    %p393 = scmp.ne.s32.totalorder %s384, %s385
    %p394 = scmp.eq.s32.totalorder %s38, 0
    %p395 = por %p393, %p394
    %p396 = scmp.ne.s32.totalorder %s384, %s385
    %p397 = scmp.eq.s32.totalorder %s39, 1
    %p398 = por %p396, %p397
    %p400 = scmp.ne.s32.totalorder %s385, %s399
    %p401 = scmp.eq.s32.totalorder %s39, 0
    %p402 = por %p400, %p401
    %s404 = sadd.s32 %s403, 1
    %p407 = scmp.eq.s32.totalorder %s33, 1
    %p408 = scmp.ne.s32.totalorder %s403, %s405
    %p409 = scmp.eq.s32.totalorder %s33, 0
    %p410 = por %p408, %p409
    %p411 = scmp.ne.s32.totalorder %s403, %s405
    %p412 = scmp.eq.s32.totalorder %s38, 1
    %p413 = por %p411, %p412
    %p414 = scmp.ne.s32.totalorder %s405, %s406
    %p415 = scmp.eq.s32.totalorder %s38, 0
    %p416 = por %p414, %p415
    %p417 = scmp.ne.s32.totalorder %s405, %s406
    %p418 = scmp.eq.s32.totalorder %s39, 1
    %p419 = por %p417, %p418
    %p421 = scmp.ne.s32.totalorder %s406, %s420
    %p422 = scmp.eq.s32.totalorder %s39, 0
    %p423 = por %p421, %p422
    %s425 = sadd.s32 %s424, 1
    %p428 = scmp.eq.s32.totalorder %s33, 1
    %p429 = scmp.ne.s32.totalorder %s424, %s426
    %p430 = scmp.eq.s32.totalorder %s33, 0
    %p431 = por %p429, %p430
    %p432 = scmp.ne.s32.totalorder %s424, %s426
    %p433 = scmp.eq.s32.totalorder %s38, 1
    %p434 = por %p432, %p433
    %p435 = scmp.ne.s32.totalorder %s426, %s427
    %p436 = scmp.eq.s32.totalorder %s38, 0
    %p437 = por %p435, %p436
    %p438 = scmp.ne.s32.totalorder %s426, %s427
    %p439 = scmp.eq.s32.totalorder %s39, 1
    %p440 = por %p438, %p439
    %p442 = scmp.ne.s32.totalorder %s427, %s441
    %p443 = scmp.eq.s32.totalorder %s39, 0
    %p444 = por %p442, %p443
    %s446 = sadd.s32 %s445, 1
    %p449 = scmp.eq.s32.totalorder %s33, 1
    %p450 = scmp.ne.s32.totalorder %s445, %s447
    %p451 = scmp.eq.s32.totalorder %s33, 0
    %p452 = por %p450, %p451
    %p453 = scmp.ne.s32.totalorder %s445, %s447
    %p454 = scmp.eq.s32.totalorder %s38, 1
    %p455 = por %p453, %p454
    %p456 = scmp.ne.s32.totalorder %s447, %s448
    %p457 = scmp.eq.s32.totalorder %s38, 0
    %p458 = por %p456, %p457
    %p459 = scmp.ne.s32.totalorder %s447, %s448
    %p460 = scmp.eq.s32.totalorder %s39, 1
    %p461 = por %p459, %p460
    %p463 = scmp.ne.s32.totalorder %s448, %s462
    %p464 = scmp.eq.s32.totalorder %s39, 0
    %p465 = por %p463, %p464
    %s467 = sadd.s32 %s466, 1
    %p470 = scmp.eq.s32.totalorder %s33, 1
    %p471 = scmp.ne.s32.totalorder %s466, %s468
    %p472 = scmp.eq.s32.totalorder %s33, 0
    %p473 = por %p471, %p472
    %p474 = scmp.ne.s32.totalorder %s466, %s468
    %p475 = scmp.eq.s32.totalorder %s38, 1
    %p476 = por %p474, %p475
    %p477 = scmp.ne.s32.totalorder %s468, %s469
    %p478 = scmp.eq.s32.totalorder %s38, 0
    %p479 = por %p477, %p478
    %p480 = scmp.ne.s32.totalorder %s468, %s469
    %p481 = scmp.eq.s32.totalorder %s39, 1
    %p482 = por %p480, %p481
    %p484 = scmp.ne.s32.totalorder %s469, %s483
    %p485 = scmp.eq.s32.totalorder %s39, 0
    %p486 = por %p484, %p485
    %s488 = sadd.s32 %s487, 1
    %p491 = scmp.eq.s32.totalorder %s33, 1
    %p492 = scmp.ne.s32.totalorder %s487, %s489
    %p493 = scmp.eq.s32.totalorder %s33, 0
    %p494 = por %p492, %p493
    %p495 = scmp.ne.s32.totalorder %s487, %s489
    %p496 = scmp.eq.s32.totalorder %s38, 1
    %p497 = por %p495, %p496
    %p498 = scmp.ne.s32.totalorder %s489, %s490
    %p499 = scmp.eq.s32.totalorder %s38, 0
    %p500 = por %p498, %p499
    %p501 = scmp.ne.s32.totalorder %s489, %s490
    %p502 = scmp.eq.s32.totalorder %s39, 1
    %p503 = por %p501, %p502
    %p505 = scmp.ne.s32.totalorder %s490, %s504
    %p506 = scmp.eq.s32.totalorder %s39, 0
    %p507 = por %p505, %p506
    %s509 = sadd.s32 %s508, 1
    %p512 = scmp.eq.s32.totalorder %s33, 1
    %p513 = scmp.ne.s32.totalorder %s508, %s510
    %p514 = scmp.eq.s32.totalorder %s33, 0
    %p515 = por %p513, %p514
    %p516 = scmp.ne.s32.totalorder %s508, %s510
    %p517 = scmp.eq.s32.totalorder %s38, 1
    %p518 = por %p516, %p517
    %p519 = scmp.ne.s32.totalorder %s510, %s511
    %p520 = scmp.eq.s32.totalorder %s38, 0
    %p521 = por %p519, %p520
    %p522 = scmp.ne.s32.totalorder %s510, %s511
    %p523 = scmp.eq.s32.totalorder %s39, 1
    %p524 = por %p522, %p523
    %p526 = scmp.ne.s32.totalorder %s511, %s525
    %p527 = scmp.eq.s32.totalorder %s39, 0
    %p528 = por %p526, %p527
    %s530 = sadd.s32 %s529, 1
    %p533 = scmp.eq.s32.totalorder %s33, 1
    %p534 = scmp.ne.s32.totalorder %s529, %s531
    %p535 = scmp.eq.s32.totalorder %s33, 0
    %p536 = por %p534, %p535
    %p537 = scmp.ne.s32.totalorder %s529, %s531
    %p538 = scmp.eq.s32.totalorder %s38, 1
    %p539 = por %p537, %p538
    %p540 = scmp.ne.s32.totalorder %s531, %s532
    %p541 = scmp.eq.s32.totalorder %s38, 0
    %p542 = por %p540, %p541
    %p543 = scmp.ne.s32.totalorder %s531, %s532
    %p544 = scmp.eq.s32.totalorder %s39, 1
    %p545 = por %p543, %p544
    %p547 = scmp.ne.s32.totalorder %s532, %s546
    %p548 = scmp.eq.s32.totalorder %s39, 0
    %p549 = por %p547, %p548
    %s551 = sadd.s32 %s550, 1
    %p554 = scmp.eq.s32.totalorder %s33, 1
    %p555 = scmp.ne.s32.totalorder %s550, %s552
    %p556 = scmp.eq.s32.totalorder %s33, 0
    %p557 = por %p555, %p556
    %p558 = scmp.ne.s32.totalorder %s550, %s552
    %p559 = scmp.eq.s32.totalorder %s38, 1
    %p560 = por %p558, %p559
    %p561 = scmp.ne.s32.totalorder %s552, %s553
    %p562 = scmp.eq.s32.totalorder %s38, 0
    %p563 = por %p561, %p562
    %p564 = scmp.ne.s32.totalorder %s552, %s553
    %p565 = scmp.eq.s32.totalorder %s39, 1
    %p566 = por %p564, %p565
    %p568 = scmp.ne.s32.totalorder %s553, %s567
    %p569 = scmp.eq.s32.totalorder %s39, 0
    %p570 = por %p568, %p569
    %s572 = sadd.s32 %s571, 1
    %p575 = scmp.eq.s32.totalorder %s33, 1
    %p576 = scmp.ne.s32.totalorder %s571, %s573
    %p577 = scmp.eq.s32.totalorder %s33, 0
    %p578 = por %p576, %p577
    %p579 = scmp.ne.s32.totalorder %s571, %s573
    %p580 = scmp.eq.s32.totalorder %s38, 1
    %p581 = por %p579, %p580
    %p582 = scmp.ne.s32.totalorder %s573, %s574
    %p583 = scmp.eq.s32.totalorder %s38, 0
    %p584 = por %p582, %p583
    %p585 = scmp.ne.s32.totalorder %s573, %s574
    %p586 = scmp.eq.s32.totalorder %s39, 1
    %p587 = por %p585, %p586
    %p589 = scmp.ne.s32.totalorder %s574, %s588
    %p590 = scmp.eq.s32.totalorder %s39, 0
    %p591 = por %p589, %p590
    %s593 = sadd.s32 %s592, 1
    %p596 = scmp.eq.s32.totalorder %s33, 1
    %p597 = scmp.ne.s32.totalorder %s592, %s594
    %p598 = scmp.eq.s32.totalorder %s33, 0
    %p599 = por %p597, %p598
    %p600 = scmp.ne.s32.totalorder %s592, %s594
    %p601 = scmp.eq.s32.totalorder %s38, 1
    %p602 = por %p600, %p601
    %p603 = scmp.ne.s32.totalorder %s594, %s595
    %p604 = scmp.eq.s32.totalorder %s38, 0
    %p605 = por %p603, %p604
    %p606 = scmp.ne.s32.totalorder %s594, %s595
    %p607 = scmp.eq.s32.totalorder %s39, 1
    %p608 = por %p606, %p607
    %p610 = scmp.ne.s32.totalorder %s595, %s609
    %p611 = scmp.eq.s32.totalorder %s39, 0
    %p612 = por %p610, %p611
    %s613 = ssub.s32 %s33, %s40
    %p614 = scmp.eq.s32.totalorder %s613, 0
    %s616 = sadd.s32 %s615, 1
    %s617 = scalar_select %p614, %s615, %s616
    %p620 = pneg %p614
    %p621 = scmp.eq.s32.totalorder %s33, 1
    %p622 = por %p620, %p621
    %p623 = scmp.ne.s32.totalorder %s615, %s618
    %p624 = scmp.eq.s32.totalorder %s33, 0
    %p625 = por %p623, %p624
    %p626 = scmp.ne.s32.totalorder %s615, %s618
    %p627 = scmp.eq.s32.totalorder %s38, 1
    %p628 = por %p626, %p627
    %p629 = scmp.ne.s32.totalorder %s618, %s619
    %p630 = scmp.eq.s32.totalorder %s38, 0
    %p631 = por %p629, %p630
    %p632 = scmp.ne.s32.totalorder %s618, %s619
    %p633 = scmp.eq.s32.totalorder %s39, 1
    %p634 = por %p632, %p633
    %p636 = scmp.ne.s32.totalorder %s619, %s635
    %p637 = scmp.eq.s32.totalorder %s39, 0
    %p638 = por %p636, %p637
    %p639 = scmp.le.s32.totalorder 1, %s33
    %p640 = scmp.lt.s32.totalorder %s33, 3
    %p641 = pnand %p639, %p640
    %p642 = pneg %p641
    // Predicated region
    $region9: #{simple_conv_forward.1} parent=5 // pred_check
      _
    $region10: #{simple_conv_forward.1} parent=5 // pred_check_branch
      %644 = sbr.rel (%p641) target = $region12
    $region11: #{simple_conv_forward.1} parent=5 // pred_region
      %s645 = ssub.s32 %s33, 1
      // Predicated region
      $region13: #{simple_conv_forward.1} parent=11 // pred_check
        %p646 = pneg %p80
      $region14: #{simple_conv_forward.1} parent=11 // pred_check_branch
        %648 = sbr.rel (%p646) target = $region16
      $region15: #{simple_conv_forward.1} parent=11 // pred_region
        _
      $region16: #{simple_conv_forward.1} parent=11 // pred_fallthru
        _
      // Predicated region
      $region17: #{simple_conv_forward.1} parent=11 // pred_check
        %p649 = pneg %p101
      $region18: #{simple_conv_forward.1} parent=11 // pred_check_branch
        %651 = sbr.rel (%p649) target = $region20
      $region19: #{simple_conv_forward.1} parent=11 // pred_region
        _
      $region20: #{simple_conv_forward.1} parent=11 // pred_fallthru
        _
      // Predicated region
      $region21: #{simple_conv_forward.1} parent=11 // pred_check
        %p652 = pneg %p122
      $region22: #{simple_conv_forward.1} parent=11 // pred_check_branch
        %654 = sbr.rel (%p652) target = $region24
      $region23: #{simple_conv_forward.1} parent=11 // pred_region
        _
      $region24: #{simple_conv_forward.1} parent=11 // pred_fallthru
        _
      // Predicated region
      $region25: #{simple_conv_forward.1} parent=11 // pred_check
        %p655 = pneg %p143
      $region26: #{simple_conv_forward.1} parent=11 // pred_check_branch
        %657 = sbr.rel (%p655) target = $region28
      $region27: #{simple_conv_forward.1} parent=11 // pred_region
        _
      $region28: #{simple_conv_forward.1} parent=11 // pred_fallthru
        _
      // Predicated region
      $region29: #{simple_conv_forward.1} parent=11 // pred_check
        %p658 = pneg %p164
      $region30: #{simple_conv_forward.1} parent=11 // pred_check_branch
        %660 = sbr.rel (%p658) target = $region32
      $region31: #{simple_conv_forward.1} parent=11 // pred_region
        _
      $region32: #{simple_conv_forward.1} parent=11 // pred_fallthru
        _
      // Predicated region
      $region33: #{simple_conv_forward.1} parent=11 // pred_check
        %p661 = pneg %p185
      $region34: #{simple_conv_forward.1} parent=11 // pred_check_branch
        %663 = sbr.rel (%p661) target = $region36
      $region35: #{simple_conv_forward.1} parent=11 // pred_region
        _
      $region36: #{simple_conv_forward.1} parent=11 // pred_fallthru
        _
      // Predicated region
      $region37: #{simple_conv_forward.1} parent=11 // pred_check
        %p664 = pneg %p206
      $region38: #{simple_conv_forward.1} parent=11 // pred_check_branch
        %666 = sbr.rel (%p664) target = $region40
      $region39: #{simple_conv_forward.1} parent=11 // pred_region
        _
      $region40: #{simple_conv_forward.1} parent=11 // pred_fallthru
        _
      // Predicated region
      $region41: #{simple_conv_forward.1} parent=11 // pred_check
        %p667 = pneg %p227
      $region42: #{simple_conv_forward.1} parent=11 // pred_check_branch
        %669 = sbr.rel (%p667) target = $region44
      $region43: #{simple_conv_forward.1} parent=11 // pred_region
        _
      $region44: #{simple_conv_forward.1} parent=11 // pred_fallthru
        _
      // Predicated region
      $region45: #{simple_conv_forward.1} parent=11 // pred_check
        %p670 = pneg %p248
      $region46: #{simple_conv_forward.1} parent=11 // pred_check_branch
        %672 = sbr.rel (%p670) target = $region48
      $region47: #{simple_conv_forward.1} parent=11 // pred_region
        _
      $region48: #{simple_conv_forward.1} parent=11 // pred_fallthru
        _
      // Predicated region
      $region49: #{simple_conv_forward.1} parent=11 // pred_check
        %p673 = pneg %p269
      $region50: #{simple_conv_forward.1} parent=11 // pred_check_branch
        %675 = sbr.rel (%p673) target = $region52
      $region51: #{simple_conv_forward.1} parent=11 // pred_region
        _
      $region52: #{simple_conv_forward.1} parent=11 // pred_fallthru
        _
      // Predicated region
      $region53: #{simple_conv_forward.1} parent=11 // pred_check
        %p676 = pneg %p290
      $region54: #{simple_conv_forward.1} parent=11 // pred_check_branch
        %678 = sbr.rel (%p676) target = $region56
      $region55: #{simple_conv_forward.1} parent=11 // pred_region
        _
      $region56: #{simple_conv_forward.1} parent=11 // pred_fallthru
        _
      // Predicated region
      $region57: #{simple_conv_forward.1} parent=11 // pred_check
        %p679 = pneg %p311
      $region58: #{simple_conv_forward.1} parent=11 // pred_check_branch
        %681 = sbr.rel (%p679) target = $region60
      $region59: #{simple_conv_forward.1} parent=11 // pred_region
        _
      $region60: #{simple_conv_forward.1} parent=11 // pred_fallthru
        _
      // Predicated region
      $region61: #{simple_conv_forward.1} parent=11 // pred_check
        %p682 = pneg %p332
      $region62: #{simple_conv_forward.1} parent=11 // pred_check_branch
        %684 = sbr.rel (%p682) target = $region64
      $region63: #{simple_conv_forward.1} parent=11 // pred_region
        _
      $region64: #{simple_conv_forward.1} parent=11 // pred_fallthru
        _
      // Predicated region
      $region65: #{simple_conv_forward.1} parent=11 // pred_check
        %p685 = pneg %p353
      $region66: #{simple_conv_forward.1} parent=11 // pred_check_branch
        %687 = sbr.rel (%p685) target = $region68
      $region67: #{simple_conv_forward.1} parent=11 // pred_region
        _
      $region68: #{simple_conv_forward.1} parent=11 // pred_fallthru
        _
      // Predicated region
      $region69: #{simple_conv_forward.1} parent=11 // pred_check
        %p688 = pneg %p374
      $region70: #{simple_conv_forward.1} parent=11 // pred_check_branch
        %690 = sbr.rel (%p688) target = $region72
      $region71: #{simple_conv_forward.1} parent=11 // pred_region
        _
      $region72: #{simple_conv_forward.1} parent=11 // pred_fallthru
        _
      // Predicated region
      $region73: #{simple_conv_forward.1} parent=11 // pred_check
        %p691 = pneg %p395
      $region74: #{simple_conv_forward.1} parent=11 // pred_check_branch
        %693 = sbr.rel (%p691) target = $region76
      $region75: #{simple_conv_forward.1} parent=11 // pred_region
        _
      $region76: #{simple_conv_forward.1} parent=11 // pred_fallthru
        _
      // Predicated region
      $region77: #{simple_conv_forward.1} parent=11 // pred_check
        %p694 = pneg %p416
      $region78: #{simple_conv_forward.1} parent=11 // pred_check_branch
        %696 = sbr.rel (%p694) target = $region80
      $region79: #{simple_conv_forward.1} parent=11 // pred_region
        _
      $region80: #{simple_conv_forward.1} parent=11 // pred_fallthru
        _
      // Predicated region
      $region81: #{simple_conv_forward.1} parent=11 // pred_check
        %p697 = pneg %p437
      $region82: #{simple_conv_forward.1} parent=11 // pred_check_branch
        %699 = sbr.rel (%p697) target = $region84
      $region83: #{simple_conv_forward.1} parent=11 // pred_region
        _
      $region84: #{simple_conv_forward.1} parent=11 // pred_fallthru
        _
      // Predicated region
      $region85: #{simple_conv_forward.1} parent=11 // pred_check
        %p700 = pneg %p458
      $region86: #{simple_conv_forward.1} parent=11 // pred_check_branch
        %702 = sbr.rel (%p700) target = $region88
      $region87: #{simple_conv_forward.1} parent=11 // pred_region
        _
      $region88: #{simple_conv_forward.1} parent=11 // pred_fallthru
        _
      // Predicated region
      $region89: #{simple_conv_forward.1} parent=11 // pred_check
        %p703 = pneg %p479
      $region90: #{simple_conv_forward.1} parent=11 // pred_check_branch
        %705 = sbr.rel (%p703) target = $region92
      $region91: #{simple_conv_forward.1} parent=11 // pred_region
        _
      $region92: #{simple_conv_forward.1} parent=11 // pred_fallthru
        _
      // Predicated region
      $region93: #{simple_conv_forward.1} parent=11 // pred_check
        %p706 = pneg %p500
      $region94: #{simple_conv_forward.1} parent=11 // pred_check_branch
        %708 = sbr.rel (%p706) target = $region96
      $region95: #{simple_conv_forward.1} parent=11 // pred_region
        _
      $region96: #{simple_conv_forward.1} parent=11 // pred_fallthru
        _
      // Predicated region
      $region97: #{simple_conv_forward.1} parent=11 // pred_check
        %p709 = pneg %p521
      $region98: #{simple_conv_forward.1} parent=11 // pred_check_branch
        %711 = sbr.rel (%p709) target = $region100
      $region99: #{simple_conv_forward.1} parent=11 // pred_region
        _
      $region100: #{simple_conv_forward.1} parent=11 // pred_fallthru
        _
      // Predicated region
      $region101: #{simple_conv_forward.1} parent=11 // pred_check
        %p712 = pneg %p542
      $region102: #{simple_conv_forward.1} parent=11 // pred_check_branch
        %714 = sbr.rel (%p712) target = $region104
      $region103: #{simple_conv_forward.1} parent=11 // pred_region
        _
      $region104: #{simple_conv_forward.1} parent=11 // pred_fallthru
        _
      // Predicated region
      $region105: #{simple_conv_forward.1} parent=11 // pred_check
        %p715 = pneg %p563
      $region106: #{simple_conv_forward.1} parent=11 // pred_check_branch
        %717 = sbr.rel (%p715) target = $region108
      $region107: #{simple_conv_forward.1} parent=11 // pred_region
        _
      $region108: #{simple_conv_forward.1} parent=11 // pred_fallthru
        _
      // Predicated region
      $region109: #{simple_conv_forward.1} parent=11 // pred_check
        %p718 = pneg %p584
      $region110: #{simple_conv_forward.1} parent=11 // pred_check_branch
        %720 = sbr.rel (%p718) target = $region112
      $region111: #{simple_conv_forward.1} parent=11 // pred_region
        _
      $region112: #{simple_conv_forward.1} parent=11 // pred_fallthru
        _
      // Predicated region
      $region113: #{simple_conv_forward.1} parent=11 // pred_check
        %p721 = pneg %p605
      $region114: #{simple_conv_forward.1} parent=11 // pred_check_branch
        %723 = sbr.rel (%p721) target = $region116
      $region115: #{simple_conv_forward.1} parent=11 // pred_region
        _
      $region116: #{simple_conv_forward.1} parent=11 // pred_fallthru
        _
    $region12: #{simple_conv_forward.1} parent=5 // pred_fallthru
      _
    %p724 = scmp.lt.s32.totalorder %s33, 2
    // Predicated region
    $region117: #{simple_conv_forward.1} parent=5 // pred_check
      %p725 = pneg %p724
    $region118: #{simple_conv_forward.1} parent=5 // pred_check_branch
      %727 = sbr.rel (%p725) target = $region120
    $region119: #{simple_conv_forward.1} parent=5 // pred_region
      // Predicated region
      $region121: #{simple_conv_forward.1} parent=119 // pred_check
        %p728 = pneg %p53
      $region122: #{simple_conv_forward.1} parent=119 // pred_check_branch
        %730 = sbr.rel (%p728) target = $region124
      $region123: #{simple_conv_forward.1} parent=119 // pred_region
        %p731 = scmp.lt.s32.totalorder %s33, 1
        %s732 = scalar_select %p731, %s33, 1
        %s733 = smul.addr %s732, 8
        %s734 = smul.addr %s733, 8
        %s735 = scalar_lea.vmem %s0, %s734
      $region124: #{simple_conv_forward.1} parent=119 // pred_fallthru
        _
    $region120: #{simple_conv_forward.1} parent=5 // pred_fallthru
      _
    %p736 = scmp.le.s32.totalorder 1, %s33
    %p737 = scmp.lt.s32.totalorder %s33, 3
    %p738 = pnand %p736, %p737
    %p739 = pneg %p738
    // Predicated region
    $region125: #{simple_conv_forward.1} parent=5 // pred_check
      _
    $region126: #{simple_conv_forward.1} parent=5 // pred_check_branch
      %741 = sbr.rel (%p738) target = $region128
    $region127: #{simple_conv_forward.1} parent=5 // pred_region
      %s742 = ssub.s32 %s33, 1
      %p743 = scmp.lt.s32.totalorder %s38, 1
      %s744 = scalar_select %p743, %s38, 1
      %s745 = smul.addr %s744, 8
      %s746 = smul.addr %s745, 8
      %s747 = scalar_lea.vmem %s0, %s746
      %p748 = pneg %p59
      %p749 = pneg %p56
      %p750 = pneg %p80
      %p751 = pneg %p77
      %p752 = pneg %p101
      %p753 = pneg %p98
      %p754 = pneg %p122
      %p755 = pneg %p119
      %p756 = pneg %p143
      %p757 = pneg %p140
      %p758 = pneg %p164
      %p759 = pneg %p161
      %p760 = pneg %p185
      %p761 = pneg %p182
      %p762 = pneg %p206
      %p763 = pneg %p203
      %p764 = pneg %p227
      %p765 = pneg %p224
      %p766 = pneg %p248
      %p767 = pneg %p245
      %p768 = pneg %p269
      %p769 = pneg %p266
      %p770 = pneg %p290
      %p771 = pneg %p287
      %p772 = pneg %p311
      %p773 = pneg %p308
      %p774 = pneg %p332
      %p775 = pneg %p329
      %p776 = pneg %p353
      %p777 = pneg %p350
      %p778 = pneg %p374
      %p779 = pneg %p371
      %p780 = pneg %p395
      %p781 = pneg %p392
      %p782 = pneg %p416
      %p783 = pneg %p413
      %p784 = pneg %p437
      %p785 = pneg %p434
      %p786 = pneg %p458
      %p787 = pneg %p455
      %p788 = pneg %p479
      %p789 = pneg %p476
      %p790 = pneg %p500
      %p791 = pneg %p497
      %p792 = pneg %p521
      %p793 = pneg %p518
      %p794 = pneg %p542
      %p795 = pneg %p539
      %p796 = pneg %p563
      %p797 = pneg %p560
      %p798 = pneg %p584
      %p799 = pneg %p581
      %p800 = pneg %p605
      %p801 = pneg %p602
      %p802 = pneg %p631
      %p803 = pneg %p628
      %p804 = scmp.lt.s32.totalorder %s38, 1
      %s805 = scalar_select %p804, %s38, 1
      %s806 = smul.addr %s805, 8
      %s807 = smul.addr %s806, 8
      %s808 = scalar_lea.vmem %s27, %s807
      %p809 = scmp.lt.s32.totalorder %s38, 1
      %s810 = scalar_select %p809, %s38, 1
      %s811 = smul.addr %s810, 8
      %s812 = smul.addr %s811, 8
      %s813 = scalar_lea.vmem %s0, %s812
      %p814 = scmp.lt.s32.totalorder %s38, 1
      %s815 = scalar_select %p814, %s38, 1
      %s816 = smul.addr %s815, 8
      %s817 = smul.addr %s816, 8
      %s818 = scalar_lea.vmem %s27, %s817
      %v819 = vlaneseq
      %v820 = vand.u32 %v819, 127
      %v821 = vadd.s32 %v820, 128
      %v822 = vand.u32 %v820, 15
      %v823 = vand.u32 %v821, 15
      %vm824 = vcmp.ge.s32.totalorder %v820, 16
      %vm825 = vcmp.ge.s32.totalorder %v821, 16
      %vm826 = vcmp.ge.s32.totalorder %v822, 1
      %vm827 = vcmp.ge.s32.totalorder %v823, 1
      %vm828 = vmand %vm824, %vm826
      %vm829 = vmand %vm825, %vm827
      %vm830 = vcmp.le.s32.totalorder %v822, 14
      %vm831 = vcmp.le.s32.totalorder %v823, 14
      %vm832 = vmand %vm824, %vm830
      %vm833 = vmand %vm825, %vm831
      %vm834 = vcmp.lt.s32.totalorder %v820, 240
      %vm835 = vcmp.lt.s32.totalorder %v821, 240
      %vm836 = vmand %vm834, %vm826
      %vm837 = vmand %vm835, %vm827
      %vm838 = vmand %vm834, %vm830
      %vm839 = vmand %vm835, %vm831
      %v840 = vld [vmem:[%s813] sm:$0xff]
      %v841 = vld [vmem:[%s813 + $0x8] sm:$0xff]
      %v842 = vld [vmem:[%s813 + $0x10] sm:$0xff]
      %v843 = vld [vmem:[%s813 + $0x18] sm:$0xff]
      %v844 = vld [vmem:[%s813 + $0x20] sm:$0xff]
      %v845 = vld [vmem:[%s813 + $0x28] sm:$0xff]
      %v846 = vld [vmem:[%s813 + $0x30] sm:$0xff]
      %v847 = vld [vmem:[%s813 + $0x38] sm:$0xff]
      %v848 = vld [vmem:[%s1] sm:$0xff]
      %v849 = vld [vmem:[%s1 + $0x8] sm:$0xff]
      %v850 = vld [vmem:[%s1 + $0x10] sm:$0xff]
      %v851 = vld [vmem:[%s1 + $0x18] sm:$0xff]
      %v852 = vld [vmem:[%s2] sm:$0xff]
      %v853 = vld [vmem:[%s2 + $0x8] sm:$0xff]
      %v854 = vld [vmem:[%s2 + $0x10] sm:$0xff]
      %v855 = vld [vmem:[%s2 + $0x18] sm:$0xff]
      %v856 = vadd.f32 %v840, %v841
      %857 = vadd.xlane.f32.xlu0 %v856
      %v858 = vpop.xlane.xlu0 %857
      %v859 = vadd.f32 %v842, %v843
      %860 = vadd.xlane.f32.xlu0 %v859
      %v861 = vpop.xlane.xlu0 %860
      %v862 = vadd.f32 %v844, %v845
      %863 = vadd.xlane.f32.xlu0 %v862
      %v864 = vpop.xlane.xlu0 %863
      %v865 = vadd.f32 %v846, %v847
      %866 = vadd.xlane.f32.xlu0 %v865
      %v867 = vpop.xlane.xlu0 %866
      %v868 = vadd.f32 %v858, %v861
      %v869 = vadd.f32 %v868, %v864
      %v870 = vadd.f32 %v869, %v867
      %v871 = vrot.slane %v870, 4
      %v872 = vadd.f32 %v870, %v871
      %v873 = vrot.slane %v872, 2
      %v874 = vadd.f32 %v872, %v873
      %v875 = vrot.slane %v874, 1
      %v876 = vadd.f32 %v874, %v875
      %v877 = vmul.f32 %v876, 0.00012207031
      %v878 = vsub.f32 %v840, %v877
      %v879 = vsub.f32 %v841, %v877
      %v880 = vsub.f32 %v842, %v877
      %v881 = vsub.f32 %v843, %v877
      %v882 = vsub.f32 %v844, %v877
      %v883 = vsub.f32 %v845, %v877
      %v884 = vsub.f32 %v846, %v877
      %v885 = vsub.f32 %v847, %v877
      %v886 = vmul.f32 %v878, %v878
      %v887 = vmul.f32 %v879, %v879
      %v888 = vmul.f32 %v880, %v880
      %v889 = vmul.f32 %v881, %v881
      %v890 = vmul.f32 %v882, %v882
      %v891 = vmul.f32 %v883, %v883
      %v892 = vmul.f32 %v884, %v884
      %v893 = vmul.f32 %v885, %v885
      %v894 = vadd.f32 %v886, %v887
      %895 = vadd.xlane.f32.xlu0 %v894
      %v896 = vpop.xlane.xlu0 %895
      %v897 = vadd.f32 %v888, %v889
      %898 = vadd.xlane.f32.xlu0 %v897
      %v899 = vpop.xlane.xlu0 %898
      %v900 = vadd.f32 %v890, %v891
      %901 = vadd.xlane.f32.xlu0 %v900
      %v902 = vpop.xlane.xlu0 %901
      %v903 = vadd.f32 %v892, %v893
      %904 = vadd.xlane.f32.xlu0 %v903
      %v905 = vpop.xlane.xlu0 %904
      %v906 = vadd.f32 %v896, %v899
      %v907 = vadd.f32 %v906, %v902
      %v908 = vadd.f32 %v907, %v905
      %v909 = vrot.slane %v908, 4
      %v910 = vadd.f32 %v908, %v909
      %v911 = vrot.slane %v910, 2
      %v912 = vadd.f32 %v910, %v911
      %v913 = vrot.slane %v912, 1
      %v914 = vadd.f32 %v912, %v913
      %v915 = vmul.f32 %v914, 0.00012207031
      %v916 = vadd.f32 %v915, 1e-06
      %v917 = vrsqrt.pop %v916
      %v918 = vmul.f32 %v878, %v917
      %v919 = vmul.f32 %v879, %v917
      %v920 = vmul.f32 %v880, %v917
      %v921 = vmul.f32 %v881, %v917
      %v922 = vmul.f32 %v882, %v917
      %v923 = vmul.f32 %v883, %v917
      %v924 = vmul.f32 %v884, %v917
      %v925 = vmul.f32 %v885, %v917
      %927 = vset.pattern.permute.xlu0 0
      %928 = vperm.xlu0 %927, %v848
      %v929 = vpop.permute.xlu0 %928
      %932 = vset.pattern.permute.xlu0 0
      %933 = vperm.xlu0 %932, %v849
      %v934 = vpop.permute.xlu0 %933
      %937 = vset.pattern.permute.xlu0 0
      %938 = vperm.xlu0 %937, %v850
      %v939 = vpop.permute.xlu0 %938
      %942 = vset.pattern.permute.xlu0 0
      %943 = vperm.xlu0 %942, %v851
      %v944 = vpop.permute.xlu0 %943
      %v946 = vmul.f32 %v918, %v929
      %v947 = vmul.f32 %v919, %v929
      %v948 = vmul.f32 %v920, %v934
      %v949 = vmul.f32 %v921, %v934
      %v950 = vmul.f32 %v922, %v939
      %v951 = vmul.f32 %v923, %v939
      %v952 = vmul.f32 %v924, %v944
      %v953 = vmul.f32 %v925, %v944
      %955 = vset.pattern.permute.xlu0 0
      %956 = vperm.xlu0 %955, %v852
      %v957 = vpop.permute.xlu0 %956
      %960 = vset.pattern.permute.xlu0 0
      %961 = vperm.xlu0 %960, %v853
      %v962 = vpop.permute.xlu0 %961
      %965 = vset.pattern.permute.xlu0 0
      %966 = vperm.xlu0 %965, %v854
      %v967 = vpop.permute.xlu0 %966
      %970 = vset.pattern.permute.xlu0 0
      %971 = vperm.xlu0 %970, %v855
      %v972 = vpop.permute.xlu0 %971
      %v974 = vadd.f32 %v946, %v957
      %v975 = vadd.f32 %v947, %v957
      %v976 = vadd.f32 %v948, %v962
      %v977 = vadd.f32 %v949, %v962
      %v978 = vadd.f32 %v950, %v967
      %v979 = vadd.f32 %v951, %v967
      %v980 = vadd.f32 %v952, %v972
      %v981 = vadd.f32 %v953, %v972
      %v982 = vsub.f32 0.0, %v974
      %v983 = vsub.f32 0.0, %v975
      %v984 = vsub.f32 0.0, %v976
      %v985 = vsub.f32 0.0, %v977
      %v986 = vsub.f32 0.0, %v978
      %v987 = vsub.f32 0.0, %v979
      %v988 = vsub.f32 0.0, %v980
      %v989 = vsub.f32 0.0, %v981
      %v990 = vmul.f32 %v982, 1.442695
      %v991 = vpow.pop %v990
      %v992 = vmul.f32 %v983, 1.442695
      %v993 = vpow.pop %v992
      %v994 = vmul.f32 %v984, 1.442695
      %v995 = vpow.pop %v994
      %v996 = vmul.f32 %v985, 1.442695
      %v997 = vpow.pop %v996
      %v998 = vmul.f32 %v986, 1.442695
      %v999 = vpow.pop %v998
      %v1000 = vmul.f32 %v987, 1.442695
      %v1001 = vpow.pop %v1000
      %v1002 = vmul.f32 %v988, 1.442695
      %v1003 = vpow.pop %v1002
      %v1004 = vmul.f32 %v989, 1.442695
      %v1005 = vpow.pop %v1004
      %v1006 = vadd.f32 %v991, 1.0
      %v1007 = vadd.f32 %v993, 1.0
      %v1008 = vadd.f32 %v995, 1.0
      %v1009 = vadd.f32 %v997, 1.0
      %v1010 = vadd.f32 %v999, 1.0
      %v1011 = vadd.f32 %v1001, 1.0
      %v1012 = vadd.f32 %v1003, 1.0
      %v1013 = vadd.f32 %v1005, 1.0
      %v1014 = vrcp.pop %v1006
      %v1015 = vmul.f32 1.0, %v1014
      %v1016 = vrcp.pop %v1007
      %v1017 = vmul.f32 1.0, %v1016
      %v1018 = vrcp.pop %v1008
      %v1019 = vmul.f32 1.0, %v1018
      %v1020 = vrcp.pop %v1009
      %v1021 = vmul.f32 1.0, %v1020
      %v1022 = vrcp.pop %v1010
      %v1023 = vmul.f32 1.0, %v1022
      %v1024 = vrcp.pop %v1011
      %v1025 = vmul.f32 1.0, %v1024
      %v1026 = vrcp.pop %v1012
      %v1027 = vmul.f32 1.0, %v1026
      %v1028 = vrcp.pop %v1013
      %v1029 = vmul.f32 1.0, %v1028
      %v1030 = vmul.f32 %v974, %v1015
      %v1031 = vmul.f32 %v975, %v1017
      %v1032 = vmul.f32 %v976, %v1019
      %v1033 = vmul.f32 %v977, %v1021
      %v1034 = vmul.f32 %v978, %v1023
      %v1035 = vmul.f32 %v979, %v1025
      %v1036 = vmul.f32 %v980, %v1027
      %v1037 = vmul.f32 %v981, %v1029
      %v1038 = vld [vmem:[%s3] sm:$0x3f]
      %v1039 = vld [vmem:[%s4] sm:$0x3]
      %1040 = vrot.lane.b32.xlu0 %v1030, 17
      %v1041 = vpop.permute.xlu0 %1040
      %1042 = vrot.lane.b32.xlu0 %v1032, 17
      %v1043 = vpop.permute.xlu0 %1042
      %1044 = vrot.lane.b32.xlu0 %v1034, 17
      %v1045 = vpop.permute.xlu0 %1044
      %1046 = vrot.lane.b32.xlu0 %v1036, 17
      %v1047 = vpop.permute.xlu0 %1046
      %1048 = vrot.lane.b32.xlu0 %v1031, 17
      %v1049 = vpop.permute.xlu0 %1048
      %1050 = vrot.lane.b32.xlu0 %v1033, 17
      %v1051 = vpop.permute.xlu0 %1050
      %1052 = vrot.lane.b32.xlu0 %v1035, 17
      %v1053 = vpop.permute.xlu0 %1052
      %1054 = vrot.lane.b32.xlu0 %v1037, 17
      %v1055 = vpop.permute.xlu0 %1054
      %vm1056 = vcmp.lt.s32.totalorder %v820, 17
      %v1057 = vsel %vm1056, %v1041, %v1049
      %v1058 = vsel %vm1056, %v1043, %v1051
      %v1059 = vsel %vm1056, %v1045, %v1053
      %v1060 = vsel %vm1056, %v1047, %v1055
      %v1061 = vsel %vm1056, %v1049, %v1041
      %v1062 = vsel %vm1056, %v1051, %v1043
      %v1063 = vsel %vm1056, %v1053, %v1045
      %v1064 = vsel %vm1056, %v1055, %v1047
      %v1065 = vsel %vm828, 1, 0
      %v1066 = vsel %vm829, 1, 0
      %vm1067 = vcmp.eq.s32.totalorder %v1065, 1
      %vm1068 = vcmp.eq.s32.totalorder %v1066, 1
      %v1069 = vsel %vm1067, %v1061, 0.0
      %v1070 = vsel %vm1068, %v1057, 0.0
      %v1071 = vsel %vm1067, %v1062, 0.0
      %v1072 = vsel %vm1068, %v1058, 0.0
      %v1073 = vsel %vm1067, %v1063, 0.0
      %v1074 = vsel %vm1068, %v1059, 0.0
      %v1075 = vsel %vm1067, %v1064, 0.0
      %v1076 = vsel %vm1068, %v1060, 0.0
      %1077 = vrot.lane.b32.xlu0 %v1030, 16
      %v1078 = vpop.permute.xlu0 %1077
      %1079 = vrot.lane.b32.xlu0 %v1032, 16
      %v1080 = vpop.permute.xlu0 %1079
      %1081 = vrot.lane.b32.xlu0 %v1034, 16
      %v1082 = vpop.permute.xlu0 %1081
      %1083 = vrot.lane.b32.xlu0 %v1036, 16
      %v1084 = vpop.permute.xlu0 %1083
      %1085 = vrot.lane.b32.xlu0 %v1031, 16
      %v1086 = vpop.permute.xlu0 %1085
      %1087 = vrot.lane.b32.xlu0 %v1033, 16
      %v1088 = vpop.permute.xlu0 %1087
      %1089 = vrot.lane.b32.xlu0 %v1035, 16
      %v1090 = vpop.permute.xlu0 %1089
      %1091 = vrot.lane.b32.xlu0 %v1037, 16
      %v1092 = vpop.permute.xlu0 %1091
      %vm1093 = vcmp.lt.s32.totalorder %v820, 16
      %v1094 = vsel %vm1093, %v1078, %v1086
      %v1095 = vsel %vm1093, %v1080, %v1088
      %v1096 = vsel %vm1093, %v1082, %v1090
      %v1097 = vsel %vm1093, %v1084, %v1092
      %v1098 = vsel %vm1093, %v1086, %v1078
      %v1099 = vsel %vm1093, %v1088, %v1080
      %v1100 = vsel %vm1093, %v1090, %v1082
      %v1101 = vsel %vm1093, %v1092, %v1084
      %v1102 = vsel %vm824, 1, 0
      %v1103 = vsel %vm825, 1, 0
      %vm1104 = vcmp.eq.s32.totalorder %v1102, 1
      %vm1105 = vcmp.eq.s32.totalorder %v1103, 1
      %v1106 = vsel %vm1104, %v1098, 0.0
      %v1107 = vsel %vm1105, %v1094, 0.0
      %v1108 = vsel %vm1104, %v1099, 0.0
      %v1109 = vsel %vm1105, %v1095, 0.0
      %v1110 = vsel %vm1104, %v1100, 0.0
      %v1111 = vsel %vm1105, %v1096, 0.0
      %v1112 = vsel %vm1104, %v1101, 0.0
      %v1113 = vsel %vm1105, %v1097, 0.0
      %1114 = vrot.lane.b32.xlu0 %v1030, 15
      %v1115 = vpop.permute.xlu0 %1114
      %1116 = vrot.lane.b32.xlu0 %v1032, 15
      %v1117 = vpop.permute.xlu0 %1116
      %1118 = vrot.lane.b32.xlu0 %v1034, 15
      %v1119 = vpop.permute.xlu0 %1118
      %1120 = vrot.lane.b32.xlu0 %v1036, 15
      %v1121 = vpop.permute.xlu0 %1120
      %1122 = vrot.lane.b32.xlu0 %v1031, 15
      %v1123 = vpop.permute.xlu0 %1122
      %1124 = vrot.lane.b32.xlu0 %v1033, 15
      %v1125 = vpop.permute.xlu0 %1124
      %1126 = vrot.lane.b32.xlu0 %v1035, 15
      %v1127 = vpop.permute.xlu0 %1126
      %1128 = vrot.lane.b32.xlu0 %v1037, 15
      %v1129 = vpop.permute.xlu0 %1128
      %vm1130 = vcmp.lt.s32.totalorder %v820, 15
      %v1131 = vsel %vm1130, %v1115, %v1123
      %v1132 = vsel %vm1130, %v1117, %v1125
      %v1133 = vsel %vm1130, %v1119, %v1127
      %v1134 = vsel %vm1130, %v1121, %v1129
      %v1135 = vsel %vm1130, %v1123, %v1115
      %v1136 = vsel %vm1130, %v1125, %v1117
      %v1137 = vsel %vm1130, %v1127, %v1119
      %v1138 = vsel %vm1130, %v1129, %v1121
      %v1139 = vsel %vm832, 1, 0
      %v1140 = vsel %vm833, 1, 0
      %vm1141 = vcmp.eq.s32.totalorder %v1139, 1
      %vm1142 = vcmp.eq.s32.totalorder %v1140, 1
      %v1143 = vsel %vm1141, %v1135, 0.0
      %v1144 = vsel %vm1142, %v1131, 0.0
      %v1145 = vsel %vm1141, %v1136, 0.0
      %v1146 = vsel %vm1142, %v1132, 0.0
      %v1147 = vsel %vm1141, %v1137, 0.0
      %v1148 = vsel %vm1142, %v1133, 0.0
      %v1149 = vsel %vm1141, %v1138, 0.0
      %v1150 = vsel %vm1142, %v1134, 0.0
      %1151 = vrot.lane.b32.xlu0 %v1030, 1
      %v1152 = vpop.permute.xlu0 %1151
      %1153 = vrot.lane.b32.xlu0 %v1032, 1
      %v1154 = vpop.permute.xlu0 %1153
      %1155 = vrot.lane.b32.xlu0 %v1034, 1
      %v1156 = vpop.permute.xlu0 %1155
      %1157 = vrot.lane.b32.xlu0 %v1036, 1
      %v1158 = vpop.permute.xlu0 %1157
      %1159 = vrot.lane.b32.xlu0 %v1031, 1
      %v1160 = vpop.permute.xlu0 %1159
      %1161 = vrot.lane.b32.xlu0 %v1033, 1
      %v1162 = vpop.permute.xlu0 %1161
      %1163 = vrot.lane.b32.xlu0 %v1035, 1
      %v1164 = vpop.permute.xlu0 %1163
      %1165 = vrot.lane.b32.xlu0 %v1037, 1
      %v1166 = vpop.permute.xlu0 %1165
      %vm1167 = vcmp.lt.s32.totalorder %v820, 1
      %v1168 = vsel %vm1167, %v1152, %v1160
      %v1169 = vsel %vm1167, %v1154, %v1162
      %v1170 = vsel %vm1167, %v1156, %v1164
      %v1171 = vsel %vm1167, %v1158, %v1166
      %v1172 = vsel %vm1167, %v1160, %v1152
      %v1173 = vsel %vm1167, %v1162, %v1154
      %v1174 = vsel %vm1167, %v1164, %v1156
      %v1175 = vsel %vm1167, %v1166, %v1158
      %v1176 = vsel %vm826, 1, 0
      %v1177 = vsel %vm827, 1, 0
      %vm1178 = vcmp.eq.s32.totalorder %v1176, 1
      %vm1179 = vcmp.eq.s32.totalorder %v1177, 1
      %v1180 = vsel %vm1178, %v1172, 0.0
      %v1181 = vsel %vm1179, %v1168, 0.0
      %v1182 = vsel %vm1178, %v1173, 0.0
      %v1183 = vsel %vm1179, %v1169, 0.0
      %v1184 = vsel %vm1178, %v1174, 0.0
      %v1185 = vsel %vm1179, %v1170, 0.0
      %v1186 = vsel %vm1178, %v1175, 0.0
      %v1187 = vsel %vm1179, %v1171, 0.0
      %1188 = vrot.lane.b32.xlu0 %v1030, 127
      %v1189 = vpop.permute.xlu0 %1188
      %1190 = vrot.lane.b32.xlu0 %v1032, 127
      %v1191 = vpop.permute.xlu0 %1190
      %1192 = vrot.lane.b32.xlu0 %v1034, 127
      %v1193 = vpop.permute.xlu0 %1192
      %1194 = vrot.lane.b32.xlu0 %v1036, 127
      %v1195 = vpop.permute.xlu0 %1194
      %1196 = vrot.lane.b32.xlu0 %v1031, 127
      %v1197 = vpop.permute.xlu0 %1196
      %1198 = vrot.lane.b32.xlu0 %v1033, 127
      %v1199 = vpop.permute.xlu0 %1198
      %1200 = vrot.lane.b32.xlu0 %v1035, 127
      %v1201 = vpop.permute.xlu0 %1200
      %1202 = vrot.lane.b32.xlu0 %v1037, 127
      %v1203 = vpop.permute.xlu0 %1202
      %vm1204 = vcmp.lt.s32.totalorder %v820, 127
      %v1205 = vsel %vm1204, %v1189, %v1197
      %v1206 = vsel %vm1204, %v1191, %v1199
      %v1207 = vsel %vm1204, %v1193, %v1201
      %v1208 = vsel %vm1204, %v1195, %v1203
      %v1209 = vsel %vm1204, %v1197, %v1189
      %v1210 = vsel %vm1204, %v1199, %v1191
      %v1211 = vsel %vm1204, %v1201, %v1193
      %v1212 = vsel %vm1204, %v1203, %v1195
      %v1213 = vsel %vm830, 1, 0
      %v1214 = vsel %vm831, 1, 0
      %vm1215 = vcmp.eq.s32.totalorder %v1213, 1
      %vm1216 = vcmp.eq.s32.totalorder %v1214, 1
      %v1217 = vsel %vm1215, %v1205, 0.0
      %v1218 = vsel %vm1216, %v1209, 0.0
      %v1219 = vsel %vm1215, %v1206, 0.0
      %v1220 = vsel %vm1216, %v1210, 0.0
      %v1221 = vsel %vm1215, %v1207, 0.0
      %v1222 = vsel %vm1216, %v1211, 0.0
      %v1223 = vsel %vm1215, %v1208, 0.0
      %v1224 = vsel %vm1216, %v1212, 0.0
      %1225 = vrot.lane.b32.xlu0 %v1030, 113
      %v1226 = vpop.permute.xlu0 %1225
      %1227 = vrot.lane.b32.xlu0 %v1032, 113
      %v1228 = vpop.permute.xlu0 %1227
      %1229 = vrot.lane.b32.xlu0 %v1034, 113
      %v1230 = vpop.permute.xlu0 %1229
      %1231 = vrot.lane.b32.xlu0 %v1036, 113
      %v1232 = vpop.permute.xlu0 %1231
      %1233 = vrot.lane.b32.xlu0 %v1031, 113
      %v1234 = vpop.permute.xlu0 %1233
      %1235 = vrot.lane.b32.xlu0 %v1033, 113
      %v1236 = vpop.permute.xlu0 %1235
      %1237 = vrot.lane.b32.xlu0 %v1035, 113
      %v1238 = vpop.permute.xlu0 %1237
      %1239 = vrot.lane.b32.xlu0 %v1037, 113
      %v1240 = vpop.permute.xlu0 %1239
      %vm1241 = vcmp.lt.s32.totalorder %v820, 113
      %v1242 = vsel %vm1241, %v1226, %v1234
      %v1243 = vsel %vm1241, %v1228, %v1236
      %v1244 = vsel %vm1241, %v1230, %v1238
      %v1245 = vsel %vm1241, %v1232, %v1240
      %v1246 = vsel %vm1241, %v1234, %v1226
      %v1247 = vsel %vm1241, %v1236, %v1228
      %v1248 = vsel %vm1241, %v1238, %v1230
      %v1249 = vsel %vm1241, %v1240, %v1232
      %v1250 = vsel %vm836, 1, 0
      %v1251 = vsel %vm837, 1, 0
      %vm1252 = vcmp.eq.s32.totalorder %v1250, 1
      %vm1253 = vcmp.eq.s32.totalorder %v1251, 1
      %v1254 = vsel %vm1252, %v1242, 0.0
      %v1255 = vsel %vm1253, %v1246, 0.0
      %v1256 = vsel %vm1252, %v1243, 0.0
      %v1257 = vsel %vm1253, %v1247, 0.0
      %v1258 = vsel %vm1252, %v1244, 0.0
      %v1259 = vsel %vm1253, %v1248, 0.0
      %v1260 = vsel %vm1252, %v1245, 0.0
      %v1261 = vsel %vm1253, %v1249, 0.0
      %1262 = vrot.lane.b32.xlu0 %v1030, 112
      %v1263 = vpop.permute.xlu0 %1262
      %1264 = vrot.lane.b32.xlu0 %v1032, 112
      %v1265 = vpop.permute.xlu0 %1264
      %1266 = vrot.lane.b32.xlu0 %v1034, 112
      %v1267 = vpop.permute.xlu0 %1266
      %1268 = vrot.lane.b32.xlu0 %v1036, 112
      %v1269 = vpop.permute.xlu0 %1268
      %1270 = vrot.lane.b32.xlu0 %v1031, 112
      %v1271 = vpop.permute.xlu0 %1270
      %1272 = vrot.lane.b32.xlu0 %v1033, 112
      %v1273 = vpop.permute.xlu0 %1272
      %1274 = vrot.lane.b32.xlu0 %v1035, 112
      %v1275 = vpop.permute.xlu0 %1274
      %1276 = vrot.lane.b32.xlu0 %v1037, 112
      %v1277 = vpop.permute.xlu0 %1276
      %vm1278 = vcmp.lt.s32.totalorder %v820, 112
      %v1279 = vsel %vm1278, %v1263, %v1271
      %v1280 = vsel %vm1278, %v1265, %v1273
      %v1281 = vsel %vm1278, %v1267, %v1275
      %v1282 = vsel %vm1278, %v1269, %v1277
      %v1283 = vsel %vm1278, %v1271, %v1263
      %v1284 = vsel %vm1278, %v1273, %v1265
      %v1285 = vsel %vm1278, %v1275, %v1267
      %v1286 = vsel %vm1278, %v1277, %v1269
      %v1287 = vsel %vm834, 1, 0
      %v1288 = vsel %vm835, 1, 0
      %vm1289 = vcmp.eq.s32.totalorder %v1287, 1
      %vm1290 = vcmp.eq.s32.totalorder %v1288, 1
      %v1291 = vsel %vm1289, %v1279, 0.0
      %v1292 = vsel %vm1290, %v1283, 0.0
      %v1293 = vsel %vm1289, %v1280, 0.0
      %v1294 = vsel %vm1290, %v1284, 0.0
      %v1295 = vsel %vm1289, %v1281, 0.0
      %v1296 = vsel %vm1290, %v1285, 0.0
      %v1297 = vsel %vm1289, %v1282, 0.0
      %v1298 = vsel %vm1290, %v1286, 0.0
      %1299 = vrot.lane.b32.xlu0 %v1030, 111
      %v1300 = vpop.permute.xlu0 %1299
      %1301 = vrot.lane.b32.xlu0 %v1032, 111
      %v1302 = vpop.permute.xlu0 %1301
      %1303 = vrot.lane.b32.xlu0 %v1034, 111
      %v1304 = vpop.permute.xlu0 %1303
      %1305 = vrot.lane.b32.xlu0 %v1036, 111
      %v1306 = vpop.permute.xlu0 %1305
      %1307 = vrot.lane.b32.xlu0 %v1031, 111
      %v1308 = vpop.permute.xlu0 %1307
      %1309 = vrot.lane.b32.xlu0 %v1033, 111
      %v1310 = vpop.permute.xlu0 %1309
      %1311 = vrot.lane.b32.xlu0 %v1035, 111
      %v1312 = vpop.permute.xlu0 %1311
      %1313 = vrot.lane.b32.xlu0 %v1037, 111
      %v1314 = vpop.permute.xlu0 %1313
      %vm1315 = vcmp.lt.s32.totalorder %v820, 111
      %v1316 = vsel %vm1315, %v1300, %v1308
      %v1317 = vsel %vm1315, %v1302, %v1310
      %v1318 = vsel %vm1315, %v1304, %v1312
      %v1319 = vsel %vm1315, %v1306, %v1314
      %v1320 = vsel %vm1315, %v1308, %v1300
      %v1321 = vsel %vm1315, %v1310, %v1302
      %v1322 = vsel %vm1315, %v1312, %v1304
      %v1323 = vsel %vm1315, %v1314, %v1306
      %v1324 = vsel %vm838, 1, 0
      %v1325 = vsel %vm839, 1, 0
      %vm1326 = vcmp.eq.s32.totalorder %v1324, 1
      %vm1327 = vcmp.eq.s32.totalorder %v1325, 1
      %v1328 = vsel %vm1326, %v1316, 0.0
      %v1329 = vsel %vm1327, %v1320, 0.0
      %v1330 = vsel %vm1326, %v1317, 0.0
      %v1331 = vsel %vm1327, %v1321, 0.0
      %v1332 = vsel %vm1326, %v1318, 0.0
      %v1333 = vsel %vm1327, %v1322, 0.0
      %v1334 = vsel %vm1326, %v1319, 0.0
      %v1335 = vsel %vm1327, %v1323, 0.0
      %1337 = vset.pattern.permute.xlu0 0
      %1338 = vperm.xlu0 %1337, %v1039
      %v1339 = vpop.permute.xlu0 %1338
      %v1342 = vcombine.high %v1038, %v1038
      %v1344 = vunpack.c.l.s4 1983009808
      %v1345 = vunpack.c.0.s8 %v1344
      %v1346 = vlaneseq
      %v1347 = vshrl.u32 %v1346, 7
      %v1348 = vsub.s32 %v1345, %v1347
      %v1349 = vrot.slane %v1038, %v1348
      %v1351 = vunpack.c.l.s4 1983009808
      %v1352 = vunpack.c.0.s8 %v1351
      %v1353 = vlaneseq
      %v1354 = vshrl.u32 %v1353, 7
      %v1355 = vsub.s32 %v1352, %v1354
      %v1356 = vrot.slane %v1342, %v1355
      %v1357 = vcombine.high %v1349, %v1349
      %vm1360 = vcmask 261120
      %v1361 = vsel %vm1360, %v1356, 0
      %1363 = vmatprep.subr.mxu0 %v1070
      %1364 = vmatpush1.msra.mxu0 %v1069
      %1365 = vmatprep.subr.mxu0 %v1072
      %1366 = vmatpush1.msra.mxu0 %v1071
      %1367 = vmatprep.subr.mxu0 %v1074
      %1368 = vmatpush1.msra.mxu0 %v1073
      %1369 = vmatprep.subr.mxu0 %v1076
      %1370 = vmatpush1.msra.mxu0 %v1075
      %1371 = vmatprep.subr.mxu0 %v1107
      %1372 = vmatpush1.msra.mxu0 %v1106
      %1373 = vmatprep.subr.mxu0 %v1109
      %1374 = vmatpush1.msra.mxu0 %v1108
      %1375 = vmatprep.subr.mxu0 %v1111
      %1376 = vmatpush1.msra.mxu0 %v1110
      %1377 = vmatprep.subr.mxu0 %v1113
      %1378 = vmatpush1.msra.mxu0 %v1112
      %1379 = vmatprep.subr.mxu0 %v1144
      %1380 = vmatpush1.msra.mxu0 %v1143
      %1381 = vmatprep.subr.mxu0 %v1146
      %1382 = vmatpush1.msra.mxu0 %v1145
      %1383 = vmatprep.subr.mxu0 %v1148
      %1384 = vmatpush1.msra.mxu0 %v1147
      %1385 = vmatprep.subr.mxu0 %v1150
      %1386 = vmatpush1.msra.mxu0 %v1149
      %1387 = vmatprep.subr.mxu0 %v1181
      %1388 = vmatpush1.msra.mxu0 %v1180
      %1389 = vmatprep.subr.mxu0 %v1183
      %1390 = vmatpush1.msra.mxu0 %v1182
      %1391 = vmatprep.subr.mxu0 %v1185
      %1392 = vmatpush1.msra.mxu0 %v1184
      %1393 = vmatprep.subr.mxu0 %v1187
      %1394 = vmatpush1.msra.mxu0 %v1186
      %1395 = vmatprep.subr.mxu0 %v1031
      %1396 = vmatpush1.msra.mxu0 %v1030
      %1397 = vmatprep.subr.mxu0 %v1033
      %1398 = vmatpush1.msra.mxu0 %v1032
      %1399 = vmatprep.subr.mxu0 %v1035
      %1400 = vmatpush1.msra.mxu0 %v1034
      %1401 = vmatprep.subr.mxu0 %v1037
      %1402 = vmatpush1.msra.mxu0 %v1036
      %1403 = vmatprep.subr.mxu0 %v1218
      %1404 = vmatpush1.msra.mxu0 %v1217
      %1405 = vmatprep.subr.mxu0 %v1220
      %1406 = vmatpush1.msra.mxu0 %v1219
      %1407 = vmatprep.subr.mxu0 %v1222
      %1408 = vmatpush1.msra.mxu0 %v1221
      %1409 = vmatprep.subr.mxu0 %v1224
      %1410 = vmatpush1.msra.mxu0 %v1223
      %1411 = vmatprep.subr.mxu0 %v1255
      %1412 = vmatpush1.msra.mxu0 %v1254
      %1413 = vmatprep.subr.mxu0 %v1257
      %1414 = vmatpush1.msra.mxu0 %v1256
      %1415 = vmatprep.subr.mxu0 %v1259
      %1416 = vmatpush1.msra.mxu0 %v1258
      %1417 = vmatprep.subr.mxu0 %v1261
      %1418 = vmatpush1.msra.mxu0 %v1260
      %1419 = vmatprep.subr.mxu0 %v1292
      %1420 = vmatpush1.msra.mxu0 %v1291
      %1421 = vmatprep.subr.mxu0 %v1294
      %1422 = vmatpush1.msra.mxu0 %v1293
      %1423 = vmatprep.subr.mxu0 %v1296
      %1424 = vmatpush1.msra.mxu0 %v1295
      %1425 = vmatprep.subr.mxu0 %v1298
      %1426 = vmatpush1.msra.mxu0 %v1297
      %1427 = vmatprep.mubr.f32.mxu0 %v1357
      %1428 = vmatmul.mubr.f32.gmra.mrb[0].mxu0 %v1349
      %v1429 = vpop.f32.mrb[0].mxu0
      %v1430 = vadd.f32 %v1339, %v1429
      %v1431 = vpop.f32.mrb[0].mxu0
      %v1432 = vadd.f32 %v1339, %v1431
      %1433 = vdwg.mxu0
      %1434 = vmatprep.subr.mxu0 %v1329
      %1435 = vmatpush1.msra.mxu0 %v1328
      %1436 = vmatprep.subr.mxu0 %v1331
      %1437 = vmatpush1.msra.mxu0 %v1330
      %1438 = vmatprep.subr.mxu0 %v1333
      %1439 = vmatpush1.msra.mxu0 %v1332
      %1440 = vmatprep.subr.mxu0 %v1335
      %1441 = vmatpush1.msra.mxu0 %v1334
      %1442 = vmatprep.subr.mxu0 0.0
      %1443 = vmatpush1.msra.mxu0 0.0
      %1444 = vmatprep.subr.mxu0 0.0
      %1445 = vmatpush1.msra.mxu0 0.0
      %1446 = vmatprep.subr.mxu0 0.0
      %1447 = vmatpush1.msra.mxu0 0.0
      %1448 = vmatprep.subr.mxu0 0.0
      %1449 = vmatpush1.msra.mxu0 0.0
      %1450 = vmatprep.subr.mxu0 0.0
      %1451 = vmatpush1.msra.mxu0 0.0
      %1452 = vmatprep.subr.mxu0 0.0
      %1453 = vmatpush1.msra.mxu0 0.0
      %1454 = vmatprep.subr.mxu0 0.0
      %1455 = vmatpush1.msra.mxu0 0.0
      %1456 = vmatprep.subr.mxu0 0.0
      %1457 = vmatpush1.msra.mxu0 0.0
      %1458 = vmatprep.subr.mxu0 0.0
      %1459 = vmatpush1.msra.mxu0 0.0
      %1460 = vmatprep.subr.mxu0 0.0
      %1461 = vmatpush1.msra.mxu0 0.0
      %1462 = vmatprep.subr.mxu0 0.0
      %1463 = vmatpush1.msra.mxu0 0.0
      %1464 = vmatprep.subr.mxu0 0.0
      %1465 = vmatpush1.msra.mxu0 0.0
      %1466 = vmatprep.subr.mxu0 0.0
      %1467 = vmatpush1.msra.mxu0 0.0
      %1468 = vmatprep.subr.mxu0 0.0
      %1469 = vmatpush1.msra.mxu0 0.0
      %1470 = vmatprep.subr.mxu0 0.0
      %1471 = vmatpush1.msra.mxu0 0.0
      %1472 = vmatprep.subr.mxu0 0.0
      %1473 = vmatpush1.msra.mxu0 0.0
      %1474 = vmatprep.subr.mxu0 0.0
      %1475 = vmatpush1.msra.mxu0 0.0
      %1476 = vmatprep.subr.mxu0 0.0
      %1477 = vmatpush1.msra.mxu0 0.0
      %1478 = vmatprep.subr.mxu0 0.0
      %1479 = vmatpush1.msra.mxu0 0.0
      %1480 = vmatprep.subr.mxu0 0.0
      %1481 = vmatpush1.msra.mxu0 0.0
      %1482 = vmatprep.subr.mxu0 0.0
      %1483 = vmatpush1.msra.mxu0 0.0
      %1484 = vmatprep.subr.mxu0 0.0
      %1485 = vmatpush1.msra.mxu0 0.0
      %1486 = vmatprep.subr.mxu0 0.0
      %1487 = vmatpush1.msra.mxu0 0.0
      %1488 = vmatprep.subr.mxu0 0.0
      %1489 = vmatpush1.msra.mxu0 0.0
      %1490 = vmatprep.subr.mxu0 0.0
      %1491 = vmatpush1.msra.mxu0 0.0
      %1492 = vmatprep.subr.mxu0 0.0
      %1493 = vmatpush1.msra.mxu0 0.0
      %1494 = vmatprep.subr.mxu0 0.0
      %1495 = vmatpush1.msra.mxu0 0.0
      %1496 = vmatprep.subr.mxu0 0.0
      %1497 = vmatpush1.msra.mxu0 0.0
      %1498 = vmatprep.mubr.f32.mxu0 0.0
      %1499 = vmatmul.mubr.f32.gmra.mrb[0].mxu0 %v1361
      %v1500 = vpop.f32.mrb[0].mxu0
      %v1501 = vadd.f32 %v1430, %v1500
      %v1502 = vpop.f32.mrb[0].mxu0
      %v1503 = vadd.f32 %v1432, %v1502
      %1504 = vdwg.mxu0
      %v1505 = vld [vmem:[%s5] sm:$0x3]
      %v1506 = vld [vmem:[%s6] sm:$0x3]
      %vm1507 = vcmask 1041408
      %v1508 = vsel %vm1507, %v1501, 0.0
      %v1509 = vsel %vm1507, %v1503, 0.0
      %v1510 = vadd.f32 %v1508, %v1509
      %1511 = vadd.xlane.f32.xlu0 %v1510
      %v1512 = vpop.xlane.xlu0 %1511
      %v1513 = vsel %vm1507, %v1512, 0.0
      %v1514 = vrot.slane %v1513, 4
      %v1515 = vadd.f32 %v1513, %v1514
      %v1516 = vrot.slane %v1515, 2
      %v1517 = vadd.f32 %v1515, %v1516
      %v1518 = vrot.slane %v1517, 1
      %v1519 = vadd.f32 %v1517, %v1518
      %v1520 = vmul.f32 %v1519, 0.001953125
      %v1521 = vsub.f32 %v1501, %v1520
      %v1522 = vsub.f32 %v1503, %v1520
      %v1523 = vmul.f32 %v1521, %v1521
      %v1524 = vmul.f32 %v1522, %v1522
      %v1525 = vsel %vm1507, %v1523, 0.0
      %v1526 = vsel %vm1507, %v1524, 0.0
      %v1527 = vadd.f32 %v1525, %v1526
      %1528 = vadd.xlane.f32.xlu0 %v1527
      %v1529 = vpop.xlane.xlu0 %1528
      %v1530 = vsel %vm1507, %v1529, 0.0
      %v1531 = vrot.slane %v1530, 4
      %v1532 = vadd.f32 %v1530, %v1531
      %v1533 = vrot.slane %v1532, 2
      %v1534 = vadd.f32 %v1532, %v1533
      %v1535 = vrot.slane %v1534, 1
      %v1536 = vadd.f32 %v1534, %v1535
      %v1537 = vmul.f32 %v1536, 0.001953125
      %v1538 = vadd.f32 %v1537, 1e-06
      %v1539 = vrsqrt.pop %v1538
      %v1540 = vmul.f32 %v1521, %v1539
      %v1541 = vmul.f32 %v1522, %v1539
      %1543 = vset.pattern.permute.xlu0 0
      %1544 = vperm.xlu0 %1543, %v1505
      %v1545 = vpop.permute.xlu0 %1544
      %v1547 = vmul.f32 %v1540, %v1545
      %v1548 = vmul.f32 %v1541, %v1545
      %1550 = vset.pattern.permute.xlu0 0
      %1551 = vperm.xlu0 %1550, %v1506
      %v1552 = vpop.permute.xlu0 %1551
      %v1554 = vadd.f32 %v1547, %v1552
      %v1555 = vadd.f32 %v1548, %v1552
      %v1556 = vsub.f32 0.0, %v1554
      %v1557 = vsub.f32 0.0, %v1555
      %v1558 = vmul.f32 %v1556, 1.442695
      %v1559 = vpow.pop %v1558
      %v1560 = vmul.f32 %v1557, 1.442695
      %v1561 = vpow.pop %v1560
      %v1562 = vadd.f32 %v1559, 1.0
      %v1563 = vadd.f32 %v1561, 1.0
      %v1564 = vrcp.pop %v1562
      %v1565 = vmul.f32 1.0, %v1564
      %v1566 = vrcp.pop %v1563
      %v1567 = vmul.f32 1.0, %v1566
      %v1568 = vmul.f32 %v1554, %v1565
      %v1569 = vmul.f32 %v1555, %v1567
      %v1570 = vld [vmem:[%s7] sm:$0x3]
      %v1571 = vld [vmem:[%s8] sm:$0x3]
      %1572 = vrot.lane.b32.xlu0 %v1568, 17
      %v1573 = vpop.permute.xlu0 %1572
      %1574 = vrot.lane.b32.xlu0 %v1569, 17
      %v1575 = vpop.permute.xlu0 %1574
      %v1576 = vsel %vm1056, %v1573, %v1575
      %v1577 = vsel %vm1056, %v1575, %v1573
      %v1578 = vsel %vm1067, %v1577, 0.0
      %v1579 = vsel %vm1068, %v1576, 0.0
      %1580 = vrot.lane.b32.xlu0 %v1568, 16
      %v1581 = vpop.permute.xlu0 %1580
      %1582 = vrot.lane.b32.xlu0 %v1569, 16
      %v1583 = vpop.permute.xlu0 %1582
      %v1584 = vsel %vm1093, %v1581, %v1583
      %v1585 = vsel %vm1093, %v1583, %v1581
      %v1586 = vsel %vm1104, %v1585, 0.0
      %v1587 = vsel %vm1105, %v1584, 0.0
      %1588 = vrot.lane.b32.xlu0 %v1568, 15
      %v1589 = vpop.permute.xlu0 %1588
      %1590 = vrot.lane.b32.xlu0 %v1569, 15
      %v1591 = vpop.permute.xlu0 %1590
      %v1592 = vsel %vm1130, %v1589, %v1591
      %v1593 = vsel %vm1130, %v1591, %v1589
      %v1594 = vsel %vm1141, %v1593, 0.0
      %v1595 = vsel %vm1142, %v1592, 0.0
      %1596 = vrot.lane.b32.xlu0 %v1568, 1
      %v1597 = vpop.permute.xlu0 %1596
      %1598 = vrot.lane.b32.xlu0 %v1569, 1
      %v1599 = vpop.permute.xlu0 %1598
      %v1600 = vsel %vm1167, %v1597, %v1599
      %v1601 = vsel %vm1167, %v1599, %v1597
      %v1602 = vsel %vm1178, %v1601, 0.0
      %v1603 = vsel %vm1179, %v1600, 0.0
      %1604 = vrot.lane.b32.xlu0 %v1568, 127
      %v1605 = vpop.permute.xlu0 %1604
      %1606 = vrot.lane.b32.xlu0 %v1569, 127
      %v1607 = vpop.permute.xlu0 %1606
      %v1608 = vsel %vm1204, %v1605, %v1607
      %v1609 = vsel %vm1204, %v1607, %v1605
      %v1610 = vsel %vm1215, %v1608, 0.0
      %v1611 = vsel %vm1216, %v1609, 0.0
      %1612 = vrot.lane.b32.xlu0 %v1568, 113
      %v1613 = vpop.permute.xlu0 %1612
      %1614 = vrot.lane.b32.xlu0 %v1569, 113
      %v1615 = vpop.permute.xlu0 %1614
      %v1616 = vsel %vm1241, %v1613, %v1615
      %v1617 = vsel %vm1241, %v1615, %v1613
      %v1618 = vsel %vm1252, %v1616, 0.0
      %v1619 = vsel %vm1253, %v1617, 0.0
      %1620 = vrot.lane.b32.xlu0 %v1568, 112
      %v1621 = vpop.permute.xlu0 %1620
      %1622 = vrot.lane.b32.xlu0 %v1569, 112
      %v1623 = vpop.permute.xlu0 %1622
      %v1624 = vsel %vm1278, %v1621, %v1623
      %v1625 = vsel %vm1278, %v1623, %v1621
      %v1626 = vsel %vm1289, %v1624, 0.0
      %v1627 = vsel %vm1290, %v1625, 0.0
      %1628 = vrot.lane.b32.xlu0 %v1568, 111
      %v1629 = vpop.permute.xlu0 %1628
      %1630 = vrot.lane.b32.xlu0 %v1569, 111
      %v1631 = vpop.permute.xlu0 %1630
      %v1632 = vsel %vm1315, %v1629, %v1631
      %v1633 = vsel %vm1315, %v1631, %v1629
      %v1634 = vsel %vm1326, %v1632, 0.0
      %v1635 = vsel %vm1327, %v1633, 0.0
      %v1638 = vrot.slane %v1586, 6
      %v1639 = vrot.slane %v1587, 6
      %v1644 = vrot.slane %v1594, 4
      %v1645 = vrot.slane %v1595, 4
      %v1650 = vrot.slane %v1602, 2
      %v1651 = vrot.slane %v1603, 2
      %v1656 = vrot.slane %v1610, 6
      %v1657 = vrot.slane %v1611, 6
      %v1662 = vrot.slane %v1618, 4
      %v1663 = vrot.slane %v1619, 4
      %v1668 = vrot.slane %v1626, 2
      %v1669 = vrot.slane %v1627, 2
      %v1672 = vsel %vm1507, %v1578, %v1638
      %v1673 = vsel %vm1507, %v1579, %v1639
      %vm1674 = vcmask 1043456
      %v1675 = vsel %vm1674, %v1672, %v1644
      %v1676 = vsel %vm1674, %v1673, %v1645
      %vm1677 = vcmask 1045504
      %v1678 = vsel %vm1677, %v1675, %v1650
      %v1679 = vsel %vm1677, %v1676, %v1651
      %v1680 = vsel %vm1507, %v1568, %v1656
      %v1681 = vsel %vm1507, %v1569, %v1657
      %v1682 = vsel %vm1674, %v1680, %v1662
      %v1683 = vsel %vm1674, %v1681, %v1663
      %v1684 = vsel %vm1677, %v1682, %v1668
      %v1685 = vsel %vm1677, %v1683, %v1669
      %1687 = vset.pattern.permute.xlu0 0
      %1688 = vperm.xlu0 %1687, %v1571
      %v1689 = vpop.permute.xlu0 %1688
      %vm1691 = vcmask 146432
      %v1693 = vsel %vm1691, %v1570, 0
      %v1696 = vsel %vm1507, %v1634, 0
      %v1699 = vsel %vm1507, %v1635, 0
      %1701 = vmatprep.subr.mxu0 %v1679
      %1702 = vmatpush1.msra.mxu0 %v1678
      %1703 = vmatprep.subr.mxu0 %v1685
      %1704 = vmatpush1.msra.mxu0 %v1684
      %1705 = vmatprep.subr.mxu0 %v1699
      %1706 = vmatpush1.msra.mxu0 %v1696
      %1707 = vmatprep.subr.mxu0 0.0
      %1708 = vmatpush1.msra.mxu0 0.0
      %1709 = vmatprep.subr.mxu0 0.0
      %1710 = vmatpush1.msra.mxu0 0.0
      %1711 = vmatprep.subr.mxu0 0.0
      %1712 = vmatpush1.msra.mxu0 0.0
      %1713 = vmatprep.subr.mxu0 0.0
      %1714 = vmatpush1.msra.mxu0 0.0
      %1715 = vmatprep.subr.mxu0 0.0
      %1716 = vmatpush1.msra.mxu0 0.0
      %1717 = vmatprep.subr.mxu0 0.0
      %1718 = vmatpush1.msra.mxu0 0.0
      %1719 = vmatprep.subr.mxu0 0.0
      %1720 = vmatpush1.msra.mxu0 0.0
      %1721 = vmatprep.subr.mxu0 0.0
      %1722 = vmatpush1.msra.mxu0 0.0
      %1723 = vmatprep.subr.mxu0 0.0
      %1724 = vmatpush1.msra.mxu0 0.0
      %1725 = vmatprep.subr.mxu0 0.0
      %1726 = vmatpush1.msra.mxu0 0.0
      %1727 = vmatprep.subr.mxu0 0.0
      %1728 = vmatpush1.msra.mxu0 0.0
      %1729 = vmatprep.subr.mxu0 0.0
      %1730 = vmatpush1.msra.mxu0 0.0
      %1731 = vmatprep.subr.mxu0 0.0
      %1732 = vmatpush1.msra.mxu0 0.0
      %1733 = vmatprep.subr.mxu0 0.0
      %1734 = vmatpush1.msra.mxu0 0.0
      %1735 = vmatprep.subr.mxu0 0.0
      %1736 = vmatpush1.msra.mxu0 0.0
      %1737 = vmatprep.subr.mxu0 0.0
      %1738 = vmatpush1.msra.mxu0 0.0
      %1739 = vmatprep.subr.mxu0 0.0
      %1740 = vmatpush1.msra.mxu0 0.0
      %1741 = vmatprep.subr.mxu0 0.0
      %1742 = vmatpush1.msra.mxu0 0.0
      %1743 = vmatprep.subr.mxu0 0.0
      %1744 = vmatpush1.msra.mxu0 0.0
      %1745 = vmatprep.subr.mxu0 0.0
      %1746 = vmatpush1.msra.mxu0 0.0
      %1747 = vmatprep.subr.mxu0 0.0
      %1748 = vmatpush1.msra.mxu0 0.0
      %1749 = vmatprep.subr.mxu0 0.0
      %1750 = vmatpush1.msra.mxu0 0.0
      %1751 = vmatprep.subr.mxu0 0.0
      %1752 = vmatpush1.msra.mxu0 0.0
      %1753 = vmatprep.subr.mxu0 0.0
      %1754 = vmatpush1.msra.mxu0 0.0
      %1755 = vmatprep.subr.mxu0 0.0
      %1756 = vmatpush1.msra.mxu0 0.0
      %1757 = vmatprep.subr.mxu0 0.0
      %1758 = vmatpush1.msra.mxu0 0.0
      %1759 = vmatprep.subr.mxu0 0.0
      %1760 = vmatpush1.msra.mxu0 0.0
      %1761 = vmatprep.subr.mxu0 0.0
      %1762 = vmatpush1.msra.mxu0 0.0
      %1763 = vmatprep.subr.mxu0 0.0
      %1764 = vmatpush1.msra.mxu0 0.0
      %1765 = vmatprep.mubr.f32.mxu0 0.0
      %1766 = vmatmul.mubr.f32.gmra.mrb[0].mxu0 %v1693
      %v1767 = vpop.f32.mrb[0].mxu0
      %v1768 = vadd.f32 %v1689, %v1767
      %v1769 = vpop.f32.mrb[0].mxu0
      %v1770 = vadd.f32 %v1689, %v1769
      %1771 = vdwg.mxu0
      %v1772 = vld [vmem:[%s9] sm:$0x3]
      %v1773 = vld [vmem:[%s10] sm:$0x3]
      %1775 = vset.pattern.permute.xlu0 0
      %1776 = vperm.xlu0 %1775, %v1773
      %v1777 = vpop.permute.xlu0 %1776
      %v1780 = vsel %vm1360, %v1772, 0
      %1782 = vmatprep.subr.mxu0 %v841
      %1783 = vmatpush1.msra.mxu0 %v840
      %1784 = vmatprep.subr.mxu0 %v843
      %1785 = vmatpush1.msra.mxu0 %v842
      %1786 = vmatprep.subr.mxu0 %v845
      %1787 = vmatpush1.msra.mxu0 %v844
      %1788 = vmatprep.subr.mxu0 %v847
      %1789 = vmatpush1.msra.mxu0 %v846
      %1790 = vmatprep.subr.mxu0 0.0
      %1791 = vmatpush1.msra.mxu0 0.0
      %1792 = vmatprep.subr.mxu0 0.0
      %1793 = vmatpush1.msra.mxu0 0.0
      %1794 = vmatprep.subr.mxu0 0.0
      %1795 = vmatpush1.msra.mxu0 0.0
      %1796 = vmatprep.subr.mxu0 0.0
      %1797 = vmatpush1.msra.mxu0 0.0
      %1798 = vmatprep.subr.mxu0 0.0
      %1799 = vmatpush1.msra.mxu0 0.0
      %1800 = vmatprep.subr.mxu0 0.0
      %1801 = vmatpush1.msra.mxu0 0.0
      %1802 = vmatprep.subr.mxu0 0.0
      %1803 = vmatpush1.msra.mxu0 0.0
      %1804 = vmatprep.subr.mxu0 0.0
      %1805 = vmatpush1.msra.mxu0 0.0
      %1806 = vmatprep.subr.mxu0 0.0
      %1807 = vmatpush1.msra.mxu0 0.0
      %1808 = vmatprep.subr.mxu0 0.0
      %1809 = vmatpush1.msra.mxu0 0.0
      %1810 = vmatprep.subr.mxu0 0.0
      %1811 = vmatpush1.msra.mxu0 0.0
      %1812 = vmatprep.subr.mxu0 0.0
      %1813 = vmatpush1.msra.mxu0 0.0
      %1814 = vmatprep.subr.mxu0 0.0
      %1815 = vmatpush1.msra.mxu0 0.0
      %1816 = vmatprep.subr.mxu0 0.0
      %1817 = vmatpush1.msra.mxu0 0.0
      %1818 = vmatprep.subr.mxu0 0.0
      %1819 = vmatpush1.msra.mxu0 0.0
      %1820 = vmatprep.subr.mxu0 0.0
      %1821 = vmatpush1.msra.mxu0 0.0
      %1822 = vmatprep.subr.mxu0 0.0
      %1823 = vmatpush1.msra.mxu0 0.0
      %1824 = vmatprep.subr.mxu0 0.0
      %1825 = vmatpush1.msra.mxu0 0.0
      %1826 = vmatprep.subr.mxu0 0.0
      %1827 = vmatpush1.msra.mxu0 0.0
      %1828 = vmatprep.subr.mxu0 0.0
      %1829 = vmatpush1.msra.mxu0 0.0
      %1830 = vmatprep.subr.mxu0 0.0
      %1831 = vmatpush1.msra.mxu0 0.0
      %1832 = vmatprep.subr.mxu0 0.0
      %1833 = vmatpush1.msra.mxu0 0.0
      %1834 = vmatprep.subr.mxu0 0.0
      %1835 = vmatpush1.msra.mxu0 0.0
      %1836 = vmatprep.subr.mxu0 0.0
      %1837 = vmatpush1.msra.mxu0 0.0
      %1838 = vmatprep.subr.mxu0 0.0
      %1839 = vmatpush1.msra.mxu0 0.0
      %1840 = vmatprep.subr.mxu0 0.0
      %1841 = vmatpush1.msra.mxu0 0.0
      %1842 = vmatprep.subr.mxu0 0.0
      %1843 = vmatpush1.msra.mxu0 0.0
      %1844 = vmatprep.subr.mxu0 0.0
      %1845 = vmatpush1.msra.mxu0 0.0
      %1846 = vmatprep.mubr.f32.mxu0 0.0
      %1847 = vmatmul.mubr.f32.gmra.mrb[0].mxu0 %v1780
      %v1848 = vpop.f32.mrb[0].mxu0
      %v1849 = vadd.f32 %v1777, %v1848
      %v1850 = vpop.f32.mrb[0].mxu0
      %v1851 = vadd.f32 %v1777, %v1850
      %1852 = vdwg.mxu0
      %v1853 = vadd.f32 %v1849, %v1768
      %v1854 = vadd.f32 %v1851, %v1770
      %v1855 = vld [vmem:[%s11] sm:$0x3]
      %v1856 = vld [vmem:[%s12] sm:$0x3]
      %1857 = vrot.lane.b32.xlu0 %v1853, 17
      %v1858 = vpop.permute.xlu0 %1857
      %1859 = vrot.lane.b32.xlu0 %v1854, 17
      %v1860 = vpop.permute.xlu0 %1859
      %v1861 = vsel %vm1056, %v1858, %v1860
      %v1862 = vsel %vm1056, %v1860, %v1858
      %v1863 = vsel %vm1067, %v1862, 0.0
      %v1864 = vsel %vm1068, %v1861, 0.0
      %1865 = vrot.lane.b32.xlu0 %v1853, 16
      %v1866 = vpop.permute.xlu0 %1865
      %1867 = vrot.lane.b32.xlu0 %v1854, 16
      %v1868 = vpop.permute.xlu0 %1867
      %v1869 = vsel %vm1093, %v1866, %v1868
      %v1870 = vsel %vm1093, %v1868, %v1866
      %v1871 = vsel %vm1104, %v1870, 0.0
      %v1872 = vsel %vm1105, %v1869, 0.0
      %1873 = vrot.lane.b32.xlu0 %v1853, 15
      %v1874 = vpop.permute.xlu0 %1873
      %1875 = vrot.lane.b32.xlu0 %v1854, 15
      %v1876 = vpop.permute.xlu0 %1875
      %v1877 = vsel %vm1130, %v1874, %v1876
      %v1878 = vsel %vm1130, %v1876, %v1874
      %v1879 = vsel %vm1141, %v1878, 0.0
      %v1880 = vsel %vm1142, %v1877, 0.0
      %1881 = vrot.lane.b32.xlu0 %v1853, 1
      %v1882 = vpop.permute.xlu0 %1881
      %1883 = vrot.lane.b32.xlu0 %v1854, 1
      %v1884 = vpop.permute.xlu0 %1883
      %v1885 = vsel %vm1167, %v1882, %v1884
      %v1886 = vsel %vm1167, %v1884, %v1882
      %v1887 = vsel %vm1178, %v1886, 0.0
      %v1888 = vsel %vm1179, %v1885, 0.0
      %1889 = vrot.lane.b32.xlu0 %v1853, 127
      %v1890 = vpop.permute.xlu0 %1889
      %1891 = vrot.lane.b32.xlu0 %v1854, 127
      %v1892 = vpop.permute.xlu0 %1891
      %v1893 = vsel %vm1204, %v1890, %v1892
      %v1894 = vsel %vm1204, %v1892, %v1890
      %v1895 = vsel %vm1215, %v1893, 0.0
      %v1896 = vsel %vm1216, %v1894, 0.0
      %1897 = vrot.lane.b32.xlu0 %v1853, 113
      %v1898 = vpop.permute.xlu0 %1897
      %1899 = vrot.lane.b32.xlu0 %v1854, 113
      %v1900 = vpop.permute.xlu0 %1899
      %v1901 = vsel %vm1241, %v1898, %v1900
      %v1902 = vsel %vm1241, %v1900, %v1898
      %v1903 = vsel %vm1252, %v1901, 0.0
      %v1904 = vsel %vm1253, %v1902, 0.0
      %1905 = vrot.lane.b32.xlu0 %v1853, 112
      %v1906 = vpop.permute.xlu0 %1905
      %1907 = vrot.lane.b32.xlu0 %v1854, 112
      %v1908 = vpop.permute.xlu0 %1907
      %v1909 = vsel %vm1278, %v1906, %v1908
      %v1910 = vsel %vm1278, %v1908, %v1906
      %v1911 = vsel %vm1289, %v1909, 0.0
      %v1912 = vsel %vm1290, %v1910, 0.0
      %1913 = vrot.lane.b32.xlu0 %v1853, 111
      %v1914 = vpop.permute.xlu0 %1913
      %1915 = vrot.lane.b32.xlu0 %v1854, 111
      %v1916 = vpop.permute.xlu0 %1915
      %v1917 = vsel %vm1315, %v1914, %v1916
      %v1918 = vsel %vm1315, %v1916, %v1914
      %v1919 = vsel %vm1326, %v1917, 0.0
      %v1920 = vsel %vm1327, %v1918, 0.0
      %v1923 = vrot.slane %v1871, 6
      %v1924 = vrot.slane %v1872, 6
      %v1929 = vrot.slane %v1879, 4
      %v1930 = vrot.slane %v1880, 4
      %v1935 = vrot.slane %v1887, 2
      %v1936 = vrot.slane %v1888, 2
      %v1941 = vrot.slane %v1895, 6
      %v1942 = vrot.slane %v1896, 6
      %v1947 = vrot.slane %v1903, 4
      %v1948 = vrot.slane %v1904, 4
      %v1953 = vrot.slane %v1911, 2
      %v1954 = vrot.slane %v1912, 2
      %v1957 = vsel %vm1507, %v1863, %v1923
      %v1958 = vsel %vm1507, %v1864, %v1924
      %v1959 = vsel %vm1674, %v1957, %v1929
      %v1960 = vsel %vm1674, %v1958, %v1930
      %v1961 = vsel %vm1677, %v1959, %v1935
      %v1962 = vsel %vm1677, %v1960, %v1936
      %v1963 = vsel %vm1507, %v1853, %v1941
      %v1964 = vsel %vm1507, %v1854, %v1942
      %v1965 = vsel %vm1674, %v1963, %v1947
      %v1966 = vsel %vm1674, %v1964, %v1948
      %v1967 = vsel %vm1677, %v1965, %v1953
      %v1968 = vsel %vm1677, %v1966, %v1954
      %1970 = vset.pattern.permute.xlu0 0
      %1971 = vperm.xlu0 %1970, %v1856
      %v1972 = vpop.permute.xlu0 %1971
      %v1975 = vsel %vm1691, %v1855, 0
      %v1978 = vsel %vm1507, %v1919, 0
      %v1981 = vsel %vm1507, %v1920, 0
      %1983 = vmatprep.subr.mxu0 %v1962
      %1984 = vmatpush1.msra.mxu0 %v1961
      %1985 = vmatprep.subr.mxu0 %v1968
      %1986 = vmatpush1.msra.mxu0 %v1967
      %1987 = vmatprep.subr.mxu0 %v1981
      %1988 = vmatpush1.msra.mxu0 %v1978
      %1989 = vmatprep.subr.mxu0 0.0
      %1990 = vmatpush1.msra.mxu0 0.0
      %1991 = vmatprep.subr.mxu0 0.0
      %1992 = vmatpush1.msra.mxu0 0.0
      %1993 = vmatprep.subr.mxu0 0.0
      %1994 = vmatpush1.msra.mxu0 0.0
      %1995 = vmatprep.subr.mxu0 0.0
      %1996 = vmatpush1.msra.mxu0 0.0
      %1997 = vmatprep.subr.mxu0 0.0
      %1998 = vmatpush1.msra.mxu0 0.0
      %1999 = vmatprep.subr.mxu0 0.0
      %2000 = vmatpush1.msra.mxu0 0.0
      %2001 = vmatprep.subr.mxu0 0.0
      %2002 = vmatpush1.msra.mxu0 0.0
      %2003 = vmatprep.subr.mxu0 0.0
      %2004 = vmatpush1.msra.mxu0 0.0
      %2005 = vmatprep.subr.mxu0 0.0
      %2006 = vmatpush1.msra.mxu0 0.0
      %2007 = vmatprep.subr.mxu0 0.0
      %2008 = vmatpush1.msra.mxu0 0.0
      %2009 = vmatprep.subr.mxu0 0.0
      %2010 = vmatpush1.msra.mxu0 0.0
      %2011 = vmatprep.subr.mxu0 0.0
      %2012 = vmatpush1.msra.mxu0 0.0
      %2013 = vmatprep.subr.mxu0 0.0
      %2014 = vmatpush1.msra.mxu0 0.0
      %2015 = vmatprep.subr.mxu0 0.0
      %2016 = vmatpush1.msra.mxu0 0.0
      %2017 = vmatprep.subr.mxu0 0.0
      %2018 = vmatpush1.msra.mxu0 0.0
      %2019 = vmatprep.subr.mxu0 0.0
      %2020 = vmatpush1.msra.mxu0 0.0
      %2021 = vmatprep.subr.mxu0 0.0
      %2022 = vmatpush1.msra.mxu0 0.0
      %2023 = vmatprep.subr.mxu0 0.0
      %2024 = vmatpush1.msra.mxu0 0.0
      %2025 = vmatprep.subr.mxu0 0.0
      %2026 = vmatpush1.msra.mxu0 0.0
      %2027 = vmatprep.subr.mxu0 0.0
      %2028 = vmatpush1.msra.mxu0 0.0
      %2029 = vmatprep.subr.mxu0 0.0
      %2030 = vmatpush1.msra.mxu0 0.0
      %2031 = vmatprep.subr.mxu0 0.0
      %2032 = vmatpush1.msra.mxu0 0.0
      %2033 = vmatprep.subr.mxu0 0.0
      %2034 = vmatpush1.msra.mxu0 0.0
      %2035 = vmatprep.subr.mxu0 0.0
      %2036 = vmatpush1.msra.mxu0 0.0
      %2037 = vmatprep.subr.mxu0 0.0
      %2038 = vmatpush1.msra.mxu0 0.0
      %2039 = vmatprep.subr.mxu0 0.0
      %2040 = vmatpush1.msra.mxu0 0.0
      %2041 = vmatprep.subr.mxu0 0.0
      %2042 = vmatpush1.msra.mxu0 0.0
      %2043 = vmatprep.subr.mxu0 0.0
      %2044 = vmatpush1.msra.mxu0 0.0
      %2045 = vmatprep.subr.mxu0 0.0
      %2046 = vmatpush1.msra.mxu0 0.0
      %2047 = vmatprep.mubr.f32.mxu0 0.0
      %2048 = vmatmul.mubr.f32.gmra.mrb[0].mxu0 %v1975
      %v2049 = vpop.f32.mrb[0].mxu0
      %v2050 = vadd.f32 %v1972, %v2049
      %v2051 = vpop.f32.mrb[0].mxu0
      %v2052 = vadd.f32 %v1972, %v2051
      %2053 = vdwg.mxu0
      %v2054 = vld [vmem:[%s13] sm:$0x3]
      %v2055 = vld [vmem:[%s14] sm:$0x3]
      %2056 = vrot.lane.b32.xlu0 %v2050, 17
      %v2057 = vpop.permute.xlu0 %2056
      %2058 = vrot.lane.b32.xlu0 %v2052, 17
      %v2059 = vpop.permute.xlu0 %2058
      %v2060 = vsel %vm1056, %v2057, %v2059
      %v2061 = vsel %vm1056, %v2059, %v2057
      %v2062 = vsel %vm1067, %v2061, 0.0
      %v2063 = vsel %vm1068, %v2060, 0.0
      %2064 = vrot.lane.b32.xlu0 %v2050, 16
      %v2065 = vpop.permute.xlu0 %2064
      %2066 = vrot.lane.b32.xlu0 %v2052, 16
      %v2067 = vpop.permute.xlu0 %2066
      %v2068 = vsel %vm1093, %v2065, %v2067
      %v2069 = vsel %vm1093, %v2067, %v2065
      %v2070 = vsel %vm1104, %v2069, 0.0
      %v2071 = vsel %vm1105, %v2068, 0.0
      %2072 = vrot.lane.b32.xlu0 %v2050, 15
      %v2073 = vpop.permute.xlu0 %2072
      %2074 = vrot.lane.b32.xlu0 %v2052, 15
      %v2075 = vpop.permute.xlu0 %2074
      %v2076 = vsel %vm1130, %v2073, %v2075
      %v2077 = vsel %vm1130, %v2075, %v2073
      %v2078 = vsel %vm1141, %v2077, 0.0
      %v2079 = vsel %vm1142, %v2076, 0.0
      %2080 = vrot.lane.b32.xlu0 %v2050, 1
      %v2081 = vpop.permute.xlu0 %2080
      %2082 = vrot.lane.b32.xlu0 %v2052, 1
      %v2083 = vpop.permute.xlu0 %2082
      %v2084 = vsel %vm1167, %v2081, %v2083
      %v2085 = vsel %vm1167, %v2083, %v2081
      %v2086 = vsel %vm1178, %v2085, 0.0
      %v2087 = vsel %vm1179, %v2084, 0.0
      %2088 = vrot.lane.b32.xlu0 %v2050, 127
      %v2089 = vpop.permute.xlu0 %2088
      %2090 = vrot.lane.b32.xlu0 %v2052, 127
      %v2091 = vpop.permute.xlu0 %2090
      %v2092 = vsel %vm1204, %v2089, %v2091
      %v2093 = vsel %vm1204, %v2091, %v2089
      %v2094 = vsel %vm1215, %v2092, 0.0
      %v2095 = vsel %vm1216, %v2093, 0.0
      %2096 = vrot.lane.b32.xlu0 %v2050, 113
      %v2097 = vpop.permute.xlu0 %2096
      %2098 = vrot.lane.b32.xlu0 %v2052, 113
      %v2099 = vpop.permute.xlu0 %2098
      %v2100 = vsel %vm1241, %v2097, %v2099
      %v2101 = vsel %vm1241, %v2099, %v2097
      %v2102 = vsel %vm1252, %v2100, 0.0
      %v2103 = vsel %vm1253, %v2101, 0.0
      %2104 = vrot.lane.b32.xlu0 %v2050, 112
      %v2105 = vpop.permute.xlu0 %2104
      %2106 = vrot.lane.b32.xlu0 %v2052, 112
      %v2107 = vpop.permute.xlu0 %2106
      %v2108 = vsel %vm1278, %v2105, %v2107
      %v2109 = vsel %vm1278, %v2107, %v2105
      %v2110 = vsel %vm1289, %v2108, 0.0
      %v2111 = vsel %vm1290, %v2109, 0.0
      %2112 = vrot.lane.b32.xlu0 %v2050, 111
      %v2113 = vpop.permute.xlu0 %2112
      %2114 = vrot.lane.b32.xlu0 %v2052, 111
      %v2115 = vpop.permute.xlu0 %2114
      %v2116 = vsel %vm1315, %v2113, %v2115
      %v2117 = vsel %vm1315, %v2115, %v2113
      %v2118 = vsel %vm1326, %v2116, 0.0
      %v2119 = vsel %vm1327, %v2117, 0.0
      %v2122 = vrot.slane %v2070, 6
      %v2123 = vrot.slane %v2071, 6
      %v2128 = vrot.slane %v2078, 4
      %v2129 = vrot.slane %v2079, 4
      %v2134 = vrot.slane %v2086, 2
      %v2135 = vrot.slane %v2087, 2
      %v2140 = vrot.slane %v2094, 6
      %v2141 = vrot.slane %v2095, 6
      %v2146 = vrot.slane %v2102, 4
      %v2147 = vrot.slane %v2103, 4
      %v2152 = vrot.slane %v2110, 2
      %v2153 = vrot.slane %v2111, 2
      %v2156 = vsel %vm1507, %v2062, %v2122
      %v2157 = vsel %vm1507, %v2063, %v2123
      %v2158 = vsel %vm1674, %v2156, %v2128
      %v2159 = vsel %vm1674, %v2157, %v2129
      %v2160 = vsel %vm1677, %v2158, %v2134
      %v2161 = vsel %vm1677, %v2159, %v2135
      %v2162 = vsel %vm1507, %v2050, %v2140
      %v2163 = vsel %vm1507, %v2052, %v2141
      %v2164 = vsel %vm1674, %v2162, %v2146
      %v2165 = vsel %vm1674, %v2163, %v2147
      %v2166 = vsel %vm1677, %v2164, %v2152
      %v2167 = vsel %vm1677, %v2165, %v2153
      %2169 = vset.pattern.permute.xlu0 0
      %2170 = vperm.xlu0 %2169, %v2055
      %v2171 = vpop.permute.xlu0 %2170
      %v2174 = vsel %vm1691, %v2054, 0
      %v2177 = vsel %vm1507, %v2118, 0
      %v2180 = vsel %vm1507, %v2119, 0
      %2182 = vmatprep.subr.mxu0 %v2161
      %2183 = vmatpush1.msra.mxu0 %v2160
      %2184 = vmatprep.subr.mxu0 %v2167
      %2185 = vmatpush1.msra.mxu0 %v2166
      %2186 = vmatprep.subr.mxu0 %v2180
      %2187 = vmatpush1.msra.mxu0 %v2177
      %2188 = vmatprep.subr.mxu0 0.0
      %2189 = vmatpush1.msra.mxu0 0.0
      %2190 = vmatprep.subr.mxu0 0.0
      %2191 = vmatpush1.msra.mxu0 0.0
      %2192 = vmatprep.subr.mxu0 0.0
      %2193 = vmatpush1.msra.mxu0 0.0
      %2194 = vmatprep.subr.mxu0 0.0
      %2195 = vmatpush1.msra.mxu0 0.0
      %2196 = vmatprep.subr.mxu0 0.0
      %2197 = vmatpush1.msra.mxu0 0.0
      %2198 = vmatprep.subr.mxu0 0.0
      %2199 = vmatpush1.msra.mxu0 0.0
      %2200 = vmatprep.subr.mxu0 0.0
      %2201 = vmatpush1.msra.mxu0 0.0
      %2202 = vmatprep.subr.mxu0 0.0
      %2203 = vmatpush1.msra.mxu0 0.0
      %2204 = vmatprep.subr.mxu0 0.0
      %2205 = vmatpush1.msra.mxu0 0.0
      %2206 = vmatprep.subr.mxu0 0.0
      %2207 = vmatpush1.msra.mxu0 0.0
      %2208 = vmatprep.subr.mxu0 0.0
      %2209 = vmatpush1.msra.mxu0 0.0
      %2210 = vmatprep.subr.mxu0 0.0
      %2211 = vmatpush1.msra.mxu0 0.0
      %2212 = vmatprep.subr.mxu0 0.0
      %2213 = vmatpush1.msra.mxu0 0.0
      %2214 = vmatprep.subr.mxu0 0.0
      %2215 = vmatpush1.msra.mxu0 0.0
      %2216 = vmatprep.subr.mxu0 0.0
      %2217 = vmatpush1.msra.mxu0 0.0
      %2218 = vmatprep.subr.mxu0 0.0
      %2219 = vmatpush1.msra.mxu0 0.0
      %2220 = vmatprep.subr.mxu0 0.0
      %2221 = vmatpush1.msra.mxu0 0.0
      %2222 = vmatprep.subr.mxu0 0.0
      %2223 = vmatpush1.msra.mxu0 0.0
      %2224 = vmatprep.subr.mxu0 0.0
      %2225 = vmatpush1.msra.mxu0 0.0
      %2226 = vmatprep.subr.mxu0 0.0
      %2227 = vmatpush1.msra.mxu0 0.0
      %2228 = vmatprep.subr.mxu0 0.0
      %2229 = vmatpush1.msra.mxu0 0.0
      %2230 = vmatprep.subr.mxu0 0.0
      %2231 = vmatpush1.msra.mxu0 0.0
      %2232 = vmatprep.subr.mxu0 0.0
      %2233 = vmatpush1.msra.mxu0 0.0
      %2234 = vmatprep.subr.mxu0 0.0
      %2235 = vmatpush1.msra.mxu0 0.0
      %2236 = vmatprep.subr.mxu0 0.0
      %2237 = vmatpush1.msra.mxu0 0.0
      %2238 = vmatprep.subr.mxu0 0.0
      %2239 = vmatpush1.msra.mxu0 0.0
      %2240 = vmatprep.subr.mxu0 0.0
      %2241 = vmatpush1.msra.mxu0 0.0
      %2242 = vmatprep.subr.mxu0 0.0
      %2243 = vmatpush1.msra.mxu0 0.0
      %2244 = vmatprep.subr.mxu0 0.0
      %2245 = vmatpush1.msra.mxu0 0.0
      %2246 = vmatprep.mubr.f32.mxu0 0.0
      %2247 = vmatmul.mubr.f32.gmra.mrb[0].mxu0 %v2174
      %v2248 = vpop.f32.mrb[0].mxu0
      %v2249 = vadd.f32 %v2171, %v2248
      %v2250 = vpop.f32.mrb[0].mxu0
      %v2251 = vadd.f32 %v2171, %v2250
      %2252 = vdwg.mxu0
      %v2253 = vld [vmem:[%s15] sm:$0x3]
      %v2254 = vld [vmem:[%s16] sm:$0x3]
      %v2255 = vsel %vm1507, %v2249, 0.0
      %v2256 = vsel %vm1507, %v2251, 0.0
      %v2257 = vadd.f32 %v2255, %v2256
      %2258 = vadd.xlane.f32.xlu0 %v2257
      %v2259 = vpop.xlane.xlu0 %2258
      %v2260 = vsel %vm1507, %v2259, 0.0
      %v2261 = vrot.slane %v2260, 4
      %v2262 = vadd.f32 %v2260, %v2261
      %v2263 = vrot.slane %v2262, 2
      %v2264 = vadd.f32 %v2262, %v2263
      %v2265 = vrot.slane %v2264, 1
      %v2266 = vadd.f32 %v2264, %v2265
      %v2267 = vmul.f32 %v2266, 0.001953125
      %v2268 = vsub.f32 %v2249, %v2267
      %v2269 = vsub.f32 %v2251, %v2267
      %v2270 = vmul.f32 %v2268, %v2268
      %v2271 = vmul.f32 %v2269, %v2269
      %v2272 = vsel %vm1507, %v2270, 0.0
      %v2273 = vsel %vm1507, %v2271, 0.0
      %v2274 = vadd.f32 %v2272, %v2273
      %2275 = vadd.xlane.f32.xlu0 %v2274
      %v2276 = vpop.xlane.xlu0 %2275
      %v2277 = vsel %vm1507, %v2276, 0.0
      %v2278 = vrot.slane %v2277, 4
      %v2279 = vadd.f32 %v2277, %v2278
      %v2280 = vrot.slane %v2279, 2
      %v2281 = vadd.f32 %v2279, %v2280
      %v2282 = vrot.slane %v2281, 1
      %v2283 = vadd.f32 %v2281, %v2282
      %v2284 = vmul.f32 %v2283, 0.001953125
      %v2285 = vadd.f32 %v2284, 1e-06
      %v2286 = vrsqrt.pop %v2285
      %v2287 = vmul.f32 %v2268, %v2286
      %v2288 = vmul.f32 %v2269, %v2286
      %2290 = vset.pattern.permute.xlu0 0
      %2291 = vperm.xlu0 %2290, %v2253
      %v2292 = vpop.permute.xlu0 %2291
      %v2294 = vmul.f32 %v2287, %v2292
      %v2295 = vmul.f32 %v2288, %v2292
      %2297 = vset.pattern.permute.xlu0 0
      %2298 = vperm.xlu0 %2297, %v2254
      %v2299 = vpop.permute.xlu0 %2298
      %v2301 = vadd.f32 %v2294, %v2299
      %v2302 = vadd.f32 %v2295, %v2299
      %v2303 = vsub.f32 0.0, %v2301
      %v2304 = vsub.f32 0.0, %v2302
      %v2305 = vmul.f32 %v2303, 1.442695
      %v2306 = vpow.pop %v2305
      %v2307 = vmul.f32 %v2304, 1.442695
      %v2308 = vpow.pop %v2307
      %v2309 = vadd.f32 %v2306, 1.0
      %v2310 = vadd.f32 %v2308, 1.0
      %v2311 = vrcp.pop %v2309
      %v2312 = vmul.f32 1.0, %v2311
      %v2313 = vrcp.pop %v2310
      %v2314 = vmul.f32 1.0, %v2313
      %v2315 = vmul.f32 %v2301, %v2312
      %v2316 = vmul.f32 %v2302, %v2314
      %v2317 = vld [vmem:[%s17] sm:$0xff]
      %v2318 = vld [vmem:[%s17 + $0x8] sm:$0xff]
      %v2319 = vld [vmem:[%s17 + $0x10] sm:$0xff]
      %v2320 = vld [vmem:[%s17 + $0x18] sm:$0xff]
      %v2321 = vld [vmem:[%s18] sm:$0xff]
      %v2322 = vld [vmem:[%s18 + $0x8] sm:$0xff]
      %v2323 = vld [vmem:[%s18 + $0x10] sm:$0xff]
      %v2324 = vld [vmem:[%s18 + $0x18] sm:$0xff]
      %2325 = vrot.lane.b32.xlu0 %v2315, 17
      %v2326 = vpop.permute.xlu0 %2325
      %2327 = vrot.lane.b32.xlu0 %v2316, 17
      %v2328 = vpop.permute.xlu0 %2327
      %v2329 = vsel %vm1056, %v2326, %v2328
      %v2330 = vsel %vm1056, %v2328, %v2326
      %v2331 = vsel %vm1067, %v2330, 0.0
      %v2332 = vsel %vm1068, %v2329, 0.0
      %2333 = vrot.lane.b32.xlu0 %v2315, 16
      %v2334 = vpop.permute.xlu0 %2333
      %2335 = vrot.lane.b32.xlu0 %v2316, 16
      %v2336 = vpop.permute.xlu0 %2335
      %v2337 = vsel %vm1093, %v2334, %v2336
      %v2338 = vsel %vm1093, %v2336, %v2334
      %v2339 = vsel %vm1104, %v2338, 0.0
      %v2340 = vsel %vm1105, %v2337, 0.0
      %2341 = vrot.lane.b32.xlu0 %v2315, 15
      %v2342 = vpop.permute.xlu0 %2341
      %2343 = vrot.lane.b32.xlu0 %v2316, 15
      %v2344 = vpop.permute.xlu0 %2343
      %v2345 = vsel %vm1130, %v2342, %v2344
      %v2346 = vsel %vm1130, %v2344, %v2342
      %v2347 = vsel %vm1141, %v2346, 0.0
      %v2348 = vsel %vm1142, %v2345, 0.0
      %2349 = vrot.lane.b32.xlu0 %v2315, 1
      %v2350 = vpop.permute.xlu0 %2349
      %2351 = vrot.lane.b32.xlu0 %v2316, 1
      %v2352 = vpop.permute.xlu0 %2351
      %v2353 = vsel %vm1167, %v2350, %v2352
      %v2354 = vsel %vm1167, %v2352, %v2350
      %v2355 = vsel %vm1178, %v2354, 0.0
      %v2356 = vsel %vm1179, %v2353, 0.0
      %2357 = vrot.lane.b32.xlu0 %v2315, 127
      %v2358 = vpop.permute.xlu0 %2357
      %2359 = vrot.lane.b32.xlu0 %v2316, 127
      %v2360 = vpop.permute.xlu0 %2359
      %v2361 = vsel %vm1204, %v2358, %v2360
      %v2362 = vsel %vm1204, %v2360, %v2358
      %v2363 = vsel %vm1215, %v2361, 0.0
      %v2364 = vsel %vm1216, %v2362, 0.0
      %2365 = vrot.lane.b32.xlu0 %v2315, 113
      %v2366 = vpop.permute.xlu0 %2365
      %2367 = vrot.lane.b32.xlu0 %v2316, 113
      %v2368 = vpop.permute.xlu0 %2367
      %v2369 = vsel %vm1241, %v2366, %v2368
      %v2370 = vsel %vm1241, %v2368, %v2366
      %v2371 = vsel %vm1252, %v2369, 0.0
      %v2372 = vsel %vm1253, %v2370, 0.0
      %2373 = vrot.lane.b32.xlu0 %v2315, 112
      %v2374 = vpop.permute.xlu0 %2373
      %2375 = vrot.lane.b32.xlu0 %v2316, 112
      %v2376 = vpop.permute.xlu0 %2375
      %v2377 = vsel %vm1278, %v2374, %v2376
      %v2378 = vsel %vm1278, %v2376, %v2374
      %v2379 = vsel %vm1289, %v2377, 0.0
      %v2380 = vsel %vm1290, %v2378, 0.0
      %2381 = vrot.lane.b32.xlu0 %v2315, 111
      %v2382 = vpop.permute.xlu0 %2381
      %2383 = vrot.lane.b32.xlu0 %v2316, 111
      %v2384 = vpop.permute.xlu0 %2383
      %v2385 = vsel %vm1315, %v2382, %v2384
      %v2386 = vsel %vm1315, %v2384, %v2382
      %v2387 = vsel %vm1326, %v2385, 0.0
      %v2388 = vsel %vm1327, %v2386, 0.0
      %v2391 = vrot.slane %v2339, 6
      %v2392 = vrot.slane %v2340, 6
      %v2397 = vrot.slane %v2347, 4
      %v2398 = vrot.slane %v2348, 4
      %v2403 = vrot.slane %v2355, 2
      %v2404 = vrot.slane %v2356, 2
      %v2409 = vrot.slane %v2363, 6
      %v2410 = vrot.slane %v2364, 6
      %v2415 = vrot.slane %v2371, 4
      %v2416 = vrot.slane %v2372, 4
      %v2421 = vrot.slane %v2379, 2
      %v2422 = vrot.slane %v2380, 2
      %v2425 = vsel %vm1507, %v2331, %v2391
      %v2426 = vsel %vm1507, %v2332, %v2392
      %v2427 = vsel %vm1674, %v2425, %v2397
      %v2428 = vsel %vm1674, %v2426, %v2398
      %v2429 = vsel %vm1677, %v2427, %v2403
      %v2430 = vsel %vm1677, %v2428, %v2404
      %v2431 = vsel %vm1507, %v2315, %v2409
      %v2432 = vsel %vm1507, %v2316, %v2410
      %v2433 = vsel %vm1674, %v2431, %v2415
      %v2434 = vsel %vm1674, %v2432, %v2416
      %v2435 = vsel %vm1677, %v2433, %v2421
      %v2436 = vsel %vm1677, %v2434, %v2422
      %2438 = vset.pattern.permute.xlu0 0
      %2439 = vperm.xlu0 %2438, %v2321
      %v2440 = vpop.permute.xlu0 %2439
      %2443 = vset.pattern.permute.xlu0 0
      %2444 = vperm.xlu0 %2443, %v2322
      %v2445 = vpop.permute.xlu0 %2444
      %2448 = vset.pattern.permute.xlu0 0
      %2449 = vperm.xlu0 %2448, %v2323
      %v2450 = vpop.permute.xlu0 %2449
      %2453 = vset.pattern.permute.xlu0 0
      %2454 = vperm.xlu0 %2453, %v2324
      %v2455 = vpop.permute.xlu0 %2454
      %v2458 = vsel %vm1691, %v2317, 0
      %v2461 = vsel %vm1691, %v2318, 0
      %v2464 = vsel %vm1691, %v2319, 0
      %v2467 = vsel %vm1691, %v2320, 0
      %v2470 = vsel %vm1507, %v2387, 0
      %v2473 = vsel %vm1507, %v2388, 0
      %2475 = vmatprep.subr.mxu0 %v2430
      %2476 = vmatpush1.msra.mxu0 %v2429
      %2477 = vmatprep.subr.mxu0 %v2436
      %2478 = vmatpush1.msra.mxu0 %v2435
      %2479 = vmatprep.subr.mxu0 %v2473
      %2480 = vmatpush1.msra.mxu0 %v2470
      %2481 = vmatprep.subr.mxu0 0.0
      %2482 = vmatpush1.msra.mxu0 0.0
      %2483 = vmatprep.subr.mxu0 0.0
      %2484 = vmatpush1.msra.mxu0 0.0
      %2485 = vmatprep.subr.mxu0 0.0
      %2486 = vmatpush1.msra.mxu0 0.0
      %2487 = vmatprep.subr.mxu0 0.0
      %2488 = vmatpush1.msra.mxu0 0.0
      %2489 = vmatprep.subr.mxu0 0.0
      %2490 = vmatpush1.msra.mxu0 0.0
      %2491 = vmatprep.subr.mxu0 0.0
      %2492 = vmatpush1.msra.mxu0 0.0
      %2493 = vmatprep.subr.mxu0 0.0
      %2494 = vmatpush1.msra.mxu0 0.0
      %2495 = vmatprep.subr.mxu0 0.0
      %2496 = vmatpush1.msra.mxu0 0.0
      %2497 = vmatprep.subr.mxu0 0.0
      %2498 = vmatpush1.msra.mxu0 0.0
      %2499 = vmatprep.subr.mxu0 0.0
      %2500 = vmatpush1.msra.mxu0 0.0
      %2501 = vmatprep.subr.mxu0 0.0
      %2502 = vmatpush1.msra.mxu0 0.0
      %2503 = vmatprep.subr.mxu0 0.0
      %2504 = vmatpush1.msra.mxu0 0.0
      %2505 = vmatprep.subr.mxu0 0.0
      %2506 = vmatpush1.msra.mxu0 0.0
      %2507 = vmatprep.subr.mxu0 0.0
      %2508 = vmatpush1.msra.mxu0 0.0
      %2509 = vmatprep.subr.mxu0 0.0
      %2510 = vmatpush1.msra.mxu0 0.0
      %2511 = vmatprep.subr.mxu0 0.0
      %2512 = vmatpush1.msra.mxu0 0.0
      %2513 = vmatprep.subr.mxu0 0.0
      %2514 = vmatpush1.msra.mxu0 0.0
      %2515 = vmatprep.subr.mxu0 0.0
      %2516 = vmatpush1.msra.mxu0 0.0
      %2517 = vmatprep.subr.mxu0 0.0
      %2518 = vmatpush1.msra.mxu0 0.0
      %2519 = vmatprep.subr.mxu0 0.0
      %2520 = vmatpush1.msra.mxu0 0.0
      %2521 = vmatprep.subr.mxu0 0.0
      %2522 = vmatpush1.msra.mxu0 0.0
      %2523 = vmatprep.subr.mxu0 0.0
      %2524 = vmatpush1.msra.mxu0 0.0
      %2525 = vmatprep.subr.mxu0 0.0
      %2526 = vmatpush1.msra.mxu0 0.0
      %2527 = vmatprep.subr.mxu0 0.0
      %2528 = vmatpush1.msra.mxu0 0.0
      %2529 = vmatprep.subr.mxu0 0.0
      %2530 = vmatpush1.msra.mxu0 0.0
      %2531 = vmatprep.subr.mxu0 0.0
      %2532 = vmatpush1.msra.mxu0 0.0
      %2533 = vmatprep.subr.mxu0 0.0
      %2534 = vmatpush1.msra.mxu0 0.0
      %2535 = vmatprep.subr.mxu0 0.0
      %2536 = vmatpush1.msra.mxu0 0.0
      %2537 = vmatprep.subr.mxu0 0.0
      %2538 = vmatpush1.msra.mxu0 0.0
      %2539 = vmatprep.mubr.f32.mxu0 0.0
      %2540 = vmatmul.mubr.f32.gmra.mrb[0].mxu0 %v2458
      %v2541 = vpop.f32.mrb[0].mxu0
      %v2542 = vadd.f32 %v2440, %v2541
      %v2543 = vpop.f32.mrb[0].mxu0
      %v2544 = vadd.f32 %v2440, %v2543
      %2545 = vmatprep.mubr.f32.mxu0 0.0
      %2546 = vmatmul.mubr.f32.gmra.mrb[0].mxu0 %v2461
      %v2547 = vpop.f32.mrb[0].mxu0
      %v2548 = vadd.f32 %v2445, %v2547
      %v2549 = vpop.f32.mrb[0].mxu0
      %v2550 = vadd.f32 %v2445, %v2549
      %2551 = vmatprep.mubr.f32.mxu0 0.0
      %2552 = vmatmul.mubr.f32.gmra.mrb[0].mxu0 %v2464
      %v2553 = vpop.f32.mrb[0].mxu0
      %v2554 = vadd.f32 %v2450, %v2553
      %v2555 = vpop.f32.mrb[0].mxu0
      %v2556 = vadd.f32 %v2450, %v2555
      %2557 = vmatprep.mubr.f32.mxu0 0.0
      %2558 = vmatmul.mubr.f32.gmra.mrb[0].mxu0 %v2467
      %v2559 = vpop.f32.mrb[0].mxu0
      %v2560 = vadd.f32 %v2455, %v2559
      %v2561 = vpop.f32.mrb[0].mxu0
      %v2562 = vadd.f32 %v2455, %v2561
      %2563 = vdwg.mxu0
      %v2564 = vld [vmem:[%s19] sm:$0xff]
      %v2565 = vld [vmem:[%s19 + $0x8] sm:$0xff]
      %v2566 = vld [vmem:[%s19 + $0x10] sm:$0xff]
      %v2567 = vld [vmem:[%s19 + $0x18] sm:$0xff]
      %v2568 = vld [vmem:[%s20] sm:$0xff]
      %v2569 = vld [vmem:[%s20 + $0x8] sm:$0xff]
      %v2570 = vld [vmem:[%s20 + $0x10] sm:$0xff]
      %v2571 = vld [vmem:[%s20 + $0x18] sm:$0xff]
      %v2572 = vadd.f32 %v2542, %v2544
      %2573 = vadd.xlane.f32.xlu0 %v2572
      %v2574 = vpop.xlane.xlu0 %2573
      %v2575 = vadd.f32 %v2548, %v2550
      %2576 = vadd.xlane.f32.xlu0 %v2575
      %v2577 = vpop.xlane.xlu0 %2576
      %v2578 = vadd.f32 %v2554, %v2556
      %2579 = vadd.xlane.f32.xlu0 %v2578
      %v2580 = vpop.xlane.xlu0 %2579
      %v2581 = vadd.f32 %v2560, %v2562
      %2582 = vadd.xlane.f32.xlu0 %v2581
      %v2583 = vpop.xlane.xlu0 %2582
      %v2584 = vadd.f32 %v2574, %v2577
      %v2585 = vadd.f32 %v2584, %v2580
      %v2586 = vadd.f32 %v2585, %v2583
      %v2587 = vrot.slane %v2586, 4
      %v2588 = vadd.f32 %v2586, %v2587
      %v2589 = vrot.slane %v2588, 2
      %v2590 = vadd.f32 %v2588, %v2589
      %v2591 = vrot.slane %v2590, 1
      %v2592 = vadd.f32 %v2590, %v2591
      %v2593 = vmul.f32 %v2592, 0.00012207031
      %v2594 = vsub.f32 %v2542, %v2593
      %v2595 = vsub.f32 %v2544, %v2593
      %v2596 = vsub.f32 %v2548, %v2593
      %v2597 = vsub.f32 %v2550, %v2593
      %v2598 = vsub.f32 %v2554, %v2593
      %v2599 = vsub.f32 %v2556, %v2593
      %v2600 = vsub.f32 %v2560, %v2593
      %v2601 = vsub.f32 %v2562, %v2593
      %v2602 = vmul.f32 %v2594, %v2594
      %v2603 = vmul.f32 %v2595, %v2595
      %v2604 = vmul.f32 %v2596, %v2596
      %v2605 = vmul.f32 %v2597, %v2597
      %v2606 = vmul.f32 %v2598, %v2598
      %v2607 = vmul.f32 %v2599, %v2599
      %v2608 = vmul.f32 %v2600, %v2600
      %v2609 = vmul.f32 %v2601, %v2601
      %v2610 = vadd.f32 %v2602, %v2603
      %2611 = vadd.xlane.f32.xlu0 %v2610
      %v2612 = vpop.xlane.xlu0 %2611
      %v2613 = vadd.f32 %v2604, %v2605
      %2614 = vadd.xlane.f32.xlu0 %v2613
      %v2615 = vpop.xlane.xlu0 %2614
      %v2616 = vadd.f32 %v2606, %v2607
      %2617 = vadd.xlane.f32.xlu0 %v2616
      %v2618 = vpop.xlane.xlu0 %2617
      %v2619 = vadd.f32 %v2608, %v2609
      %2620 = vadd.xlane.f32.xlu0 %v2619
      %v2621 = vpop.xlane.xlu0 %2620
      %v2622 = vadd.f32 %v2612, %v2615
      %v2623 = vadd.f32 %v2622, %v2618
      %v2624 = vadd.f32 %v2623, %v2621
      %v2625 = vrot.slane %v2624, 4
      %v2626 = vadd.f32 %v2624, %v2625
      %v2627 = vrot.slane %v2626, 2
      %v2628 = vadd.f32 %v2626, %v2627
      %v2629 = vrot.slane %v2628, 1
      %v2630 = vadd.f32 %v2628, %v2629
      %v2631 = vmul.f32 %v2630, 0.00012207031
      %v2632 = vadd.f32 %v2631, 1e-06
      %v2633 = vrsqrt.pop %v2632
      %v2634 = vmul.f32 %v2594, %v2633
      %v2635 = vmul.f32 %v2595, %v2633
      %v2636 = vmul.f32 %v2596, %v2633
      %v2637 = vmul.f32 %v2597, %v2633
      %v2638 = vmul.f32 %v2598, %v2633
      %v2639 = vmul.f32 %v2599, %v2633
      %v2640 = vmul.f32 %v2600, %v2633
      %v2641 = vmul.f32 %v2601, %v2633
      %2643 = vset.pattern.permute.xlu0 0
      %2644 = vperm.xlu0 %2643, %v2564
      %v2645 = vpop.permute.xlu0 %2644
      %2648 = vset.pattern.permute.xlu0 0
      %2649 = vperm.xlu0 %2648, %v2565
      %v2650 = vpop.permute.xlu0 %2649
      %2653 = vset.pattern.permute.xlu0 0
      %2654 = vperm.xlu0 %2653, %v2566
      %v2655 = vpop.permute.xlu0 %2654
      %2658 = vset.pattern.permute.xlu0 0
      %2659 = vperm.xlu0 %2658, %v2567
      %v2660 = vpop.permute.xlu0 %2659
      %v2662 = vmul.f32 %v2634, %v2645
      %v2663 = vmul.f32 %v2635, %v2645
      %v2664 = vmul.f32 %v2636, %v2650
      %v2665 = vmul.f32 %v2637, %v2650
      %v2666 = vmul.f32 %v2638, %v2655
      %v2667 = vmul.f32 %v2639, %v2655
      %v2668 = vmul.f32 %v2640, %v2660
      %v2669 = vmul.f32 %v2641, %v2660
      %2671 = vset.pattern.permute.xlu0 0
      %2672 = vperm.xlu0 %2671, %v2568
      %v2673 = vpop.permute.xlu0 %2672
      %2676 = vset.pattern.permute.xlu0 0
      %2677 = vperm.xlu0 %2676, %v2569
      %v2678 = vpop.permute.xlu0 %2677
      %2681 = vset.pattern.permute.xlu0 0
      %2682 = vperm.xlu0 %2681, %v2570
      %v2683 = vpop.permute.xlu0 %2682
      %2686 = vset.pattern.permute.xlu0 0
      %2687 = vperm.xlu0 %2686, %v2571
      %v2688 = vpop.permute.xlu0 %2687
      %v2690 = vadd.f32 %v2662, %v2673
      %v2691 = vadd.f32 %v2663, %v2673
      %v2692 = vadd.f32 %v2664, %v2678
      %v2693 = vadd.f32 %v2665, %v2678
      %v2694 = vadd.f32 %v2666, %v2683
      %v2695 = vadd.f32 %v2667, %v2683
      %v2696 = vadd.f32 %v2668, %v2688
      %v2697 = vadd.f32 %v2669, %v2688
      %v2698 = vsub.f32 0.0, %v2690
      %v2699 = vsub.f32 0.0, %v2691
      %v2700 = vsub.f32 0.0, %v2692
      %v2701 = vsub.f32 0.0, %v2693
      %v2702 = vsub.f32 0.0, %v2694
      %v2703 = vsub.f32 0.0, %v2695
      %v2704 = vsub.f32 0.0, %v2696
      %v2705 = vsub.f32 0.0, %v2697
      %v2706 = vmul.f32 %v2698, 1.442695
      %v2707 = vpow.pop %v2706
      %v2708 = vmul.f32 %v2699, 1.442695
      %v2709 = vpow.pop %v2708
      %v2710 = vmul.f32 %v2700, 1.442695
      %v2711 = vpow.pop %v2710
      %v2712 = vmul.f32 %v2701, 1.442695
      %v2713 = vpow.pop %v2712
      %v2714 = vmul.f32 %v2702, 1.442695
      %v2715 = vpow.pop %v2714
      %v2716 = vmul.f32 %v2703, 1.442695
      %v2717 = vpow.pop %v2716
      %v2718 = vmul.f32 %v2704, 1.442695
      %v2719 = vpow.pop %v2718
      %v2720 = vmul.f32 %v2705, 1.442695
      %v2721 = vpow.pop %v2720
      %v2722 = vadd.f32 %v2707, 1.0
      %v2723 = vadd.f32 %v2709, 1.0
      %v2724 = vadd.f32 %v2711, 1.0
      %v2725 = vadd.f32 %v2713, 1.0
      %v2726 = vadd.f32 %v2715, 1.0
      %v2727 = vadd.f32 %v2717, 1.0
      %v2728 = vadd.f32 %v2719, 1.0
      %v2729 = vadd.f32 %v2721, 1.0
      %v2730 = vrcp.pop %v2722
      %v2731 = vmul.f32 1.0, %v2730
      %v2732 = vrcp.pop %v2723
      %v2733 = vmul.f32 1.0, %v2732
      %v2734 = vrcp.pop %v2724
      %v2735 = vmul.f32 1.0, %v2734
      %v2736 = vrcp.pop %v2725
      %v2737 = vmul.f32 1.0, %v2736
      %v2738 = vrcp.pop %v2726
      %v2739 = vmul.f32 1.0, %v2738
      %v2740 = vrcp.pop %v2727
      %v2741 = vmul.f32 1.0, %v2740
      %v2742 = vrcp.pop %v2728
      %v2743 = vmul.f32 1.0, %v2742
      %v2744 = vrcp.pop %v2729
      %v2745 = vmul.f32 1.0, %v2744
      %v2746 = vmul.f32 %v2690, %v2731
      %v2747 = vmul.f32 %v2691, %v2733
      %v2748 = vmul.f32 %v2692, %v2735
      %v2749 = vmul.f32 %v2693, %v2737
      %v2750 = vmul.f32 %v2694, %v2739
      %v2751 = vmul.f32 %v2695, %v2741
      %v2752 = vmul.f32 %v2696, %v2743
      %v2753 = vmul.f32 %v2697, %v2745
      %v2754 = vld [vmem:[%s21] sm:$0xff]
      %v2755 = vld [vmem:[%s21 + $0x8] sm:$0xff]
      %v2756 = vld [vmem:[%s21 + $0x10] sm:$0xff]
      %v2757 = vld [vmem:[%s21 + $0x18] sm:$0xff]
      %v2758 = vld [vmem:[%s21 + $0x20] sm:$0xff]
      %v2759 = vld [vmem:[%s21 + $0x28] sm:$0xff]
      %v2760 = vld [vmem:[%s21 + $0x30] sm:$0xff]
      %v2761 = vld [vmem:[%s21 + $0x38] sm:$0xff]
      %v2762 = vld [vmem:[%s21 + $0x40] sm:$0xff]
      %v2763 = vld [vmem:[%s21 + $0x48] sm:$0xff]
      %v2764 = vld [vmem:[%s21 + $0x50] sm:$0xff]
      %v2765 = vld [vmem:[%s21 + $0x58] sm:$0xff]
      %v2766 = vld [vmem:[%s22] sm:$0xff]
      %v2767 = vld [vmem:[%s22 + $0x8] sm:$0xff]
      %v2768 = vld [vmem:[%s22 + $0x10] sm:$0xff]
      %v2769 = vld [vmem:[%s22 + $0x18] sm:$0xff]
      %2770 = vrot.lane.b32.xlu0 %v2746, 17
      %v2771 = vpop.permute.xlu0 %2770
      %2772 = vrot.lane.b32.xlu0 %v2748, 17
      %v2773 = vpop.permute.xlu0 %2772
      %2774 = vrot.lane.b32.xlu0 %v2750, 17
      %v2775 = vpop.permute.xlu0 %2774
      %2776 = vrot.lane.b32.xlu0 %v2752, 17
      %v2777 = vpop.permute.xlu0 %2776
      %2778 = vrot.lane.b32.xlu0 %v2747, 17
      %v2779 = vpop.permute.xlu0 %2778
      %2780 = vrot.lane.b32.xlu0 %v2749, 17
      %v2781 = vpop.permute.xlu0 %2780
      %2782 = vrot.lane.b32.xlu0 %v2751, 17
      %v2783 = vpop.permute.xlu0 %2782
      %2784 = vrot.lane.b32.xlu0 %v2753, 17
      %v2785 = vpop.permute.xlu0 %2784
      %v2786 = vsel %vm1056, %v2771, %v2779
      %v2787 = vsel %vm1056, %v2773, %v2781
      %v2788 = vsel %vm1056, %v2775, %v2783
      %v2789 = vsel %vm1056, %v2777, %v2785
      %v2790 = vsel %vm1056, %v2779, %v2771
      %v2791 = vsel %vm1056, %v2781, %v2773
      %v2792 = vsel %vm1056, %v2783, %v2775
      %v2793 = vsel %vm1056, %v2785, %v2777
      %v2794 = vsel %vm1067, %v2790, 0.0
      %v2795 = vsel %vm1068, %v2786, 0.0
      %v2796 = vsel %vm1067, %v2791, 0.0
      %v2797 = vsel %vm1068, %v2787, 0.0
      %v2798 = vsel %vm1067, %v2792, 0.0
      %v2799 = vsel %vm1068, %v2788, 0.0
      %v2800 = vsel %vm1067, %v2793, 0.0
      %v2801 = vsel %vm1068, %v2789, 0.0
      %2802 = vrot.lane.b32.xlu0 %v2746, 16
      %v2803 = vpop.permute.xlu0 %2802
      %2804 = vrot.lane.b32.xlu0 %v2748, 16
      %v2805 = vpop.permute.xlu0 %2804
      %2806 = vrot.lane.b32.xlu0 %v2750, 16
      %v2807 = vpop.permute.xlu0 %2806
      %2808 = vrot.lane.b32.xlu0 %v2752, 16
      %v2809 = vpop.permute.xlu0 %2808
      %2810 = vrot.lane.b32.xlu0 %v2747, 16
      %v2811 = vpop.permute.xlu0 %2810
      %2812 = vrot.lane.b32.xlu0 %v2749, 16
      %v2813 = vpop.permute.xlu0 %2812
      %2814 = vrot.lane.b32.xlu0 %v2751, 16
      %v2815 = vpop.permute.xlu0 %2814
      %2816 = vrot.lane.b32.xlu0 %v2753, 16
      %v2817 = vpop.permute.xlu0 %2816
      %v2818 = vsel %vm1093, %v2803, %v2811
      %v2819 = vsel %vm1093, %v2805, %v2813
      %v2820 = vsel %vm1093, %v2807, %v2815
      %v2821 = vsel %vm1093, %v2809, %v2817
      %v2822 = vsel %vm1093, %v2811, %v2803
      %v2823 = vsel %vm1093, %v2813, %v2805
      %v2824 = vsel %vm1093, %v2815, %v2807
      %v2825 = vsel %vm1093, %v2817, %v2809
      %v2826 = vsel %vm1104, %v2822, 0.0
      %v2827 = vsel %vm1105, %v2818, 0.0
      %v2828 = vsel %vm1104, %v2823, 0.0
      %v2829 = vsel %vm1105, %v2819, 0.0
      %v2830 = vsel %vm1104, %v2824, 0.0
      %v2831 = vsel %vm1105, %v2820, 0.0
      %v2832 = vsel %vm1104, %v2825, 0.0
      %v2833 = vsel %vm1105, %v2821, 0.0
      %2834 = vrot.lane.b32.xlu0 %v2746, 15
      %v2835 = vpop.permute.xlu0 %2834
      %2836 = vrot.lane.b32.xlu0 %v2748, 15
      %v2837 = vpop.permute.xlu0 %2836
      %2838 = vrot.lane.b32.xlu0 %v2750, 15
      %v2839 = vpop.permute.xlu0 %2838
      %2840 = vrot.lane.b32.xlu0 %v2752, 15
      %v2841 = vpop.permute.xlu0 %2840
      %2842 = vrot.lane.b32.xlu0 %v2747, 15
      %v2843 = vpop.permute.xlu0 %2842
      %2844 = vrot.lane.b32.xlu0 %v2749, 15
      %v2845 = vpop.permute.xlu0 %2844
      %2846 = vrot.lane.b32.xlu0 %v2751, 15
      %v2847 = vpop.permute.xlu0 %2846
      %2848 = vrot.lane.b32.xlu0 %v2753, 15
      %v2849 = vpop.permute.xlu0 %2848
      %v2850 = vsel %vm1130, %v2835, %v2843
      %v2851 = vsel %vm1130, %v2837, %v2845
      %v2852 = vsel %vm1130, %v2839, %v2847
      %v2853 = vsel %vm1130, %v2841, %v2849
      %v2854 = vsel %vm1130, %v2843, %v2835
      %v2855 = vsel %vm1130, %v2845, %v2837
      %v2856 = vsel %vm1130, %v2847, %v2839
      %v2857 = vsel %vm1130, %v2849, %v2841
      %v2858 = vsel %vm1141, %v2854, 0.0
      %v2859 = vsel %vm1142, %v2850, 0.0
      %v2860 = vsel %vm1141, %v2855, 0.0
      %v2861 = vsel %vm1142, %v2851, 0.0
      %v2862 = vsel %vm1141, %v2856, 0.0
      %v2863 = vsel %vm1142, %v2852, 0.0
      %v2864 = vsel %vm1141, %v2857, 0.0
      %v2865 = vsel %vm1142, %v2853, 0.0
      %2866 = vrot.lane.b32.xlu0 %v2746, 1
      %v2867 = vpop.permute.xlu0 %2866
      %2868 = vrot.lane.b32.xlu0 %v2748, 1
      %v2869 = vpop.permute.xlu0 %2868
      %2870 = vrot.lane.b32.xlu0 %v2750, 1
      %v2871 = vpop.permute.xlu0 %2870
      %2872 = vrot.lane.b32.xlu0 %v2752, 1
      %v2873 = vpop.permute.xlu0 %2872
      %2874 = vrot.lane.b32.xlu0 %v2747, 1
      %v2875 = vpop.permute.xlu0 %2874
      %2876 = vrot.lane.b32.xlu0 %v2749, 1
      %v2877 = vpop.permute.xlu0 %2876
      %2878 = vrot.lane.b32.xlu0 %v2751, 1
      %v2879 = vpop.permute.xlu0 %2878
      %2880 = vrot.lane.b32.xlu0 %v2753, 1
      %v2881 = vpop.permute.xlu0 %2880
      %v2882 = vsel %vm1167, %v2867, %v2875
      %v2883 = vsel %vm1167, %v2869, %v2877
      %v2884 = vsel %vm1167, %v2871, %v2879
      %v2885 = vsel %vm1167, %v2873, %v2881
      %v2886 = vsel %vm1167, %v2875, %v2867
      %v2887 = vsel %vm1167, %v2877, %v2869
      %v2888 = vsel %vm1167, %v2879, %v2871
      %v2889 = vsel %vm1167, %v2881, %v2873
      %v2890 = vsel %vm1178, %v2886, 0.0
      %v2891 = vsel %vm1179, %v2882, 0.0
      %v2892 = vsel %vm1178, %v2887, 0.0
      %v2893 = vsel %vm1179, %v2883, 0.0
      %v2894 = vsel %vm1178, %v2888, 0.0
      %v2895 = vsel %vm1179, %v2884, 0.0
      %v2896 = vsel %vm1178, %v2889, 0.0
      %v2897 = vsel %vm1179, %v2885, 0.0
      %2898 = vrot.lane.b32.xlu0 %v2746, 127
      %v2899 = vpop.permute.xlu0 %2898
      %2900 = vrot.lane.b32.xlu0 %v2748, 127
      %v2901 = vpop.permute.xlu0 %2900
      %2902 = vrot.lane.b32.xlu0 %v2750, 127
      %v2903 = vpop.permute.xlu0 %2902
      %2904 = vrot.lane.b32.xlu0 %v2752, 127
      %v2905 = vpop.permute.xlu0 %2904
      %2906 = vrot.lane.b32.xlu0 %v2747, 127
      %v2907 = vpop.permute.xlu0 %2906
      %2908 = vrot.lane.b32.xlu0 %v2749, 127
      %v2909 = vpop.permute.xlu0 %2908
      %2910 = vrot.lane.b32.xlu0 %v2751, 127
      %v2911 = vpop.permute.xlu0 %2910
      %2912 = vrot.lane.b32.xlu0 %v2753, 127
      %v2913 = vpop.permute.xlu0 %2912
      %v2914 = vsel %vm1204, %v2899, %v2907
      %v2915 = vsel %vm1204, %v2901, %v2909
      %v2916 = vsel %vm1204, %v2903, %v2911
      %v2917 = vsel %vm1204, %v2905, %v2913
      %v2918 = vsel %vm1204, %v2907, %v2899
      %v2919 = vsel %vm1204, %v2909, %v2901
      %v2920 = vsel %vm1204, %v2911, %v2903
      %v2921 = vsel %vm1204, %v2913, %v2905
      %v2922 = vsel %vm1215, %v2914, 0.0
      %v2923 = vsel %vm1216, %v2918, 0.0
      %v2924 = vsel %vm1215, %v2915, 0.0
      %v2925 = vsel %vm1216, %v2919, 0.0
      %v2926 = vsel %vm1215, %v2916, 0.0
      %v2927 = vsel %vm1216, %v2920, 0.0
      %v2928 = vsel %vm1215, %v2917, 0.0
      %v2929 = vsel %vm1216, %v2921, 0.0
      %2930 = vrot.lane.b32.xlu0 %v2746, 113
      %v2931 = vpop.permute.xlu0 %2930
      %2932 = vrot.lane.b32.xlu0 %v2748, 113
      %v2933 = vpop.permute.xlu0 %2932
      %2934 = vrot.lane.b32.xlu0 %v2750, 113
      %v2935 = vpop.permute.xlu0 %2934
      %2936 = vrot.lane.b32.xlu0 %v2752, 113
      %v2937 = vpop.permute.xlu0 %2936
      %2938 = vrot.lane.b32.xlu0 %v2747, 113
      %v2939 = vpop.permute.xlu0 %2938
      %2940 = vrot.lane.b32.xlu0 %v2749, 113
      %v2941 = vpop.permute.xlu0 %2940
      %2942 = vrot.lane.b32.xlu0 %v2751, 113
      %v2943 = vpop.permute.xlu0 %2942
      %2944 = vrot.lane.b32.xlu0 %v2753, 113
      %v2945 = vpop.permute.xlu0 %2944
      %v2946 = vsel %vm1241, %v2931, %v2939
      %v2947 = vsel %vm1241, %v2933, %v2941
      %v2948 = vsel %vm1241, %v2935, %v2943
      %v2949 = vsel %vm1241, %v2937, %v2945
      %v2950 = vsel %vm1241, %v2939, %v2931
      %v2951 = vsel %vm1241, %v2941, %v2933
      %v2952 = vsel %vm1241, %v2943, %v2935
      %v2953 = vsel %vm1241, %v2945, %v2937
      %v2954 = vsel %vm1252, %v2946, 0.0
      %v2955 = vsel %vm1253, %v2950, 0.0
      %v2956 = vsel %vm1252, %v2947, 0.0
      %v2957 = vsel %vm1253, %v2951, 0.0
      %v2958 = vsel %vm1252, %v2948, 0.0
      %v2959 = vsel %vm1253, %v2952, 0.0
      %v2960 = vsel %vm1252, %v2949, 0.0
      %v2961 = vsel %vm1253, %v2953, 0.0
      %2962 = vrot.lane.b32.xlu0 %v2746, 112
      %v2963 = vpop.permute.xlu0 %2962
      %2964 = vrot.lane.b32.xlu0 %v2748, 112
      %v2965 = vpop.permute.xlu0 %2964
      %2966 = vrot.lane.b32.xlu0 %v2750, 112
      %v2967 = vpop.permute.xlu0 %2966
      %2968 = vrot.lane.b32.xlu0 %v2752, 112
      %v2969 = vpop.permute.xlu0 %2968
      %2970 = vrot.lane.b32.xlu0 %v2747, 112
      %v2971 = vpop.permute.xlu0 %2970
      %2972 = vrot.lane.b32.xlu0 %v2749, 112
      %v2973 = vpop.permute.xlu0 %2972
      %2974 = vrot.lane.b32.xlu0 %v2751, 112
      %v2975 = vpop.permute.xlu0 %2974
      %2976 = vrot.lane.b32.xlu0 %v2753, 112
      %v2977 = vpop.permute.xlu0 %2976
      %v2978 = vsel %vm1278, %v2963, %v2971
      %v2979 = vsel %vm1278, %v2965, %v2973
      %v2980 = vsel %vm1278, %v2967, %v2975
      %v2981 = vsel %vm1278, %v2969, %v2977
      %v2982 = vsel %vm1278, %v2971, %v2963
      %v2983 = vsel %vm1278, %v2973, %v2965
      %v2984 = vsel %vm1278, %v2975, %v2967
      %v2985 = vsel %vm1278, %v2977, %v2969
      %v2986 = vsel %vm1289, %v2978, 0.0
      %v2987 = vsel %vm1290, %v2982, 0.0
      %v2988 = vsel %vm1289, %v2979, 0.0
      %v2989 = vsel %vm1290, %v2983, 0.0
      %v2990 = vsel %vm1289, %v2980, 0.0
      %v2991 = vsel %vm1290, %v2984, 0.0
      %v2992 = vsel %vm1289, %v2981, 0.0
      %v2993 = vsel %vm1290, %v2985, 0.0
      %2994 = vrot.lane.b32.xlu0 %v2746, 111
      %v2995 = vpop.permute.xlu0 %2994
      %2996 = vrot.lane.b32.xlu0 %v2748, 111
      %v2997 = vpop.permute.xlu0 %2996
      %2998 = vrot.lane.b32.xlu0 %v2750, 111
      %v2999 = vpop.permute.xlu0 %2998
      %3000 = vrot.lane.b32.xlu0 %v2752, 111
      %v3001 = vpop.permute.xlu0 %3000
      %3002 = vrot.lane.b32.xlu0 %v2747, 111
      %v3003 = vpop.permute.xlu0 %3002
      %3004 = vrot.lane.b32.xlu0 %v2749, 111
      %v3005 = vpop.permute.xlu0 %3004
      %3006 = vrot.lane.b32.xlu0 %v2751, 111
      %v3007 = vpop.permute.xlu0 %3006
      %3008 = vrot.lane.b32.xlu0 %v2753, 111
      %v3009 = vpop.permute.xlu0 %3008
      %v3010 = vsel %vm1315, %v2995, %v3003
      %v3011 = vsel %vm1315, %v2997, %v3005
      %v3012 = vsel %vm1315, %v2999, %v3007
      %v3013 = vsel %vm1315, %v3001, %v3009
      %v3014 = vsel %vm1315, %v3003, %v2995
      %v3015 = vsel %vm1315, %v3005, %v2997
      %v3016 = vsel %vm1315, %v3007, %v2999
      %v3017 = vsel %vm1315, %v3009, %v3001
      %v3018 = vsel %vm1326, %v3010, 0.0
      %v3019 = vsel %vm1327, %v3014, 0.0
      %v3020 = vsel %vm1326, %v3011, 0.0
      %v3021 = vsel %vm1327, %v3015, 0.0
      %v3022 = vsel %vm1326, %v3012, 0.0
      %v3023 = vsel %vm1327, %v3016, 0.0
      %v3024 = vsel %vm1326, %v3013, 0.0
      %v3025 = vsel %vm1327, %v3017, 0.0
      %3027 = vset.pattern.permute.xlu0 0
      %3028 = vperm.xlu0 %3027, %v2766
      %v3029 = vpop.permute.xlu0 %3028
      %3032 = vset.pattern.permute.xlu0 0
      %3033 = vperm.xlu0 %3032, %v2767
      %v3034 = vpop.permute.xlu0 %3033
      %3037 = vset.pattern.permute.xlu0 0
      %3038 = vperm.xlu0 %3037, %v2768
      %v3039 = vpop.permute.xlu0 %3038
      %3042 = vset.pattern.permute.xlu0 0
      %3043 = vperm.xlu0 %3042, %v2769
      %v3044 = vpop.permute.xlu0 %3043
      %v3047 = vsel %vm1360, %v2756, 0
      %v3050 = vsel %vm1360, %v2759, 0
      %v3053 = vsel %vm1360, %v2762, 0
      %v3056 = vsel %vm1360, %v2765, 0
      %3058 = vmatprep.subr.mxu0 %v2795
      %3059 = vmatpush1.msra.mxu0 %v2794
      %3060 = vmatprep.subr.mxu0 %v2797
      %3061 = vmatpush1.msra.mxu0 %v2796
      %3062 = vmatprep.subr.mxu0 %v2799
      %3063 = vmatpush1.msra.mxu0 %v2798
      %3064 = vmatprep.subr.mxu0 %v2801
      %3065 = vmatpush1.msra.mxu0 %v2800
      %3066 = vmatprep.subr.mxu0 %v2827
      %3067 = vmatpush1.msra.mxu0 %v2826
      %3068 = vmatprep.subr.mxu0 %v2829
      %3069 = vmatpush1.msra.mxu0 %v2828
      %3070 = vmatprep.subr.mxu0 %v2831
      %3071 = vmatpush1.msra.mxu0 %v2830
      %3072 = vmatprep.subr.mxu0 %v2833
      %3073 = vmatpush1.msra.mxu0 %v2832
      %3074 = vmatprep.subr.mxu0 %v2859
      %3075 = vmatpush1.msra.mxu0 %v2858
      %3076 = vmatprep.subr.mxu0 %v2861
      %3077 = vmatpush1.msra.mxu0 %v2860
      %3078 = vmatprep.subr.mxu0 %v2863
      %3079 = vmatpush1.msra.mxu0 %v2862
      %3080 = vmatprep.subr.mxu0 %v2865
      %3081 = vmatpush1.msra.mxu0 %v2864
      %3082 = vmatprep.subr.mxu0 %v2891
      %3083 = vmatpush1.msra.mxu0 %v2890
      %3084 = vmatprep.subr.mxu0 %v2893
      %3085 = vmatpush1.msra.mxu0 %v2892
      %3086 = vmatprep.subr.mxu0 %v2895
      %3087 = vmatpush1.msra.mxu0 %v2894
      %3088 = vmatprep.subr.mxu0 %v2897
      %3089 = vmatpush1.msra.mxu0 %v2896
      %3090 = vmatprep.subr.mxu0 %v2747
      %3091 = vmatpush1.msra.mxu0 %v2746
      %3092 = vmatprep.subr.mxu0 %v2749
      %3093 = vmatpush1.msra.mxu0 %v2748
      %3094 = vmatprep.subr.mxu0 %v2751
      %3095 = vmatpush1.msra.mxu0 %v2750
      %3096 = vmatprep.subr.mxu0 %v2753
      %3097 = vmatpush1.msra.mxu0 %v2752
      %3098 = vmatprep.subr.mxu0 %v2923
      %3099 = vmatpush1.msra.mxu0 %v2922
      %3100 = vmatprep.subr.mxu0 %v2925
      %3101 = vmatpush1.msra.mxu0 %v2924
      %3102 = vmatprep.subr.mxu0 %v2927
      %3103 = vmatpush1.msra.mxu0 %v2926
      %3104 = vmatprep.subr.mxu0 %v2929
      %3105 = vmatpush1.msra.mxu0 %v2928
      %3106 = vmatprep.subr.mxu0 %v2955
      %3107 = vmatpush1.msra.mxu0 %v2954
      %3108 = vmatprep.subr.mxu0 %v2957
      %3109 = vmatpush1.msra.mxu0 %v2956
      %3110 = vmatprep.subr.mxu0 %v2959
      %3111 = vmatpush1.msra.mxu0 %v2958
      %3112 = vmatprep.subr.mxu0 %v2961
      %3113 = vmatpush1.msra.mxu0 %v2960
      %3114 = vmatprep.subr.mxu0 %v2987
      %3115 = vmatpush1.msra.mxu0 %v2986
      %3116 = vmatprep.subr.mxu0 %v2989
      %3117 = vmatpush1.msra.mxu0 %v2988
      %3118 = vmatprep.subr.mxu0 %v2991
      %3119 = vmatpush1.msra.mxu0 %v2990
      %3120 = vmatprep.subr.mxu0 %v2993
      %3121 = vmatpush1.msra.mxu0 %v2992
      %3122 = vmatprep.mubr.f32.mxu0 %v2755
      %3123 = vmatmul.mubr.f32.gmra.mrb[0].mxu0 %v2754
      %v3124 = vpop.f32.mrb[0].mxu0
      %v3125 = vadd.f32 %v3029, %v3124
      %v3126 = vpop.f32.mrb[0].mxu0
      %v3127 = vadd.f32 %v3029, %v3126
      %3128 = vmatprep.mubr.f32.mxu0 %v2758
      %3129 = vmatmul.mubr.f32.gmra.mrb[0].mxu0 %v2757
      %v3130 = vpop.f32.mrb[0].mxu0
      %v3131 = vadd.f32 %v3034, %v3130
      %v3132 = vpop.f32.mrb[0].mxu0
      %v3133 = vadd.f32 %v3034, %v3132
      %3134 = vmatprep.mubr.f32.mxu0 %v2761
      %3135 = vmatmul.mubr.f32.gmra.mrb[0].mxu0 %v2760
      %v3136 = vpop.f32.mrb[0].mxu0
      %v3137 = vadd.f32 %v3039, %v3136
      %v3138 = vpop.f32.mrb[0].mxu0
      %v3139 = vadd.f32 %v3039, %v3138
      %3140 = vmatprep.mubr.f32.mxu0 %v2764
      %3141 = vmatmul.mubr.f32.gmra.mrb[0].mxu0 %v2763
      %v3142 = vpop.f32.mrb[0].mxu0
      %v3143 = vadd.f32 %v3044, %v3142
      %v3144 = vpop.f32.mrb[0].mxu0
      %v3145 = vadd.f32 %v3044, %v3144
      %3146 = vdwg.mxu0
      %3147 = vmatprep.subr.mxu0 %v3019
      %3148 = vmatpush1.msra.mxu0 %v3018
      %3149 = vmatprep.subr.mxu0 %v3021
      %3150 = vmatpush1.msra.mxu0 %v3020
      %3151 = vmatprep.subr.mxu0 %v3023
      %3152 = vmatpush1.msra.mxu0 %v3022
      %3153 = vmatprep.subr.mxu0 %v3025
      %3154 = vmatpush1.msra.mxu0 %v3024
      %3155 = vmatprep.subr.mxu0 0.0
      %3156 = vmatpush1.msra.mxu0 0.0
      %3157 = vmatprep.subr.mxu0 0.0
      %3158 = vmatpush1.msra.mxu0 0.0
      %3159 = vmatprep.subr.mxu0 0.0
      %3160 = vmatpush1.msra.mxu0 0.0
      %3161 = vmatprep.subr.mxu0 0.0
      %3162 = vmatpush1.msra.mxu0 0.0
      %3163 = vmatprep.subr.mxu0 0.0
      %3164 = vmatpush1.msra.mxu0 0.0
      %3165 = vmatprep.subr.mxu0 0.0
      %3166 = vmatpush1.msra.mxu0 0.0
      %3167 = vmatprep.subr.mxu0 0.0
      %3168 = vmatpush1.msra.mxu0 0.0
      %3169 = vmatprep.subr.mxu0 0.0
      %3170 = vmatpush1.msra.mxu0 0.0
      %3171 = vmatprep.subr.mxu0 0.0
      %3172 = vmatpush1.msra.mxu0 0.0
      %3173 = vmatprep.subr.mxu0 0.0
      %3174 = vmatpush1.msra.mxu0 0.0
      %3175 = vmatprep.subr.mxu0 0.0
      %3176 = vmatpush1.msra.mxu0 0.0
      %3177 = vmatprep.subr.mxu0 0.0
      %3178 = vmatpush1.msra.mxu0 0.0
      %3179 = vmatprep.subr.mxu0 0.0
      %3180 = vmatpush1.msra.mxu0 0.0
      %3181 = vmatprep.subr.mxu0 0.0
      %3182 = vmatpush1.msra.mxu0 0.0
      %3183 = vmatprep.subr.mxu0 0.0
      %3184 = vmatpush1.msra.mxu0 0.0
      %3185 = vmatprep.subr.mxu0 0.0
      %3186 = vmatpush1.msra.mxu0 0.0
      %3187 = vmatprep.subr.mxu0 0.0
      %3188 = vmatpush1.msra.mxu0 0.0
      %3189 = vmatprep.subr.mxu0 0.0
      %3190 = vmatpush1.msra.mxu0 0.0
      %3191 = vmatprep.subr.mxu0 0.0
      %3192 = vmatpush1.msra.mxu0 0.0
      %3193 = vmatprep.subr.mxu0 0.0
      %3194 = vmatpush1.msra.mxu0 0.0
      %3195 = vmatprep.subr.mxu0 0.0
      %3196 = vmatpush1.msra.mxu0 0.0
      %3197 = vmatprep.subr.mxu0 0.0
      %3198 = vmatpush1.msra.mxu0 0.0
      %3199 = vmatprep.subr.mxu0 0.0
      %3200 = vmatpush1.msra.mxu0 0.0
      %3201 = vmatprep.subr.mxu0 0.0
      %3202 = vmatpush1.msra.mxu0 0.0
      %3203 = vmatprep.subr.mxu0 0.0
      %3204 = vmatpush1.msra.mxu0 0.0
      %3205 = vmatprep.subr.mxu0 0.0
      %3206 = vmatpush1.msra.mxu0 0.0
      %3207 = vmatprep.subr.mxu0 0.0
      %3208 = vmatpush1.msra.mxu0 0.0
      %3209 = vmatprep.subr.mxu0 0.0
      %3210 = vmatpush1.msra.mxu0 0.0
      %3211 = vmatprep.mubr.f32.mxu0 0.0
      %3212 = vmatmul.mubr.f32.gmra.mrb[0].mxu0 %v3047
      %v3213 = vpop.f32.mrb[0].mxu0
      %v3214 = vadd.f32 %v3125, %v3213
      %v3215 = vpop.f32.mrb[0].mxu0
      %v3216 = vadd.f32 %v3127, %v3215
      %3217 = vmatprep.mubr.f32.mxu0 0.0
      %3218 = vmatmul.mubr.f32.gmra.mrb[0].mxu0 %v3050
      %v3219 = vpop.f32.mrb[0].mxu0
      %v3220 = vadd.f32 %v3131, %v3219
      %v3221 = vpop.f32.mrb[0].mxu0
      %v3222 = vadd.f32 %v3133, %v3221
      %3223 = vmatprep.mubr.f32.mxu0 0.0
      %3224 = vmatmul.mubr.f32.gmra.mrb[0].mxu0 %v3053
      %v3225 = vpop.f32.mrb[0].mxu0
      %v3226 = vadd.f32 %v3137, %v3225
      %v3227 = vpop.f32.mrb[0].mxu0
      %v3228 = vadd.f32 %v3139, %v3227
      %3229 = vmatprep.mubr.f32.mxu0 0.0
      %3230 = vmatmul.mubr.f32.gmra.mrb[0].mxu0 %v3056
      %v3231 = vpop.f32.mrb[0].mxu0
      %v3232 = vadd.f32 %v3143, %v3231
      %v3233 = vpop.f32.mrb[0].mxu0
      %v3234 = vadd.f32 %v3145, %v3233
      %3235 = vdwg.mxu0
      %v3236 = vld [vmem:[%s23] sm:$0xff]
      %v3237 = vld [vmem:[%s23 + $0x8] sm:$0xff]
      %v3238 = vld [vmem:[%s23 + $0x10] sm:$0xff]
      %v3239 = vld [vmem:[%s23 + $0x18] sm:$0xff]
      %v3240 = vld [vmem:[%s24] sm:$0xff]
      %v3241 = vld [vmem:[%s24 + $0x8] sm:$0xff]
      %v3242 = vld [vmem:[%s24 + $0x10] sm:$0xff]
      %v3243 = vld [vmem:[%s24 + $0x18] sm:$0xff]
      %3245 = vset.pattern.permute.xlu0 0
      %3246 = vperm.xlu0 %3245, %v3240
      %v3247 = vpop.permute.xlu0 %3246
      %3250 = vset.pattern.permute.xlu0 0
      %3251 = vperm.xlu0 %3250, %v3241
      %v3252 = vpop.permute.xlu0 %3251
      %3255 = vset.pattern.permute.xlu0 0
      %3256 = vperm.xlu0 %3255, %v3242
      %v3257 = vpop.permute.xlu0 %3256
      %3260 = vset.pattern.permute.xlu0 0
      %3261 = vperm.xlu0 %3260, %v3243
      %v3262 = vpop.permute.xlu0 %3261
      %vm3264 = vcmask 15360
      %v3266 = vsel %vm3264, %v3236, 0
      %v3269 = vsel %vm3264, %v3237, 0
      %v3272 = vsel %vm3264, %v3238, 0
      %v3275 = vsel %vm3264, %v3239, 0
      %v3278 = vsel %vm1507, %v2249, 0
      %v3281 = vsel %vm1507, %v2251, 0
      %3283 = vmatprep.subr.mxu0 %v3281
      %3284 = vmatpush1.msra.mxu0 %v3278
      %3285 = vmatprep.subr.mxu0 0.0
      %3286 = vmatpush1.msra.mxu0 0.0
      %3287 = vmatprep.subr.mxu0 0.0
      %3288 = vmatpush1.msra.mxu0 0.0
      %3289 = vmatprep.subr.mxu0 0.0
      %3290 = vmatpush1.msra.mxu0 0.0
      %3291 = vmatprep.subr.mxu0 0.0
      %3292 = vmatpush1.msra.mxu0 0.0
      %3293 = vmatprep.subr.mxu0 0.0
      %3294 = vmatpush1.msra.mxu0 0.0
      %3295 = vmatprep.subr.mxu0 0.0
      %3296 = vmatpush1.msra.mxu0 0.0
      %3297 = vmatprep.subr.mxu0 0.0
      %3298 = vmatpush1.msra.mxu0 0.0
      %3299 = vmatprep.subr.mxu0 0.0
      %3300 = vmatpush1.msra.mxu0 0.0
      %3301 = vmatprep.subr.mxu0 0.0
      %3302 = vmatpush1.msra.mxu0 0.0
      %3303 = vmatprep.subr.mxu0 0.0
      %3304 = vmatpush1.msra.mxu0 0.0
      %3305 = vmatprep.subr.mxu0 0.0
      %3306 = vmatpush1.msra.mxu0 0.0
      %3307 = vmatprep.subr.mxu0 0.0
      %3308 = vmatpush1.msra.mxu0 0.0
      %3309 = vmatprep.subr.mxu0 0.0
      %3310 = vmatpush1.msra.mxu0 0.0
      %3311 = vmatprep.subr.mxu0 0.0
      %3312 = vmatpush1.msra.mxu0 0.0
      %3313 = vmatprep.subr.mxu0 0.0
      %3314 = vmatpush1.msra.mxu0 0.0
      %3315 = vmatprep.subr.mxu0 0.0
      %3316 = vmatpush1.msra.mxu0 0.0
      %3317 = vmatprep.subr.mxu0 0.0
      %3318 = vmatpush1.msra.mxu0 0.0
      %3319 = vmatprep.subr.mxu0 0.0
      %3320 = vmatpush1.msra.mxu0 0.0
      %3321 = vmatprep.subr.mxu0 0.0
      %3322 = vmatpush1.msra.mxu0 0.0
      %3323 = vmatprep.subr.mxu0 0.0
      %3324 = vmatpush1.msra.mxu0 0.0
      %3325 = vmatprep.subr.mxu0 0.0
      %3326 = vmatpush1.msra.mxu0 0.0
      %3327 = vmatprep.subr.mxu0 0.0
      %3328 = vmatpush1.msra.mxu0 0.0
      %3329 = vmatprep.subr.mxu0 0.0
      %3330 = vmatpush1.msra.mxu0 0.0
      %3331 = vmatprep.subr.mxu0 0.0
      %3332 = vmatpush1.msra.mxu0 0.0
      %3333 = vmatprep.subr.mxu0 0.0
      %3334 = vmatpush1.msra.mxu0 0.0
      %3335 = vmatprep.subr.mxu0 0.0
      %3336 = vmatpush1.msra.mxu0 0.0
      %3337 = vmatprep.subr.mxu0 0.0
      %3338 = vmatpush1.msra.mxu0 0.0
      %3339 = vmatprep.subr.mxu0 0.0
      %3340 = vmatpush1.msra.mxu0 0.0
      %3341 = vmatprep.subr.mxu0 0.0
      %3342 = vmatpush1.msra.mxu0 0.0
      %3343 = vmatprep.subr.mxu0 0.0
      %3344 = vmatpush1.msra.mxu0 0.0
      %3345 = vmatprep.subr.mxu0 0.0
      %3346 = vmatpush1.msra.mxu0 0.0
      %3347 = vmatprep.mubr.f32.mxu0 0.0
      %3348 = vmatmul.mubr.f32.gmra.mrb[0].mxu0 %v3266
      %v3349 = vpop.f32.mrb[0].mxu0
      %v3350 = vadd.f32 %v3247, %v3349
      %v3351 = vpop.f32.mrb[0].mxu0
      %v3352 = vadd.f32 %v3247, %v3351
      %3353 = vmatprep.mubr.f32.mxu0 0.0
      %3354 = vmatmul.mubr.f32.gmra.mrb[0].mxu0 %v3269
      %v3355 = vpop.f32.mrb[0].mxu0
      %v3356 = vadd.f32 %v3252, %v3355
      %v3357 = vpop.f32.mrb[0].mxu0
      %v3358 = vadd.f32 %v3252, %v3357
      %3359 = vmatprep.mubr.f32.mxu0 0.0
      %3360 = vmatmul.mubr.f32.gmra.mrb[0].mxu0 %v3272
      %v3361 = vpop.f32.mrb[0].mxu0
      %v3362 = vadd.f32 %v3257, %v3361
      %v3363 = vpop.f32.mrb[0].mxu0
      %v3364 = vadd.f32 %v3257, %v3363
      %3365 = vmatprep.mubr.f32.mxu0 0.0
      %3366 = vmatmul.mubr.f32.gmra.mrb[0].mxu0 %v3275
      %v3367 = vpop.f32.mrb[0].mxu0
      %v3368 = vadd.f32 %v3262, %v3367
      %v3369 = vpop.f32.mrb[0].mxu0
      %v3370 = vadd.f32 %v3262, %v3369
      %3371 = vdwg.mxu0
      %v3372 = vadd.f32 %v3350, %v3214
      %v3373 = vadd.f32 %v3352, %v3216
      %v3374 = vadd.f32 %v3356, %v3220
      %v3375 = vadd.f32 %v3358, %v3222
      %v3376 = vadd.f32 %v3362, %v3226
      %v3377 = vadd.f32 %v3364, %v3228
      %v3378 = vadd.f32 %v3368, %v3232
      %v3379 = vadd.f32 %v3370, %v3234
      %v3380 = vld [vmem:[%s25] sm:$0xff]
      %v3381 = vld [vmem:[%s25 + $0x8] sm:$0xff]
      %v3382 = vld [vmem:[%s25 + $0x10] sm:$0xff]
      %v3383 = vld [vmem:[%s25 + $0x18] sm:$0xff]
      %v3384 = vld [vmem:[%s25 + $0x20] sm:$0xff]
      %v3385 = vld [vmem:[%s25 + $0x28] sm:$0xff]
      %v3386 = vld [vmem:[%s25 + $0x30] sm:$0xff]
      %v3387 = vld [vmem:[%s25 + $0x38] sm:$0xff]
      %v3388 = vld [vmem:[%s25 + $0x40] sm:$0xff]
      %v3389 = vld [vmem:[%s25 + $0x48] sm:$0xff]
      %v3390 = vld [vmem:[%s25 + $0x50] sm:$0xff]
      %v3391 = vld [vmem:[%s25 + $0x58] sm:$0xff]
      %v3392 = vld [vmem:[%s26] sm:$0xff]
      %v3393 = vld [vmem:[%s26 + $0x8] sm:$0xff]
      %v3394 = vld [vmem:[%s26 + $0x10] sm:$0xff]
      %v3395 = vld [vmem:[%s26 + $0x18] sm:$0xff]
      %3396 = vrot.lane.b32.xlu0 %v3372, 17
      %v3397 = vpop.permute.xlu0 %3396
      %3398 = vrot.lane.b32.xlu0 %v3374, 17
      %v3399 = vpop.permute.xlu0 %3398
      %3400 = vrot.lane.b32.xlu0 %v3376, 17
      %v3401 = vpop.permute.xlu0 %3400
      %3402 = vrot.lane.b32.xlu0 %v3378, 17
      %v3403 = vpop.permute.xlu0 %3402
      %3404 = vrot.lane.b32.xlu0 %v3373, 17
      %v3405 = vpop.permute.xlu0 %3404
      %3406 = vrot.lane.b32.xlu0 %v3375, 17
      %v3407 = vpop.permute.xlu0 %3406
      %3408 = vrot.lane.b32.xlu0 %v3377, 17
      %v3409 = vpop.permute.xlu0 %3408
      %3410 = vrot.lane.b32.xlu0 %v3379, 17
      %v3411 = vpop.permute.xlu0 %3410
      %v3412 = vsel %vm1056, %v3397, %v3405
      %v3413 = vsel %vm1056, %v3399, %v3407
      %v3414 = vsel %vm1056, %v3401, %v3409
      %v3415 = vsel %vm1056, %v3403, %v3411
      %v3416 = vsel %vm1056, %v3405, %v3397
      %v3417 = vsel %vm1056, %v3407, %v3399
      %v3418 = vsel %vm1056, %v3409, %v3401
      %v3419 = vsel %vm1056, %v3411, %v3403
      %v3420 = vsel %vm1067, %v3416, 0.0
      %v3421 = vsel %vm1068, %v3412, 0.0
      %v3422 = vsel %vm1067, %v3417, 0.0
      %v3423 = vsel %vm1068, %v3413, 0.0
      %v3424 = vsel %vm1067, %v3418, 0.0
      %v3425 = vsel %vm1068, %v3414, 0.0
      %v3426 = vsel %vm1067, %v3419, 0.0
      %v3427 = vsel %vm1068, %v3415, 0.0
      %3428 = vrot.lane.b32.xlu0 %v3372, 16
      %v3429 = vpop.permute.xlu0 %3428
      %3430 = vrot.lane.b32.xlu0 %v3374, 16
      %v3431 = vpop.permute.xlu0 %3430
      %3432 = vrot.lane.b32.xlu0 %v3376, 16
      %v3433 = vpop.permute.xlu0 %3432
      %3434 = vrot.lane.b32.xlu0 %v3378, 16
      %v3435 = vpop.permute.xlu0 %3434
      %3436 = vrot.lane.b32.xlu0 %v3373, 16
      %v3437 = vpop.permute.xlu0 %3436
      %3438 = vrot.lane.b32.xlu0 %v3375, 16
      %v3439 = vpop.permute.xlu0 %3438
      %3440 = vrot.lane.b32.xlu0 %v3377, 16
      %v3441 = vpop.permute.xlu0 %3440
      %3442 = vrot.lane.b32.xlu0 %v3379, 16
      %v3443 = vpop.permute.xlu0 %3442
      %v3444 = vsel %vm1093, %v3429, %v3437
      %v3445 = vsel %vm1093, %v3431, %v3439
      %v3446 = vsel %vm1093, %v3433, %v3441
      %v3447 = vsel %vm1093, %v3435, %v3443
      %v3448 = vsel %vm1093, %v3437, %v3429
      %v3449 = vsel %vm1093, %v3439, %v3431
      %v3450 = vsel %vm1093, %v3441, %v3433
      %v3451 = vsel %vm1093, %v3443, %v3435
      %v3452 = vsel %vm1104, %v3448, 0.0
      %v3453 = vsel %vm1105, %v3444, 0.0
      %v3454 = vsel %vm1104, %v3449, 0.0
      %v3455 = vsel %vm1105, %v3445, 0.0
      %v3456 = vsel %vm1104, %v3450, 0.0
      %v3457 = vsel %vm1105, %v3446, 0.0
      %v3458 = vsel %vm1104, %v3451, 0.0
      %v3459 = vsel %vm1105, %v3447, 0.0
      %3460 = vrot.lane.b32.xlu0 %v3372, 15
      %v3461 = vpop.permute.xlu0 %3460
      %3462 = vrot.lane.b32.xlu0 %v3374, 15
      %v3463 = vpop.permute.xlu0 %3462
      %3464 = vrot.lane.b32.xlu0 %v3376, 15
      %v3465 = vpop.permute.xlu0 %3464
      %3466 = vrot.lane.b32.xlu0 %v3378, 15
      %v3467 = vpop.permute.xlu0 %3466
      %3468 = vrot.lane.b32.xlu0 %v3373, 15
      %v3469 = vpop.permute.xlu0 %3468
      %3470 = vrot.lane.b32.xlu0 %v3375, 15
      %v3471 = vpop.permute.xlu0 %3470
      %3472 = vrot.lane.b32.xlu0 %v3377, 15
      %v3473 = vpop.permute.xlu0 %3472
      %3474 = vrot.lane.b32.xlu0 %v3379, 15
      %v3475 = vpop.permute.xlu0 %3474
      %v3476 = vsel %vm1130, %v3461, %v3469
      %v3477 = vsel %vm1130, %v3463, %v3471
      %v3478 = vsel %vm1130, %v3465, %v3473
      %v3479 = vsel %vm1130, %v3467, %v3475
      %v3480 = vsel %vm1130, %v3469, %v3461
      %v3481 = vsel %vm1130, %v3471, %v3463
      %v3482 = vsel %vm1130, %v3473, %v3465
      %v3483 = vsel %vm1130, %v3475, %v3467
      %v3484 = vsel %vm1141, %v3480, 0.0
      %v3485 = vsel %vm1142, %v3476, 0.0
      %v3486 = vsel %vm1141, %v3481, 0.0
      %v3487 = vsel %vm1142, %v3477, 0.0
      %v3488 = vsel %vm1141, %v3482, 0.0
      %v3489 = vsel %vm1142, %v3478, 0.0
      %v3490 = vsel %vm1141, %v3483, 0.0
      %v3491 = vsel %vm1142, %v3479, 0.0
      %3492 = vrot.lane.b32.xlu0 %v3372, 1
      %v3493 = vpop.permute.xlu0 %3492
      %3494 = vrot.lane.b32.xlu0 %v3374, 1
      %v3495 = vpop.permute.xlu0 %3494
      %3496 = vrot.lane.b32.xlu0 %v3376, 1
      %v3497 = vpop.permute.xlu0 %3496
      %3498 = vrot.lane.b32.xlu0 %v3378, 1
      %v3499 = vpop.permute.xlu0 %3498
      %3500 = vrot.lane.b32.xlu0 %v3373, 1
      %v3501 = vpop.permute.xlu0 %3500
      %3502 = vrot.lane.b32.xlu0 %v3375, 1
      %v3503 = vpop.permute.xlu0 %3502
      %3504 = vrot.lane.b32.xlu0 %v3377, 1
      %v3505 = vpop.permute.xlu0 %3504
      %3506 = vrot.lane.b32.xlu0 %v3379, 1
      %v3507 = vpop.permute.xlu0 %3506
      %v3508 = vsel %vm1167, %v3493, %v3501
      %v3509 = vsel %vm1167, %v3495, %v3503
      %v3510 = vsel %vm1167, %v3497, %v3505
      %v3511 = vsel %vm1167, %v3499, %v3507
      %v3512 = vsel %vm1167, %v3501, %v3493
      %v3513 = vsel %vm1167, %v3503, %v3495
      %v3514 = vsel %vm1167, %v3505, %v3497
      %v3515 = vsel %vm1167, %v3507, %v3499
      %v3516 = vsel %vm1178, %v3512, 0.0
      %v3517 = vsel %vm1179, %v3508, 0.0
      %v3518 = vsel %vm1178, %v3513, 0.0
      %v3519 = vsel %vm1179, %v3509, 0.0
      %v3520 = vsel %vm1178, %v3514, 0.0
      %v3521 = vsel %vm1179, %v3510, 0.0
      %v3522 = vsel %vm1178, %v3515, 0.0
      %v3523 = vsel %vm1179, %v3511, 0.0
      %3524 = vrot.lane.b32.xlu0 %v3372, 127
      %v3525 = vpop.permute.xlu0 %3524
      %3526 = vrot.lane.b32.xlu0 %v3374, 127
      %v3527 = vpop.permute.xlu0 %3526
      %3528 = vrot.lane.b32.xlu0 %v3376, 127
      %v3529 = vpop.permute.xlu0 %3528
      %3530 = vrot.lane.b32.xlu0 %v3378, 127
      %v3531 = vpop.permute.xlu0 %3530
      %3532 = vrot.lane.b32.xlu0 %v3373, 127
      %v3533 = vpop.permute.xlu0 %3532
      %3534 = vrot.lane.b32.xlu0 %v3375, 127
      %v3535 = vpop.permute.xlu0 %3534
      %3536 = vrot.lane.b32.xlu0 %v3377, 127
      %v3537 = vpop.permute.xlu0 %3536
      %3538 = vrot.lane.b32.xlu0 %v3379, 127
      %v3539 = vpop.permute.xlu0 %3538
      %v3540 = vsel %vm1204, %v3525, %v3533
      %v3541 = vsel %vm1204, %v3527, %v3535
      %v3542 = vsel %vm1204, %v3529, %v3537
      %v3543 = vsel %vm1204, %v3531, %v3539
      %v3544 = vsel %vm1204, %v3533, %v3525
      %v3545 = vsel %vm1204, %v3535, %v3527
      %v3546 = vsel %vm1204, %v3537, %v3529
      %v3547 = vsel %vm1204, %v3539, %v3531
      %v3548 = vsel %vm1215, %v3540, 0.0
      %v3549 = vsel %vm1216, %v3544, 0.0
      %v3550 = vsel %vm1215, %v3541, 0.0
      %v3551 = vsel %vm1216, %v3545, 0.0
      %v3552 = vsel %vm1215, %v3542, 0.0
      %v3553 = vsel %vm1216, %v3546, 0.0
      %v3554 = vsel %vm1215, %v3543, 0.0
      %v3555 = vsel %vm1216, %v3547, 0.0
      %3556 = vrot.lane.b32.xlu0 %v3372, 113
      %v3557 = vpop.permute.xlu0 %3556
      %3558 = vrot.lane.b32.xlu0 %v3374, 113
      %v3559 = vpop.permute.xlu0 %3558
      %3560 = vrot.lane.b32.xlu0 %v3376, 113
      %v3561 = vpop.permute.xlu0 %3560
      %3562 = vrot.lane.b32.xlu0 %v3378, 113
      %v3563 = vpop.permute.xlu0 %3562
      %3564 = vrot.lane.b32.xlu0 %v3373, 113
      %v3565 = vpop.permute.xlu0 %3564
      %3566 = vrot.lane.b32.xlu0 %v3375, 113
      %v3567 = vpop.permute.xlu0 %3566
      %3568 = vrot.lane.b32.xlu0 %v3377, 113
      %v3569 = vpop.permute.xlu0 %3568
      %3570 = vrot.lane.b32.xlu0 %v3379, 113
      %v3571 = vpop.permute.xlu0 %3570
      %v3572 = vsel %vm1241, %v3557, %v3565
      %v3573 = vsel %vm1241, %v3559, %v3567
      %v3574 = vsel %vm1241, %v3561, %v3569
      %v3575 = vsel %vm1241, %v3563, %v3571
      %v3576 = vsel %vm1241, %v3565, %v3557
      %v3577 = vsel %vm1241, %v3567, %v3559
      %v3578 = vsel %vm1241, %v3569, %v3561
      %v3579 = vsel %vm1241, %v3571, %v3563
      %v3580 = vsel %vm1252, %v3572, 0.0
      %v3581 = vsel %vm1253, %v3576, 0.0
      %v3582 = vsel %vm1252, %v3573, 0.0
      %v3583 = vsel %vm1253, %v3577, 0.0
      %v3584 = vsel %vm1252, %v3574, 0.0
      %v3585 = vsel %vm1253, %v3578, 0.0
      %v3586 = vsel %vm1252, %v3575, 0.0
      %v3587 = vsel %vm1253, %v3579, 0.0
      %3588 = vrot.lane.b32.xlu0 %v3372, 112
      %v3589 = vpop.permute.xlu0 %3588
      %3590 = vrot.lane.b32.xlu0 %v3374, 112
      %v3591 = vpop.permute.xlu0 %3590
      %3592 = vrot.lane.b32.xlu0 %v3376, 112
      %v3593 = vpop.permute.xlu0 %3592
      %3594 = vrot.lane.b32.xlu0 %v3378, 112
      %v3595 = vpop.permute.xlu0 %3594
      %3596 = vrot.lane.b32.xlu0 %v3373, 112
      %v3597 = vpop.permute.xlu0 %3596
      %3598 = vrot.lane.b32.xlu0 %v3375, 112
      %v3599 = vpop.permute.xlu0 %3598
      %3600 = vrot.lane.b32.xlu0 %v3377, 112
      %v3601 = vpop.permute.xlu0 %3600
      %3602 = vrot.lane.b32.xlu0 %v3379, 112
      %v3603 = vpop.permute.xlu0 %3602
      %v3604 = vsel %vm1278, %v3589, %v3597
      %v3605 = vsel %vm1278, %v3591, %v3599
      %v3606 = vsel %vm1278, %v3593, %v3601
      %v3607 = vsel %vm1278, %v3595, %v3603
      %v3608 = vsel %vm1278, %v3597, %v3589
      %v3609 = vsel %vm1278, %v3599, %v3591
      %v3610 = vsel %vm1278, %v3601, %v3593
      %v3611 = vsel %vm1278, %v3603, %v3595
      %v3612 = vsel %vm1289, %v3604, 0.0
      %v3613 = vsel %vm1290, %v3608, 0.0
      %v3614 = vsel %vm1289, %v3605, 0.0
      %v3615 = vsel %vm1290, %v3609, 0.0
      %v3616 = vsel %vm1289, %v3606, 0.0
      %v3617 = vsel %vm1290, %v3610, 0.0
      %v3618 = vsel %vm1289, %v3607, 0.0
      %v3619 = vsel %vm1290, %v3611, 0.0
      %3620 = vrot.lane.b32.xlu0 %v3372, 111
      %v3621 = vpop.permute.xlu0 %3620
      %3622 = vrot.lane.b32.xlu0 %v3374, 111
      %v3623 = vpop.permute.xlu0 %3622
      %3624 = vrot.lane.b32.xlu0 %v3376, 111
      %v3625 = vpop.permute.xlu0 %3624
      %3626 = vrot.lane.b32.xlu0 %v3378, 111
      %v3627 = vpop.permute.xlu0 %3626
      %3628 = vrot.lane.b32.xlu0 %v3373, 111
      %v3629 = vpop.permute.xlu0 %3628
      %3630 = vrot.lane.b32.xlu0 %v3375, 111
      %v3631 = vpop.permute.xlu0 %3630
      %3632 = vrot.lane.b32.xlu0 %v3377, 111
      %v3633 = vpop.permute.xlu0 %3632
      %3634 = vrot.lane.b32.xlu0 %v3379, 111
      %v3635 = vpop.permute.xlu0 %3634
      %v3636 = vsel %vm1315, %v3621, %v3629
      %v3637 = vsel %vm1315, %v3623, %v3631
      %v3638 = vsel %vm1315, %v3625, %v3633
      %v3639 = vsel %vm1315, %v3627, %v3635
      %v3640 = vsel %vm1315, %v3629, %v3621
      %v3641 = vsel %vm1315, %v3631, %v3623
      %v3642 = vsel %vm1315, %v3633, %v3625
      %v3643 = vsel %vm1315, %v3635, %v3627
      %v3644 = vsel %vm1326, %v3636, 0.0
      %v3645 = vsel %vm1327, %v3640, 0.0
      %v3646 = vsel %vm1326, %v3637, 0.0
      %v3647 = vsel %vm1327, %v3641, 0.0
      %v3648 = vsel %vm1326, %v3638, 0.0
      %v3649 = vsel %vm1327, %v3642, 0.0
      %v3650 = vsel %vm1326, %v3639, 0.0
      %v3651 = vsel %vm1327, %v3643, 0.0
      %3653 = vset.pattern.permute.xlu0 0
      %3654 = vperm.xlu0 %3653, %v3392
      %v3655 = vpop.permute.xlu0 %3654
      %3658 = vset.pattern.permute.xlu0 0
      %3659 = vperm.xlu0 %3658, %v3393
      %v3660 = vpop.permute.xlu0 %3659
      %3663 = vset.pattern.permute.xlu0 0
      %3664 = vperm.xlu0 %3663, %v3394
      %v3665 = vpop.permute.xlu0 %3664
      %3668 = vset.pattern.permute.xlu0 0
      %3669 = vperm.xlu0 %3668, %v3395
      %v3670 = vpop.permute.xlu0 %3669
      %v3673 = vsel %vm1360, %v3382, 0
      %v3676 = vsel %vm1360, %v3385, 0
      %v3679 = vsel %vm1360, %v3388, 0
      %v3682 = vsel %vm1360, %v3391, 0
      %3684 = vmatprep.subr.mxu0 %v3421
      %3685 = vmatpush1.msra.mxu0 %v3420
      %3686 = vmatprep.subr.mxu0 %v3423
      %3687 = vmatpush1.msra.mxu0 %v3422
      %3688 = vmatprep.subr.mxu0 %v3425
      %3689 = vmatpush1.msra.mxu0 %v3424
      %3690 = vmatprep.subr.mxu0 %v3427
      %3691 = vmatpush1.msra.mxu0 %v3426
      %3692 = vmatprep.subr.mxu0 %v3453
      %3693 = vmatpush1.msra.mxu0 %v3452
      %3694 = vmatprep.subr.mxu0 %v3455
      %3695 = vmatpush1.msra.mxu0 %v3454
      %3696 = vmatprep.subr.mxu0 %v3457
      %3697 = vmatpush1.msra.mxu0 %v3456
      %3698 = vmatprep.subr.mxu0 %v3459
      %3699 = vmatpush1.msra.mxu0 %v3458
      %3700 = vmatprep.subr.mxu0 %v3485
      %3701 = vmatpush1.msra.mxu0 %v3484
      %3702 = vmatprep.subr.mxu0 %v3487
      %3703 = vmatpush1.msra.mxu0 %v3486
      %3704 = vmatprep.subr.mxu0 %v3489
      %3705 = vmatpush1.msra.mxu0 %v3488
      %3706 = vmatprep.subr.mxu0 %v3491
      %3707 = vmatpush1.msra.mxu0 %v3490
      %3708 = vmatprep.subr.mxu0 %v3517
      %3709 = vmatpush1.msra.mxu0 %v3516
      %3710 = vmatprep.subr.mxu0 %v3519
      %3711 = vmatpush1.msra.mxu0 %v3518
      %3712 = vmatprep.subr.mxu0 %v3521
      %3713 = vmatpush1.msra.mxu0 %v3520
      %3714 = vmatprep.subr.mxu0 %v3523
      %3715 = vmatpush1.msra.mxu0 %v3522
      %3716 = vmatprep.subr.mxu0 %v3373
      %3717 = vmatpush1.msra.mxu0 %v3372
      %3718 = vmatprep.subr.mxu0 %v3375
      %3719 = vmatpush1.msra.mxu0 %v3374
      %3720 = vmatprep.subr.mxu0 %v3377
      %3721 = vmatpush1.msra.mxu0 %v3376
      %3722 = vmatprep.subr.mxu0 %v3379
      %3723 = vmatpush1.msra.mxu0 %v3378
      %3724 = vmatprep.subr.mxu0 %v3549
      %3725 = vmatpush1.msra.mxu0 %v3548
      %3726 = vmatprep.subr.mxu0 %v3551
      %3727 = vmatpush1.msra.mxu0 %v3550
      %3728 = vmatprep.subr.mxu0 %v3553
      %3729 = vmatpush1.msra.mxu0 %v3552
      %3730 = vmatprep.subr.mxu0 %v3555
      %3731 = vmatpush1.msra.mxu0 %v3554
      %3732 = vmatprep.subr.mxu0 %v3581
      %3733 = vmatpush1.msra.mxu0 %v3580
      %3734 = vmatprep.subr.mxu0 %v3583
      %3735 = vmatpush1.msra.mxu0 %v3582
      %3736 = vmatprep.subr.mxu0 %v3585
      %3737 = vmatpush1.msra.mxu0 %v3584
      %3738 = vmatprep.subr.mxu0 %v3587
      %3739 = vmatpush1.msra.mxu0 %v3586
      %3740 = vmatprep.subr.mxu0 %v3613
      %3741 = vmatpush1.msra.mxu0 %v3612
      %3742 = vmatprep.subr.mxu0 %v3615
      %3743 = vmatpush1.msra.mxu0 %v3614
      %3744 = vmatprep.subr.mxu0 %v3617
      %3745 = vmatpush1.msra.mxu0 %v3616
      %3746 = vmatprep.subr.mxu0 %v3619
      %3747 = vmatpush1.msra.mxu0 %v3618
      %3748 = vmatprep.mubr.f32.mxu0 %v3381
      %3749 = vmatmul.mubr.f32.gmra.mrb[0].mxu0 %v3380
      %v3750 = vpop.f32.mrb[0].mxu0
      %v3751 = vadd.f32 %v3655, %v3750
      %v3752 = vpop.f32.mrb[0].mxu0
      %v3753 = vadd.f32 %v3655, %v3752
      %3754 = vmatprep.mubr.f32.mxu0 %v3384
      %3755 = vmatmul.mubr.f32.gmra.mrb[0].mxu0 %v3383
      %v3756 = vpop.f32.mrb[0].mxu0
      %v3757 = vadd.f32 %v3660, %v3756
      %v3758 = vpop.f32.mrb[0].mxu0
      %v3759 = vadd.f32 %v3660, %v3758
      %3760 = vmatprep.mubr.f32.mxu0 %v3387
      %3761 = vmatmul.mubr.f32.gmra.mrb[0].mxu0 %v3386
      %v3762 = vpop.f32.mrb[0].mxu0
      %v3763 = vadd.f32 %v3665, %v3762
      %v3764 = vpop.f32.mrb[0].mxu0
      %v3765 = vadd.f32 %v3665, %v3764
      %3766 = vmatprep.mubr.f32.mxu0 %v3390
      %3767 = vmatmul.mubr.f32.gmra.mrb[0].mxu0 %v3389
      %v3768 = vpop.f32.mrb[0].mxu0
      %v3769 = vadd.f32 %v3670, %v3768
      %v3770 = vpop.f32.mrb[0].mxu0
      %v3771 = vadd.f32 %v3670, %v3770
      %3772 = vdwg.mxu0
      %3773 = vmatprep.subr.mxu0 %v3645
      %3774 = vmatpush1.msra.mxu0 %v3644
      %3775 = vmatprep.subr.mxu0 %v3647
      %3776 = vmatpush1.msra.mxu0 %v3646
      %3777 = vmatprep.subr.mxu0 %v3649
      %3778 = vmatpush1.msra.mxu0 %v3648
      %3779 = vmatprep.subr.mxu0 %v3651
      %3780 = vmatpush1.msra.mxu0 %v3650
      %3781 = vmatprep.subr.mxu0 0.0
      %3782 = vmatpush1.msra.mxu0 0.0
      %3783 = vmatprep.subr.mxu0 0.0
      %3784 = vmatpush1.msra.mxu0 0.0
      %3785 = vmatprep.subr.mxu0 0.0
      %3786 = vmatpush1.msra.mxu0 0.0
      %3787 = vmatprep.subr.mxu0 0.0
      %3788 = vmatpush1.msra.mxu0 0.0
      %3789 = vmatprep.subr.mxu0 0.0
      %3790 = vmatpush1.msra.mxu0 0.0
      %3791 = vmatprep.subr.mxu0 0.0
      %3792 = vmatpush1.msra.mxu0 0.0
      %3793 = vmatprep.subr.mxu0 0.0
      %3794 = vmatpush1.msra.mxu0 0.0
      %3795 = vmatprep.subr.mxu0 0.0
      %3796 = vmatpush1.msra.mxu0 0.0
      %3797 = vmatprep.subr.mxu0 0.0
      %3798 = vmatpush1.msra.mxu0 0.0
      %3799 = vmatprep.subr.mxu0 0.0
      %3800 = vmatpush1.msra.mxu0 0.0
      %3801 = vmatprep.subr.mxu0 0.0
      %3802 = vmatpush1.msra.mxu0 0.0
      %3803 = vmatprep.subr.mxu0 0.0
      %3804 = vmatpush1.msra.mxu0 0.0
      %3805 = vmatprep.subr.mxu0 0.0
      %3806 = vmatpush1.msra.mxu0 0.0
      %3807 = vmatprep.subr.mxu0 0.0
      %3808 = vmatpush1.msra.mxu0 0.0
      %3809 = vmatprep.subr.mxu0 0.0
      %3810 = vmatpush1.msra.mxu0 0.0
      %3811 = vmatprep.subr.mxu0 0.0
      %3812 = vmatpush1.msra.mxu0 0.0
      %3813 = vmatprep.subr.mxu0 0.0
      %3814 = vmatpush1.msra.mxu0 0.0
      %3815 = vmatprep.subr.mxu0 0.0
      %3816 = vmatpush1.msra.mxu0 0.0
      %3817 = vmatprep.subr.mxu0 0.0
      %3818 = vmatpush1.msra.mxu0 0.0
      %3819 = vmatprep.subr.mxu0 0.0
      %3820 = vmatpush1.msra.mxu0 0.0
      %3821 = vmatprep.subr.mxu0 0.0
      %3822 = vmatpush1.msra.mxu0 0.0
      %3823 = vmatprep.subr.mxu0 0.0
      %3824 = vmatpush1.msra.mxu0 0.0
      %3825 = vmatprep.subr.mxu0 0.0
      %3826 = vmatpush1.msra.mxu0 0.0
      %3827 = vmatprep.subr.mxu0 0.0
      %3828 = vmatpush1.msra.mxu0 0.0
      %3829 = vmatprep.subr.mxu0 0.0
      %3830 = vmatpush1.msra.mxu0 0.0
      %3831 = vmatprep.subr.mxu0 0.0
      %3832 = vmatpush1.msra.mxu0 0.0
      %3833 = vmatprep.subr.mxu0 0.0
      %3834 = vmatpush1.msra.mxu0 0.0
      %3835 = vmatprep.subr.mxu0 0.0
      %3836 = vmatpush1.msra.mxu0 0.0
      %3837 = vmatprep.mubr.f32.mxu0 0.0
      %3838 = vmatmul.mubr.f32.gmra.mrb[0].mxu0 %v3673
      %v3839 = vpop.f32.mrb[0].mxu0
      %v3840 = vadd.f32 %v3751, %v3839
      %v3841 = vpop.f32.mrb[0].mxu0
      %v3842 = vadd.f32 %v3753, %v3841
      %3843 = vmatprep.mubr.f32.mxu0 0.0
      %3844 = vmatmul.mubr.f32.gmra.mrb[0].mxu0 %v3676
      %v3845 = vpop.f32.mrb[0].mxu0
      %v3846 = vadd.f32 %v3757, %v3845
      %v3847 = vpop.f32.mrb[0].mxu0
      %v3848 = vadd.f32 %v3759, %v3847
      %3849 = vmatprep.mubr.f32.mxu0 0.0
      %3850 = vmatmul.mubr.f32.gmra.mrb[0].mxu0 %v3679
      %v3851 = vpop.f32.mrb[0].mxu0
      %v3852 = vadd.f32 %v3763, %v3851
      %v3853 = vpop.f32.mrb[0].mxu0
      %v3854 = vadd.f32 %v3765, %v3853
      %3855 = vmatprep.mubr.f32.mxu0 0.0
      %3856 = vmatmul.mubr.f32.gmra.mrb[0].mxu0 %v3682
      %v3857 = vpop.f32.mrb[0].mxu0
      %v3858 = vadd.f32 %v3769, %v3857
      %v3859 = vpop.f32.mrb[0].mxu0
      %v3860 = vadd.f32 %v3771, %v3859
      %3861 = vdwg.mxu0
      %3862 = vst [vmem:[%s818] sm:$0xff] %v3840
      %3863 = vst [vmem:[%s818 + $0x8] sm:$0xff] %v3842
      %3864 = vst [vmem:[%s818 + $0x10] sm:$0xff] %v3846
      %3865 = vst [vmem:[%s818 + $0x18] sm:$0xff] %v3848
      %3866 = vst [vmem:[%s818 + $0x20] sm:$0xff] %v3852
      %3867 = vst [vmem:[%s818 + $0x28] sm:$0xff] %v3854
      %3868 = vst [vmem:[%s818 + $0x30] sm:$0xff] %v3858
      %3869 = vst [vmem:[%s818 + $0x38] sm:$0xff] %v3860
      %p3870 = scmp.lt.s32.totalorder %s38, 1
      %s3871 = scalar_select %p3870, %s38, 1
      %s3872 = smul.addr %s3871, 8
      %s3873 = smul.addr %s3872, 8
      %s3874 = scalar_lea.vmem %s27, %s3873
      // Predicated region
      $region129: #{simple_conv_forward.1} parent=127 // pred_check
        %p3875 = pneg %p628
      $region130: #{simple_conv_forward.1} parent=127 // pred_check_branch
        %3877 = sbr.rel (%p3875) target = $region132
      $region131: #{simple_conv_forward.1} parent=127 // pred_region
        _
      $region132: #{simple_conv_forward.1} parent=127 // pred_fallthru
        _
    $region128: #{simple_conv_forward.1} parent=5 // pred_fallthru
      _
    %p3878 = scmp.le.s32.totalorder 2, %s33
    // Predicated region
    $region133: #{simple_conv_forward.1} parent=5 // pred_check
      %p3879 = pneg %p3878
    $region134: #{simple_conv_forward.1} parent=5 // pred_check_branch
      %3881 = sbr.rel (%p3879) target = $region136
    $region135: #{simple_conv_forward.1} parent=5 // pred_region
      %s3882 = ssub.s32 %s33, 2
      // Predicated region
      $region137: #{simple_conv_forward.1} parent=135 // pred_check
        %p3883 = pneg %p634
      $region138: #{simple_conv_forward.1} parent=135 // pred_check_branch
        %3885 = sbr.rel (%p3883) target = $region140
      $region139: #{simple_conv_forward.1} parent=135 // pred_region
        %p3886 = scmp.lt.s32.totalorder %s39, 1
        %s3887 = scalar_select %p3886, %s39, 1
        %s3888 = smul.addr %s3887, 8
        %s3889 = smul.addr %s3888, 8
        %s3890 = scalar_lea.vmem %s27, %s3889
      $region140: #{simple_conv_forward.1} parent=135 // pred_fallthru
        _
    $region136: #{simple_conv_forward.1} parent=5 // pred_fallthru
      _
  $region6: #{simple_conv_forward.1} parent=0 // loop_footer
    %s37 = sadd.s32 1, %s33
  $region7: #{simple_conv_forward.1} parent=0 // loop_footer_branch
    %32 = sbr.rel target = $region3
  $region8: #{simple_conv_forward.1} parent=0 // loop_exit
    _

</llo_original>
